<compile_context>
chip_gen: v5e
topology: v5e:2x2
jax: 0.10.0
libtpu: 0.0.40
codegen_flags: <defaults>
</compile_context>

<pallas_src>
import functools
import math

import jax
import jax.numpy as jnp
from jax.experimental import pallas as pl
from jax.experimental.pallas import tpu as pltpu


def _spatial_attention_kernel(w_ref, x_ref, o_ref, sum_ref, max_ref, pad_ref,
                              *, K, H, W):
    """One (batch, channel-chunk) grid step.

    w_ref  : (2*K*K,) f32 in SMEM  — conv weights, channel-major, 1/C folded into
             the avg-channel taps.
    x_ref  : (1, CK, H*W) native dtype in VMEM — lane-dense channel chunk.
    o_ref  : (1, 1, H, W) out block (written only on the last chunk).
    sum_ref: (1, H*W) f32 VMEM scratch — running channel sum.
    max_ref: (1, H*W) f32 VMEM scratch — running channel max.
    pad_ref: (2, H+2P, W+2P) f32 VMEM scratch — zero-halo'd [sum, max] planes.
    """
    P = K // 2
    k = pl.program_id(1)

    # ---- init running reductions on the first channel chunk -------------------
    @pl.when(k == 0)
    def _init():
        sum_ref[...] = jnp.zeros_like(sum_ref)
        max_ref[...] = jnp.full_like(max_ref, -jnp.inf)

    # ---- lane-dense channel reduction for this chunk ---------------------------
    xc = x_ref[0].astype(jnp.float32)                      # (CK, H*W), spatial on lanes
    sum_ref[...] += jnp.sum(xc, axis=0, keepdims=True)     # f32 accumulator
    max_ref[...] = jnp.maximum(max_ref[...], jnp.max(xc, axis=0, keepdims=True))

    # ---- finalize: halo + KxK conv + sigmoid on the last chunk ------------------
    @pl.when(k == pl.num_programs(1) - 1)
    def _finalize():
        # Build the zero halo in-kernel on the two tiny reduced planes (this is
        # exactly conv2d's zero padding of the concatenated [avg, max] map).
        pad_ref[...] = jnp.zeros_like(pad_ref)
        for y in range(H):                                   # static row copies:
            row_s = sum_ref[:, pl.ds(y * W, W)]              # (1, W)
            row_m = max_ref[:, pl.ds(y * W, W)]              # (1, W)
            pad_ref[0, pl.ds(P + y, 1), pl.ds(P, W)] = row_s
            pad_ref[1, pl.ds(P + y, 1), pl.ds(P, W)] = row_m

        acc = jnp.zeros((H, W), jnp.float32)
        # torch.cat([avg, max], dim=1) -> in-channel 0 = avg (sum here), 1 = max.
        for c in range(2):
            base = c * K * K
            plane = pad_ref[c]                               # (H+2P, W+2P)
            for j in range(K):
                slab = plane[:, j:j + W]                     # lane shift hoisted: K per plane
                for i in range(K):
                    wv = w_ref[base + i * K + j]             # scalar from SMEM
                    acc = acc + wv * slab[i:i + H, :]        # sublane-offset slice only

        o_ref[0, 0] = jax.nn.sigmoid(acc).astype(o_ref.dtype)


def _pick_channel_chunk(C, bytes_per_channel, budget=6 << 20):
    """Largest channel chunk whose input block stays well inside scoped VMEM."""
    if C * bytes_per_channel <= budget:
        return C                                   # single chunk (block dim == full C)
    best = C                                       # fallback: full C (raise vmem limit)
    for d in range(8, C, 8):                       # keep block dim a multiple of 8
        if C % d == 0 and d * bytes_per_channel <= budget:
            best = d
    return best


@functools.partial(jax.jit, static_argnames=("kernel_size",))
def spatial_attention(x, w, kernel_size=7):
    """x: (B, C, H, W), w: (1, 2, K, K) -> (B, 1, H, W) in x.dtype."""
    B, C, H, W = x.shape
    K = kernel_size
    P = K // 2
    HW = H * W
    assert w.shape == (1, 2, K, K)

    # Fold 1/C into the avg-channel taps only (kernel accumulates a channel sum).
    w_f = w.astype(jnp.float32)
    w_scaled = w_f.at[0, 0].multiply(1.0 / C)
    w_flat = w_scaled.reshape(2 * K * K)

    # Lane-dense presentation of x for the channel reduction; native dtype DMA.
    xr = x.reshape(B, C, HW)

    itemsize = x.dtype.itemsize
    ck = _pick_channel_chunk(C, HW * itemsize)
    nck = C // ck

    # Explicit VMEM budget: double-buffered x block + output + scratch + margin.
    xblk = ck * HW * itemsize
    outblk = HW * itemsize
    scratch_bytes = 4 * (2 * HW + 2 * (H + 2 * P) * (W + 2 * P))
    need = 2 * xblk + 2 * outblk + scratch_bytes + (1 << 20)
    vmem_limit = int(min(64 << 20, max(16 << 20, need)))

    if nck >= 3:
        # Deeper buffering only when there are enough small per-step DMAs to hide.
        x_spec = pl.BlockSpec((1, ck, HW), lambda b, k: (b, k, 0),
                              pipeline_mode=pl.Buffered(3))
    else:
        x_spec = pl.BlockSpec((1, ck, HW), lambda b, k: (b, k, 0))

    kernel = functools.partial(_spatial_attention_kernel, K=K, H=H, W=W)
    return pl.pallas_call(
        kernel,
        out_shape=jax.ShapeDtypeStruct((B, 1, H, W), x.dtype),
        grid=(B, nck),
        in_specs=[
            # Tiny weight vector -> SMEM, read as scalars inside the kernel.
            pl.BlockSpec(memory_space=pltpu.MemorySpace.SMEM),
            x_spec,
        ],
        # Output block is constant across the channel-chunk axis (written at last k).
        out_specs=pl.BlockSpec((1, 1, H, W), lambda b, k: (b, 0, 0, 0)),
        scratch_shapes=[
            pltpu.VMEM((1, HW), jnp.float32),                      # running sum
            pltpu.VMEM((1, HW), jnp.float32),                      # running max
            pltpu.VMEM((2, H + 2 * P, W + 2 * P), jnp.float32),    # halo'd planes
        ],
        compiler_params=pltpu.CompilerParams(
            dimension_semantics=("parallel", "arbitrary"),
            vmem_limit_bytes=vmem_limit,
        ),
    )(w_flat, xr)


def _reference(x, w, kernel_size=7):
    """Pure-JAX/XLA reference matching the PyTorch module."""
    P = kernel_size // 2
    avg = jnp.mean(x, axis=1, keepdims=True)
    mx = jnp.max(x, axis=1, keepdims=True)
    s = jnp.concatenate([avg, mx], axis=1)
    y = jax.lax.conv_general_dilated(
        s, w, window_strides=(1, 1), padding=[(P, P), (P, P)],
        dimension_numbers=("NCHW", "OIHW", "NCHW"))
    return jax.nn.sigmoid(y)


if __name__ == "__main__":
    key = jax.random.PRNGKey(0)
    kx, kw = jax.random.split(key)

    B, C, H, W = 2, 4, 16, 16
    K = 7
    x = jax.random.normal(kx, (B, C, H, W), jnp.float32)
    # PyTorch default Conv2d init: U(-s, s) with s = 1/sqrt(fan_in) = 1/sqrt(2*K*K).
    s = 1.0 / math.sqrt(2 * K * K)
    w = jax.random.uniform(kw, (1, 2, K, K), jnp.float32, -s, s)

    out = spatial_attention(x, w, kernel_size=K)
    out = jax.block_until_ready(out)

    ref = _reference(x, w, kernel_size=K)
    assert out.shape == (B, 1, H, W)
    assert bool(jnp.all(jnp.isfinite(out)))
    assert bool(jnp.allclose(out, ref, atol=1e-4, rtol=1e-4)), \
        float(jnp.max(jnp.abs(out - ref)))
    print("KERNEL_OK")
</pallas_src>

<mosaic_0001>
module attributes {stable_mosaic.version = 11 : i64} {
  func.func @_spatial_attention_kernel(%arg0: i32, %arg1: i32, %arg2: memref<98xf32, #tpu.memory_space<smem>>, %arg3: memref<1x4x256xf32, #tpu.memory_space<vmem>>, %arg4: memref<1x1x16x16xf32, #tpu.memory_space<vmem>>, %arg5: memref<1x256xf32, #tpu.memory_space<vmem>>, %arg6: memref<1x256xf32, #tpu.memory_space<vmem>>, %arg7: memref<2x22x22xf32, #tpu.memory_space<vmem>>) attributes {dimension_semantics = [#tpu.dimension_semantics<parallel>, #tpu.dimension_semantics<arbitrary>], iteration_bounds = array<i64: 2, 1>, scalar_prefetch = 0 : i64, scratch_operands = 3 : i64, tpu.core_type = #tpu.core_type<tc>, window_params = [{transform_indices = @transform_0, window_bounds = array<i64: 98>}, {transform_indices = @transform_1, window_bounds = array<i64: 1, 4, 256>}, {transform_indices = @transform_2, window_bounds = array<i64: 1, 1, 16, 16>}]} {
    %c0_i32 = arith.constant 0 : i32
    %0 = arith.cmpi eq, %arg1, %c0_i32 : i32
    %1 = arith.extui %0 : i1 to i32
    %c0_i32_0 = arith.constant 0 : i32
    %2 = arith.cmpi ne, %1, %c0_i32_0 : i32
    scf.if %2 {
      %cst_14 = arith.constant 0.000000e+00 : f32
      %18 = vector.broadcast %cst_14 : f32 to vector<1x256xf32>
      %c0_15 = arith.constant 0 : index
      %c0_16 = arith.constant 0 : index
      %19 = vector.load %arg5[%c0_15, %c0_16] : memref<1x256xf32, #tpu.memory_space<vmem>>, vector<1x256xf32>
      tpu.vector_store %arg5[%c0_15, %c0_16], %18 {strides = array<i32>} : memref<1x256xf32, #tpu.memory_space<vmem>>, vector<1x256xf32>,
      %cst_17 = arith.constant 0xFF800000 : f32
      %20 = vector.broadcast %cst_17 : f32 to vector<1x256xf32>
      %c0_18 = arith.constant 0 : index
      %c0_19 = arith.constant 0 : index
      %21 = vector.load %arg6[%c0_18, %c0_19] : memref<1x256xf32, #tpu.memory_space<vmem>>, vector<1x256xf32>
      tpu.vector_store %arg6[%c0_18, %c0_19], %20 {strides = array<i32>} : memref<1x256xf32, #tpu.memory_space<vmem>>, vector<1x256xf32>,
    } else {
    }
    %c0 = arith.constant 0 : index
    %c0_1 = arith.constant 0 : index
    %c0_2 = arith.constant 0 : index
    %3 = vector.load %arg3[%c0, %c0_1, %c0_2] : memref<1x4x256xf32, #tpu.memory_space<vmem>>, vector<1x4x256xf32>
    %4 = vector.shape_cast %3 : vector<1x4x256xf32> to vector<4x256xf32>
    %c0_3 = arith.constant 0 : index
    %c0_4 = arith.constant 0 : index
    %5 = vector.load %arg5[%c0_3, %c0_4] : memref<1x256xf32, #tpu.memory_space<vmem>>, vector<1x256xf32>
    %cst = arith.constant dense<0.000000e+00> : vector<256xf32>
    %6 = vector.multi_reduction <add>, %4, %cst [0] : vector<4x256xf32> to vector<256xf32>
    %7 = vector.shape_cast %6 : vector<256xf32> to vector<1x256xf32>
    %8 = arith.addf %5, %7 : vector<1x256xf32>
    %c0_5 = arith.constant 0 : index
    %c0_6 = arith.constant 0 : index
    %9 = vector.load %arg5[%c0_5, %c0_6] : memref<1x256xf32, #tpu.memory_space<vmem>>, vector<1x256xf32>
    tpu.vector_store %arg5[%c0_5, %c0_6], %8 {strides = array<i32>} : memref<1x256xf32, #tpu.memory_space<vmem>>, vector<1x256xf32>,
    %c0_7 = arith.constant 0 : index
    %c0_8 = arith.constant 0 : index
    %10 = vector.load %arg6[%c0_7, %c0_8] : memref<1x256xf32, #tpu.memory_space<vmem>>, vector<1x256xf32>
    %cst_9 = arith.constant dense<0xFF800000> : vector<256xf32>
    %11 = vector.multi_reduction <maximumf>, %4, %cst_9 [0] : vector<4x256xf32> to vector<256xf32>
    %12 = vector.shape_cast %11 : vector<256xf32> to vector<1x256xf32>
    %13 = arith.maximumf %10, %12 : vector<1x256xf32>
    %c0_10 = arith.constant 0 : index
    %c0_11 = arith.constant 0 : index
    %14 = vector.load %arg6[%c0_10, %c0_11] : memref<1x256xf32, #tpu.memory_space<vmem>>, vector<1x256xf32>
    tpu.vector_store %arg6[%c0_10, %c0_11], %13 {strides = array<i32>} : memref<1x256xf32, #tpu.memory_space<vmem>>, vector<1x256xf32>,
    %c0_i32_12 = arith.constant 0 : i32
    %15 = arith.cmpi eq, %arg1, %c0_i32_12 : i32
    %16 = arith.extui %15 : i1 to i32
    %c0_i32_13 = arith.constant 0 : i32
    %17 = arith.cmpi ne, %16, %c0_i32_13 : i32
    scf.if %17 {
      %cst_14 = arith.constant 0.000000e+00 : f32
      %18 = vector.broadcast %cst_14 : f32 to vector<2x22x22xf32>
      %c0_15 = arith.constant 0 : index
      %c0_16 = arith.constant 0 : index
      %c0_17 = arith.constant 0 : index
      %19 = vector.load %arg7[%c0_15, %c0_16, %c0_17] : memref<2x22x22xf32, #tpu.memory_space<vmem>>, vector<2x22x22xf32>
      tpu.vector_store %arg7[%c0_15, %c0_16, %c0_17], %18 {strides = array<i32>} : memref<2x22x22xf32, #tpu.memory_space<vmem>>, vector<2x22x22xf32>,
      %c0_18 = arith.constant 0 : index
      %c0_19 = arith.constant 0 : index
      %20 = vector.load %arg5[%c0_18, %c0_19] : memref<1x256xf32, #tpu.memory_space<vmem>>, vector<1x16xf32>
      %c0_20 = arith.constant 0 : index
      %c0_21 = arith.constant 0 : index
      %21 = vector.load %arg6[%c0_20, %c0_21] : memref<1x256xf32, #tpu.memory_space<vmem>>, vector<1x16xf32>
      %c0_22 = arith.constant 0 : index
      %c3 = arith.constant 3 : index
      %c3_23 = arith.constant 3 : index
      %22 = vector.load %arg7[%c0_22, %c3, %c3_23] : memref<2x22x22xf32, #tpu.memory_space<vmem>>, vector<1x1x16xf32>
      %23 = vector.shape_cast %22 : vector<1x1x16xf32> to vector<1x16xf32>
      %24 = vector.shape_cast %20 : vector<1x16xf32> to vector<1x1x16xf32>
      tpu.vector_store %arg7[%c0_22, %c3, %c3_23], %24 {strides = array<i32>} : memref<2x22x22xf32, #tpu.memory_space<vmem>>, vector<1x1x16xf32>,
      %c1 = arith.constant 1 : index
      %c3_24 = arith.constant 3 : index
      %c3_25 = arith.constant 3 : index
      %25 = vector.load %arg7[%c1, %c3_24, %c3_25] : memref<2x22x22xf32, #tpu.memory_space<vmem>>, vector<1x1x16xf32>
      %26 = vector.shape_cast %25 : vector<1x1x16xf32> to vector<1x16xf32>
      %27 = vector.shape_cast %21 : vector<1x16xf32> to vector<1x1x16xf32>
      tpu.vector_store %arg7[%c1, %c3_24, %c3_25], %27 {strides = array<i32>} : memref<2x22x22xf32, #tpu.memory_space<vmem>>, vector<1x1x16xf32>,
      %c0_26 = arith.constant 0 : index
      %c16 = arith.constant 16 : index
      %28 = vector.load %arg5[%c0_26, %c16] : memref<1x256xf32, #tpu.memory_space<vmem>>, vector<1x16xf32>
      %c0_27 = arith.constant 0 : index
      %c16_28 = arith.constant 16 : index
      %29 = vector.load %arg6[%c0_27, %c16_28] : memref<1x256xf32, #tpu.memory_space<vmem>>, vector<1x16xf32>
      %c0_29 = arith.constant 0 : index
      %c4 = arith.constant 4 : index
      %c3_30 = arith.constant 3 : index
      %30 = vector.load %arg7[%c0_29, %c4, %c3_30] : memref<2x22x22xf32, #tpu.memory_space<vmem>>, vector<1x1x16xf32>
      %31 = vector.shape_cast %30 : vector<1x1x16xf32> to vector<1x16xf32>
      %32 = vector.shape_cast %28 : vector<1x16xf32> to vector<1x1x16xf32>
      tpu.vector_store %arg7[%c0_29, %c4, %c3_30], %32 {strides = array<i32>} : memref<2x22x22xf32, #tpu.memory_space<vmem>>, vector<1x1x16xf32>,
      %c1_31 = arith.constant 1 : index
      %c4_32 = arith.constant 4 : index
      %c3_33 = arith.constant 3 : index
      %33 = vector.load %arg7[%c1_31, %c4_32, %c3_33] : memref<2x22x22xf32, #tpu.memory_space<vmem>>, vector<1x1x16xf32>
      %34 = vector.shape_cast %33 : vector<1x1x16xf32> to vector<1x16xf32>
      %35 = vector.shape_cast %29 : vector<1x16xf32> to vector<1x1x16xf32>
      tpu.vector_store %arg7[%c1_31, %c4_32, %c3_33], %35 {strides = array<i32>} : memref<2x22x22xf32, #tpu.memory_space<vmem>>, vector<1x1x16xf32>,
      %c0_34 = arith.constant 0 : index
      %c32 = arith.constant 32 : index
      %36 = vector.load %arg5[%c0_34, %c32] : memref<1x256xf32, #tpu.memory_space<vmem>>, vector<1x16xf32>
      %c0_35 = arith.constant 0 : index
      %c32_36 = arith.constant 32 : index
      %37 = vector.load %arg6[%c0_35, %c32_36] : memref<1x256xf32, #tpu.memory_space<vmem>>, vector<1x16xf32>
      %c0_37 = arith.constant 0 : index
      %c5 = arith.constant 5 : index
      %c3_38 = arith.constant 3 : index
      %38 = vector.load %arg7[%c0_37, %c5, %c3_38] : memref<2x22x22xf32, #tpu.memory_space<vmem>>, vector<1x1x16xf32>
      %39 = vector.shape_cast %38 : vector<1x1x16xf32> to vector<1x16xf32>
      %40 = vector.shape_cast %36 : vector<1x16xf32> to vector<1x1x16xf32>
      tpu.vector_store %arg7[%c0_37, %c5, %c3_38], %40 {strides = array<i32>} : memref<2x22x22xf32, #tpu.memory_space<vmem>>, vector<1x1x16xf32>,
      %c1_39 = arith.constant 1 : index
      %c5_40 = arith.constant 5 : index
      %c3_41 = arith.constant 3 : index
      %41 = vector.load %arg7[%c1_39, %c5_40, %c3_41] : memref<2x22x22xf32, #tpu.memory_space<vmem>>, vector<1x1x16xf32>
      %42 = vector.shape_cast %41 : vector<1x1x16xf32> to vector<1x16xf32>
      %43 = vector.shape_cast %37 : vector<1x16xf32> to vector<1x1x16xf32>
      tpu.vector_store %arg7[%c1_39, %c5_40, %c3_41], %43 {strides = array<i32>} : memref<2x22x22xf32, #tpu.memory_space<vmem>>, vector<1x1x16xf32>,
      %c0_42 = arith.constant 0 : index
      %c48 = arith.constant 48 : index
      %44 = vector.load %arg5[%c0_42, %c48] : memref<1x256xf32, #tpu.memory_space<vmem>>, vector<1x16xf32>
      %c0_43 = arith.constant 0 : index
      %c48_44 = arith.constant 48 : index
      %45 = vector.load %arg6[%c0_43, %c48_44] : memref<1x256xf32, #tpu.memory_space<vmem>>, vector<1x16xf32>
      %c0_45 = arith.constant 0 : index
      %c6 = arith.constant 6 : index
      %c3_46 = arith.constant 3 : index
      %46 = vector.load %arg7[%c0_45, %c6, %c3_46] : memref<2x22x22xf32, #tpu.memory_space<vmem>>, vector<1x1x16xf32>
      %47 = vector.shape_cast %46 : vector<1x1x16xf32> to vector<1x16xf32>
      %48 = vector.shape_cast %44 : vector<1x16xf32> to vector<1x1x16xf32>
      tpu.vector_store %arg7[%c0_45, %c6, %c3_46], %48 {strides = array<i32>} : memref<2x22x22xf32, #tpu.memory_space<vmem>>, vector<1x1x16xf32>,
      %c1_47 = arith.constant 1 : index
      %c6_48 = arith.constant 6 : index
      %c3_49 = arith.constant 3 : index
      %49 = vector.load %arg7[%c1_47, %c6_48, %c3_49] : memref<2x22x22xf32, #tpu.memory_space<vmem>>, vector<1x1x16xf32>
      %50 = vector.shape_cast %49 : vector<1x1x16xf32> to vector<1x16xf32>
      %51 = vector.shape_cast %45 : vector<1x16xf32> to vector<1x1x16xf32>
      tpu.vector_store %arg7[%c1_47, %c6_48, %c3_49], %51 {strides = array<i32>} : memref<2x22x22xf32, #tpu.memory_space<vmem>>, vector<1x1x16xf32>,
      %c0_50 = arith.constant 0 : index
      %c64 = arith.constant 64 : index
      %52 = vector.load %arg5[%c0_50, %c64] : memref<1x256xf32, #tpu.memory_space<vmem>>, vector<1x16xf32>
      %c0_51 = arith.constant 0 : index
      %c64_52 = arith.constant 64 : index
      %53 = vector.load %arg6[%c0_51, %c64_52] : memref<1x256xf32, #tpu.memory_space<vmem>>, vector<1x16xf32>
      %c0_53 = arith.constant 0 : index
      %c7 = arith.constant 7 : index
      %c3_54 = arith.constant 3 : index
      %54 = vector.load %arg7[%c0_53, %c7, %c3_54] : memref<2x22x22xf32, #tpu.memory_space<vmem>>, vector<1x1x16xf32>
      %55 = vector.shape_cast %54 : vector<1x1x16xf32> to vector<1x16xf32>
      %56 = vector.shape_cast %52 : vector<1x16xf32> to vector<1x1x16xf32>
      tpu.vector_store %arg7[%c0_53, %c7, %c3_54], %56 {strides = array<i32>} : memref<2x22x22xf32, #tpu.memory_space<vmem>>, vector<1x1x16xf32>,
      %c1_55 = arith.constant 1 : index
      %c7_56 = arith.constant 7 : index
      %c3_57 = arith.constant 3 : index
      %57 = vector.load %arg7[%c1_55, %c7_56, %c3_57] : memref<2x22x22xf32, #tpu.memory_space<vmem>>, vector<1x1x16xf32>
      %58 = vector.shape_cast %57 : vector<1x1x16xf32> to vector<1x16xf32>
      %59 = vector.shape_cast %53 : vector<1x16xf32> to vector<1x1x16xf32>
      tpu.vector_store %arg7[%c1_55, %c7_56, %c3_57], %59 {strides = array<i32>} : memref<2x22x22xf32, #tpu.memory_space<vmem>>, vector<1x1x16xf32>,
      %c0_58 = arith.constant 0 : index
      %c80 = arith.constant 80 : index
      %60 = vector.load %arg5[%c0_58, %c80] : memref<1x256xf32, #tpu.memory_space<vmem>>, vector<1x16xf32>
      %c0_59 = arith.constant 0 : index
      %c80_60 = arith.constant 80 : index
      %61 = vector.load %arg6[%c0_59, %c80_60] : memref<1x256xf32, #tpu.memory_space<vmem>>, vector<1x16xf32>
      %c0_61 = arith.constant 0 : index
      %c8 = arith.constant 8 : index
      %c3_62 = arith.constant 3 : index
      %62 = vector.load %arg7[%c0_61, %c8, %c3_62] : memref<2x22x22xf32, #tpu.memory_space<vmem>>, vector<1x1x16xf32>
      %63 = vector.shape_cast %62 : vector<1x1x16xf32> to vector<1x16xf32>
      %64 = vector.shape_cast %60 : vector<1x16xf32> to vector<1x1x16xf32>
      tpu.vector_store %arg7[%c0_61, %c8, %c3_62], %64 {strides = array<i32>} : memref<2x22x22xf32, #tpu.memory_space<vmem>>, vector<1x1x16xf32>,
      %c1_63 = arith.constant 1 : index
      %c8_64 = arith.constant 8 : index
      %c3_65 = arith.constant 3 : index
      %65 = vector.load %arg7[%c1_63, %c8_64, %c3_65] : memref<2x22x22xf32, #tpu.memory_space<vmem>>, vector<1x1x16xf32>
      %66 = vector.shape_cast %65 : vector<1x1x16xf32> to vector<1x16xf32>
      %67 = vector.shape_cast %61 : vector<1x16xf32> to vector<1x1x16xf32>
      tpu.vector_store %arg7[%c1_63, %c8_64, %c3_65], %67 {strides = array<i32>} : memref<2x22x22xf32, #tpu.memory_space<vmem>>, vector<1x1x16xf32>,
      %c0_66 = arith.constant 0 : index
      %c96 = arith.constant 96 : index
      %68 = vector.load %arg5[%c0_66, %c96] : memref<1x256xf32, #tpu.memory_space<vmem>>, vector<1x16xf32>
      %c0_67 = arith.constant 0 : index
      %c96_68 = arith.constant 96 : index
      %69 = vector.load %arg6[%c0_67, %c96_68] : memref<1x256xf32, #tpu.memory_space<vmem>>, vector<1x16xf32>
      %c0_69 = arith.constant 0 : index
      %c9 = arith.constant 9 : index
      %c3_70 = arith.constant 3 : index
      %70 = vector.load %arg7[%c0_69, %c9, %c3_70] : memref<2x22x22xf32, #tpu.memory_space<vmem>>, vector<1x1x16xf32>
      %71 = vector.shape_cast %70 : vector<1x1x16xf32> to vector<1x16xf32>
      %72 = vector.shape_cast %68 : vector<1x16xf32> to vector<1x1x16xf32>
      tpu.vector_store %arg7[%c0_69, %c9, %c3_70], %72 {strides = array<i32>} : memref<2x22x22xf32, #tpu.memory_space<vmem>>, vector<1x1x16xf32>,
      %c1_71 = arith.constant 1 : index
      %c9_72 = arith.constant 9 : index
      %c3_73 = arith.constant 3 : index
      %73 = vector.load %arg7[%c1_71, %c9_72, %c3_73] : memref<2x22x22xf32, #tpu.memory_space<vmem>>, vector<1x1x16xf32>
      %74 = vector.shape_cast %73 : vector<1x1x16xf32> to vector<1x16xf32>
      %75 = vector.shape_cast %69 : vector<1x16xf32> to vector<1x1x16xf32>
      tpu.vector_store %arg7[%c1_71, %c9_72, %c3_73], %75 {strides = array<i32>} : memref<2x22x22xf32, #tpu.memory_space<vmem>>, vector<1x1x16xf32>,
      %c0_74 = arith.constant 0 : index
      %c112 = arith.constant 112 : index
      %76 = vector.load %arg5[%c0_74, %c112] : memref<1x256xf32, #tpu.memory_space<vmem>>, vector<1x16xf32>
      %c0_75 = arith.constant 0 : index
      %c112_76 = arith.constant 112 : index
      %77 = vector.load %arg6[%c0_75, %c112_76] : memref<1x256xf32, #tpu.memory_space<vmem>>, vector<1x16xf32>
      %c0_77 = arith.constant 0 : index
      %c10 = arith.constant 10 : index
      %c3_78 = arith.constant 3 : index
      %78 = vector.load %arg7[%c0_77, %c10, %c3_78] : memref<2x22x22xf32, #tpu.memory_space<vmem>>, vector<1x1x16xf32>
      %79 = vector.shape_cast %78 : vector<1x1x16xf32> to vector<1x16xf32>
      %80 = vector.shape_cast %76 : vector<1x16xf32> to vector<1x1x16xf32>
      tpu.vector_store %arg7[%c0_77, %c10, %c3_78], %80 {strides = array<i32>} : memref<2x22x22xf32, #tpu.memory_space<vmem>>, vector<1x1x16xf32>,
      %c1_79 = arith.constant 1 : index
      %c10_80 = arith.constant 10 : index
      %c3_81 = arith.constant 3 : index
      %81 = vector.load %arg7[%c1_79, %c10_80, %c3_81] : memref<2x22x22xf32, #tpu.memory_space<vmem>>, vector<1x1x16xf32>
      %82 = vector.shape_cast %81 : vector<1x1x16xf32> to vector<1x16xf32>
      %83 = vector.shape_cast %77 : vector<1x16xf32> to vector<1x1x16xf32>
      tpu.vector_store %arg7[%c1_79, %c10_80, %c3_81], %83 {strides = array<i32>} : memref<2x22x22xf32, #tpu.memory_space<vmem>>, vector<1x1x16xf32>,
      %c0_82 = arith.constant 0 : index
      %c128 = arith.constant 128 : index
      %84 = vector.load %arg5[%c0_82, %c128] : memref<1x256xf32, #tpu.memory_space<vmem>>, vector<1x16xf32>
      %c0_83 = arith.constant 0 : index
      %c128_84 = arith.constant 128 : index
      %85 = vector.load %arg6[%c0_83, %c128_84] : memref<1x256xf32, #tpu.memory_space<vmem>>, vector<1x16xf32>
      %c0_85 = arith.constant 0 : index
      %c11 = arith.constant 11 : index
      %c3_86 = arith.constant 3 : index
      %86 = vector.load %arg7[%c0_85, %c11, %c3_86] : memref<2x22x22xf32, #tpu.memory_space<vmem>>, vector<1x1x16xf32>
      %87 = vector.shape_cast %86 : vector<1x1x16xf32> to vector<1x16xf32>
      %88 = vector.shape_cast %84 : vector<1x16xf32> to vector<1x1x16xf32>
      tpu.vector_store %arg7[%c0_85, %c11, %c3_86], %88 {strides = array<i32>} : memref<2x22x22xf32, #tpu.memory_space<vmem>>, vector<1x1x16xf32>,
      %c1_87 = arith.constant 1 : index
      %c11_88 = arith.constant 11 : index
      %c3_89 = arith.constant 3 : index
      %89 = vector.load %arg7[%c1_87, %c11_88, %c3_89] : memref<2x22x22xf32, #tpu.memory_space<vmem>>, vector<1x1x16xf32>
      %90 = vector.shape_cast %89 : vector<1x1x16xf32> to vector<1x16xf32>
      %91 = vector.shape_cast %85 : vector<1x16xf32> to vector<1x1x16xf32>
      tpu.vector_store %arg7[%c1_87, %c11_88, %c3_89], %91 {strides = array<i32>} : memref<2x22x22xf32, #tpu.memory_space<vmem>>, vector<1x1x16xf32>,
      %c0_90 = arith.constant 0 : index
      %c144 = arith.constant 144 : index
      %92 = vector.load %arg5[%c0_90, %c144] : memref<1x256xf32, #tpu.memory_space<vmem>>, vector<1x16xf32>
      %c0_91 = arith.constant 0 : index
      %c144_92 = arith.constant 144 : index
      %93 = vector.load %arg6[%c0_91, %c144_92] : memref<1x256xf32, #tpu.memory_space<vmem>>, vector<1x16xf32>
      %c0_93 = arith.constant 0 : index
      %c12 = arith.constant 12 : index
      %c3_94 = arith.constant 3 : index
      %94 = vector.load %arg7[%c0_93, %c12, %c3_94] : memref<2x22x22xf32, #tpu.memory_space<vmem>>, vector<1x1x16xf32>
      %95 = vector.shape_cast %94 : vector<1x1x16xf32> to vector<1x16xf32>
      %96 = vector.shape_cast %92 : vector<1x16xf32> to vector<1x1x16xf32>
      tpu.vector_store %arg7[%c0_93, %c12, %c3_94], %96 {strides = array<i32>} : memref<2x22x22xf32, #tpu.memory_space<vmem>>, vector<1x1x16xf32>,
      %c1_95 = arith.constant 1 : index
      %c12_96 = arith.constant 12 : index
      %c3_97 = arith.constant 3 : index
      %97 = vector.load %arg7[%c1_95, %c12_96, %c3_97] : memref<2x22x22xf32, #tpu.memory_space<vmem>>, vector<1x1x16xf32>
      %98 = vector.shape_cast %97 : vector<1x1x16xf32> to vector<1x16xf32>
      %99 = vector.shape_cast %93 : vector<1x16xf32> to vector<1x1x16xf32>
      tpu.vector_store %arg7[%c1_95, %c12_96, %c3_97], %99 {strides = array<i32>} : memref<2x22x22xf32, #tpu.memory_space<vmem>>, vector<1x1x16xf32>,
      %c0_98 = arith.constant 0 : index
      %c160 = arith.constant 160 : index
      %100 = vector.load %arg5[%c0_98, %c160] : memref<1x256xf32, #tpu.memory_space<vmem>>, vector<1x16xf32>
      %c0_99 = arith.constant 0 : index
      %c160_100 = arith.constant 160 : index
      %101 = vector.load %arg6[%c0_99, %c160_100] : memref<1x256xf32, #tpu.memory_space<vmem>>, vector<1x16xf32>
      %c0_101 = arith.constant 0 : index
      %c13 = arith.constant 13 : index
      %c3_102 = arith.constant 3 : index
      %102 = vector.load %arg7[%c0_101, %c13, %c3_102] : memref<2x22x22xf32, #tpu.memory_space<vmem>>, vector<1x1x16xf32>
      %103 = vector.shape_cast %102 : vector<1x1x16xf32> to vector<1x16xf32>
      %104 = vector.shape_cast %100 : vector<1x16xf32> to vector<1x1x16xf32>
      tpu.vector_store %arg7[%c0_101, %c13, %c3_102], %104 {strides = array<i32>} : memref<2x22x22xf32, #tpu.memory_space<vmem>>, vector<1x1x16xf32>,
      %c1_103 = arith.constant 1 : index
      %c13_104 = arith.constant 13 : index
      %c3_105 = arith.constant 3 : index
      %105 = vector.load %arg7[%c1_103, %c13_104, %c3_105] : memref<2x22x22xf32, #tpu.memory_space<vmem>>, vector<1x1x16xf32>
      %106 = vector.shape_cast %105 : vector<1x1x16xf32> to vector<1x16xf32>
      %107 = vector.shape_cast %101 : vector<1x16xf32> to vector<1x1x16xf32>
      tpu.vector_store %arg7[%c1_103, %c13_104, %c3_105], %107 {strides = array<i32>} : memref<2x22x22xf32, #tpu.memory_space<vmem>>, vector<1x1x16xf32>,
      %c0_106 = arith.constant 0 : index
      %c176 = arith.constant 176 : index
      %108 = vector.load %arg5[%c0_106, %c176] : memref<1x256xf32, #tpu.memory_space<vmem>>, vector<1x16xf32>
      %c0_107 = arith.constant 0 : index
      %c176_108 = arith.constant 176 : index
      %109 = vector.load %arg6[%c0_107, %c176_108] : memref<1x256xf32, #tpu.memory_space<vmem>>, vector<1x16xf32>
      %c0_109 = arith.constant 0 : index
      %c14 = arith.constant 14 : index
      %c3_110 = arith.constant 3 : index
      %110 = vector.load %arg7[%c0_109, %c14, %c3_110] : memref<2x22x22xf32, #tpu.memory_space<vmem>>, vector<1x1x16xf32>
      %111 = vector.shape_cast %110 : vector<1x1x16xf32> to vector<1x16xf32>
      %112 = vector.shape_cast %108 : vector<1x16xf32> to vector<1x1x16xf32>
      tpu.vector_store %arg7[%c0_109, %c14, %c3_110], %112 {strides = array<i32>} : memref<2x22x22xf32, #tpu.memory_space<vmem>>, vector<1x1x16xf32>,
      %c1_111 = arith.constant 1 : index
      %c14_112 = arith.constant 14 : index
      %c3_113 = arith.constant 3 : index
      %113 = vector.load %arg7[%c1_111, %c14_112, %c3_113] : memref<2x22x22xf32, #tpu.memory_space<vmem>>, vector<1x1x16xf32>
      %114 = vector.shape_cast %113 : vector<1x1x16xf32> to vector<1x16xf32>
      %115 = vector.shape_cast %109 : vector<1x16xf32> to vector<1x1x16xf32>
      tpu.vector_store %arg7[%c1_111, %c14_112, %c3_113], %115 {strides = array<i32>} : memref<2x22x22xf32, #tpu.memory_space<vmem>>, vector<1x1x16xf32>,
      %c0_114 = arith.constant 0 : index
      %c192 = arith.constant 192 : index
      %116 = vector.load %arg5[%c0_114, %c192] : memref<1x256xf32, #tpu.memory_space<vmem>>, vector<1x16xf32>
      %c0_115 = arith.constant 0 : index
      %c192_116 = arith.constant 192 : index
      %117 = vector.load %arg6[%c0_115, %c192_116] : memref<1x256xf32, #tpu.memory_space<vmem>>, vector<1x16xf32>
      %c0_117 = arith.constant 0 : index
      %c15 = arith.constant 15 : index
      %c3_118 = arith.constant 3 : index
      %118 = vector.load %arg7[%c0_117, %c15, %c3_118] : memref<2x22x22xf32, #tpu.memory_space<vmem>>, vector<1x1x16xf32>
      %119 = vector.shape_cast %118 : vector<1x1x16xf32> to vector<1x16xf32>
      %120 = vector.shape_cast %116 : vector<1x16xf32> to vector<1x1x16xf32>
      tpu.vector_store %arg7[%c0_117, %c15, %c3_118], %120 {strides = array<i32>} : memref<2x22x22xf32, #tpu.memory_space<vmem>>, vector<1x1x16xf32>,
      %c1_119 = arith.constant 1 : index
      %c15_120 = arith.constant 15 : index
      %c3_121 = arith.constant 3 : index
      %121 = vector.load %arg7[%c1_119, %c15_120, %c3_121] : memref<2x22x22xf32, #tpu.memory_space<vmem>>, vector<1x1x16xf32>
      %122 = vector.shape_cast %121 : vector<1x1x16xf32> to vector<1x16xf32>
      %123 = vector.shape_cast %117 : vector<1x16xf32> to vector<1x1x16xf32>
      tpu.vector_store %arg7[%c1_119, %c15_120, %c3_121], %123 {strides = array<i32>} : memref<2x22x22xf32, #tpu.memory_space<vmem>>, vector<1x1x16xf32>,
      %c0_122 = arith.constant 0 : index
      %c208 = arith.constant 208 : index
      %124 = vector.load %arg5[%c0_122, %c208] : memref<1x256xf32, #tpu.memory_space<vmem>>, vector<1x16xf32>
      %c0_123 = arith.constant 0 : index
      %c208_124 = arith.constant 208 : index
      %125 = vector.load %arg6[%c0_123, %c208_124] : memref<1x256xf32, #tpu.memory_space<vmem>>, vector<1x16xf32>
      %c0_125 = arith.constant 0 : index
      %c16_126 = arith.constant 16 : index
      %c3_127 = arith.constant 3 : index
      %126 = vector.load %arg7[%c0_125, %c16_126, %c3_127] : memref<2x22x22xf32, #tpu.memory_space<vmem>>, vector<1x1x16xf32>
      %127 = vector.shape_cast %126 : vector<1x1x16xf32> to vector<1x16xf32>
      %128 = vector.shape_cast %124 : vector<1x16xf32> to vector<1x1x16xf32>
      tpu.vector_store %arg7[%c0_125, %c16_126, %c3_127], %128 {strides = array<i32>} : memref<2x22x22xf32, #tpu.memory_space<vmem>>, vector<1x1x16xf32>,
      %c1_128 = arith.constant 1 : index
      %c16_129 = arith.constant 16 : index
      %c3_130 = arith.constant 3 : index
      %129 = vector.load %arg7[%c1_128, %c16_129, %c3_130] : memref<2x22x22xf32, #tpu.memory_space<vmem>>, vector<1x1x16xf32>
      %130 = vector.shape_cast %129 : vector<1x1x16xf32> to vector<1x16xf32>
      %131 = vector.shape_cast %125 : vector<1x16xf32> to vector<1x1x16xf32>
      tpu.vector_store %arg7[%c1_128, %c16_129, %c3_130], %131 {strides = array<i32>} : memref<2x22x22xf32, #tpu.memory_space<vmem>>, vector<1x1x16xf32>,
      %c0_131 = arith.constant 0 : index
      %c224 = arith.constant 224 : index
      %132 = vector.load %arg5[%c0_131, %c224] : memref<1x256xf32, #tpu.memory_space<vmem>>, vector<1x16xf32>
      %c0_132 = arith.constant 0 : index
      %c224_133 = arith.constant 224 : index
      %133 = vector.load %arg6[%c0_132, %c224_133] : memref<1x256xf32, #tpu.memory_space<vmem>>, vector<1x16xf32>
      %c0_134 = arith.constant 0 : index
      %c17 = arith.constant 17 : index
      %c3_135 = arith.constant 3 : index
      %134 = vector.load %arg7[%c0_134, %c17, %c3_135] : memref<2x22x22xf32, #tpu.memory_space<vmem>>, vector<1x1x16xf32>
      %135 = vector.shape_cast %134 : vector<1x1x16xf32> to vector<1x16xf32>
      %136 = vector.shape_cast %132 : vector<1x16xf32> to vector<1x1x16xf32>
      tpu.vector_store %arg7[%c0_134, %c17, %c3_135], %136 {strides = array<i32>} : memref<2x22x22xf32, #tpu.memory_space<vmem>>, vector<1x1x16xf32>,
      %c1_136 = arith.constant 1 : index
      %c17_137 = arith.constant 17 : index
      %c3_138 = arith.constant 3 : index
      %137 = vector.load %arg7[%c1_136, %c17_137, %c3_138] : memref<2x22x22xf32, #tpu.memory_space<vmem>>, vector<1x1x16xf32>
      %138 = vector.shape_cast %137 : vector<1x1x16xf32> to vector<1x16xf32>
      %139 = vector.shape_cast %133 : vector<1x16xf32> to vector<1x1x16xf32>
      tpu.vector_store %arg7[%c1_136, %c17_137, %c3_138], %139 {strides = array<i32>} : memref<2x22x22xf32, #tpu.memory_space<vmem>>, vector<1x1x16xf32>,
      %c0_139 = arith.constant 0 : index
      %c240 = arith.constant 240 : index
      %140 = vector.load %arg5[%c0_139, %c240] : memref<1x256xf32, #tpu.memory_space<vmem>>, vector<1x16xf32>
      %c0_140 = arith.constant 0 : index
      %c240_141 = arith.constant 240 : index
      %141 = vector.load %arg6[%c0_140, %c240_141] : memref<1x256xf32, #tpu.memory_space<vmem>>, vector<1x16xf32>
      %c0_142 = arith.constant 0 : index
      %c18 = arith.constant 18 : index
      %c3_143 = arith.constant 3 : index
      %142 = vector.load %arg7[%c0_142, %c18, %c3_143] : memref<2x22x22xf32, #tpu.memory_space<vmem>>, vector<1x1x16xf32>
      %143 = vector.shape_cast %142 : vector<1x1x16xf32> to vector<1x16xf32>
      %144 = vector.shape_cast %140 : vector<1x16xf32> to vector<1x1x16xf32>
      tpu.vector_store %arg7[%c0_142, %c18, %c3_143], %144 {strides = array<i32>} : memref<2x22x22xf32, #tpu.memory_space<vmem>>, vector<1x1x16xf32>,
      %c1_144 = arith.constant 1 : index
      %c18_145 = arith.constant 18 : index
      %c3_146 = arith.constant 3 : index
      %145 = vector.load %arg7[%c1_144, %c18_145, %c3_146] : memref<2x22x22xf32, #tpu.memory_space<vmem>>, vector<1x1x16xf32>
      %146 = vector.shape_cast %145 : vector<1x1x16xf32> to vector<1x16xf32>
      %147 = vector.shape_cast %141 : vector<1x16xf32> to vector<1x1x16xf32>
      tpu.vector_store %arg7[%c1_144, %c18_145, %c3_146], %147 {strides = array<i32>} : memref<2x22x22xf32, #tpu.memory_space<vmem>>, vector<1x1x16xf32>,
      %cst_147 = arith.constant 0.000000e+00 : f32
      %148 = vector.broadcast %cst_147 : f32 to vector<16x16xf32>
      %c0_148 = arith.constant 0 : index
      %c0_149 = arith.constant 0 : index
      %c0_150 = arith.constant 0 : index
      %149 = vector.load %arg7[%c0_148, %c0_149, %c0_150] : memref<2x22x22xf32, #tpu.memory_space<vmem>>, vector<1x22x22xf32>
      %150 = vector.shape_cast %149 : vector<1x22x22xf32> to vector<22x22xf32>
      %151 = vector.extract_strided_slice %150 {offsets = [0, 0], sizes = [22, 16], strides = [1, 1]} : vector<22x22xf32> to vector<22x16xf32>
      %c0_151 = arith.constant 0 : index
      %152 = memref.load %arg2[%c0_151] : memref<98xf32, #tpu.memory_space<smem>>
      %153 = vector.extract_strided_slice %151 {offsets = [0, 0], sizes = [16, 16], strides = [1, 1]} : vector<22x16xf32> to vector<16x16xf32>
      %154 = vector.broadcast %152 : f32 to vector<16x16xf32>
      %155 = arith.mulf %154, %153 : vector<16x16xf32>
      %156 = arith.addf %148, %155 : vector<16x16xf32>
      %c7_152 = arith.constant 7 : index
      %157 = memref.load %arg2[%c7_152] : memref<98xf32, #tpu.memory_space<smem>>
      %158 = vector.extract_strided_slice %151 {offsets = [1, 0], sizes = [16, 16], strides = [1, 1]} : vector<22x16xf32> to vector<16x16xf32>
      %159 = vector.broadcast %157 : f32 to vector<16x16xf32>
      %160 = arith.mulf %159, %158 : vector<16x16xf32>
      %161 = arith.addf %156, %160 : vector<16x16xf32>
      %c14_153 = arith.constant 14 : index
      %162 = memref.load %arg2[%c14_153] : memref<98xf32, #tpu.memory_space<smem>>
      %163 = vector.extract_strided_slice %151 {offsets = [2, 0], sizes = [16, 16], strides = [1, 1]} : vector<22x16xf32> to vector<16x16xf32>
      %164 = vector.broadcast %162 : f32 to vector<16x16xf32>
      %165 = arith.mulf %164, %163 : vector<16x16xf32>
      %166 = arith.addf %161, %165 : vector<16x16xf32>
      %c21 = arith.constant 21 : index
      %167 = memref.load %arg2[%c21] : memref<98xf32, #tpu.memory_space<smem>>
      %168 = vector.extract_strided_slice %151 {offsets = [3, 0], sizes = [16, 16], strides = [1, 1]} : vector<22x16xf32> to vector<16x16xf32>
      %169 = vector.broadcast %167 : f32 to vector<16x16xf32>
      %170 = arith.mulf %169, %168 : vector<16x16xf32>
      %171 = arith.addf %166, %170 : vector<16x16xf32>
      %c28 = arith.constant 28 : index
      %172 = memref.load %arg2[%c28] : memref<98xf32, #tpu.memory_space<smem>>
      %173 = vector.extract_strided_slice %151 {offsets = [4, 0], sizes = [16, 16], strides = [1, 1]} : vector<22x16xf32> to vector<16x16xf32>
      %174 = vector.broadcast %172 : f32 to vector<16x16xf32>
      %175 = arith.mulf %174, %173 : vector<16x16xf32>
      %176 = arith.addf %171, %175 : vector<16x16xf32>
      %c35 = arith.constant 35 : index
      %177 = memref.load %arg2[%c35] : memref<98xf32, #tpu.memory_space<smem>>
      %178 = vector.extract_strided_slice %151 {offsets = [5, 0], sizes = [16, 16], strides = [1, 1]} : vector<22x16xf32> to vector<16x16xf32>
      %179 = vector.broadcast %177 : f32 to vector<16x16xf32>
      %180 = arith.mulf %179, %178 : vector<16x16xf32>
      %181 = arith.addf %176, %180 : vector<16x16xf32>
      %c42 = arith.constant 42 : index
      %182 = memref.load %arg2[%c42] : memref<98xf32, #tpu.memory_space<smem>>
      %183 = vector.extract_strided_slice %151 {offsets = [6, 0], sizes = [16, 16], strides = [1, 1]} : vector<22x16xf32> to vector<16x16xf32>
      %184 = vector.broadcast %182 : f32 to vector<16x16xf32>
      %185 = arith.mulf %184, %183 : vector<16x16xf32>
      %186 = arith.addf %181, %185 : vector<16x16xf32>
      %187 = vector.extract_strided_slice %150 {offsets = [0, 1], sizes = [22, 16], strides = [1, 1]} : vector<22x22xf32> to vector<22x16xf32>
      %c1_154 = arith.constant 1 : index
      %188 = memref.load %arg2[%c1_154] : memref<98xf32, #tpu.memory_space<smem>>
      %189 = vector.extract_strided_slice %187 {offsets = [0, 0], sizes = [16, 16], strides = [1, 1]} : vector<22x16xf32> to vector<16x16xf32>
      %190 = vector.broadcast %188 : f32 to vector<16x16xf32>
      %191 = arith.mulf %190, %189 : vector<16x16xf32>
      %192 = arith.addf %186, %191 : vector<16x16xf32>
      %c8_155 = arith.constant 8 : index
      %193 = memref.load %arg2[%c8_155] : memref<98xf32, #tpu.memory_space<smem>>
      %194 = vector.extract_strided_slice %187 {offsets = [1, 0], sizes = [16, 16], strides = [1, 1]} : vector<22x16xf32> to vector<16x16xf32>
      %195 = vector.broadcast %193 : f32 to vector<16x16xf32>
      %196 = arith.mulf %195, %194 : vector<16x16xf32>
      %197 = arith.addf %192, %196 : vector<16x16xf32>
      %c15_156 = arith.constant 15 : index
      %198 = memref.load %arg2[%c15_156] : memref<98xf32, #tpu.memory_space<smem>>
      %199 = vector.extract_strided_slice %187 {offsets = [2, 0], sizes = [16, 16], strides = [1, 1]} : vector<22x16xf32> to vector<16x16xf32>
      %200 = vector.broadcast %198 : f32 to vector<16x16xf32>
      %201 = arith.mulf %200, %199 : vector<16x16xf32>
      %202 = arith.addf %197, %201 : vector<16x16xf32>
      %c22 = arith.constant 22 : index
      %203 = memref.load %arg2[%c22] : memref<98xf32, #tpu.memory_space<smem>>
      %204 = vector.extract_strided_slice %187 {offsets = [3, 0], sizes = [16, 16], strides = [1, 1]} : vector<22x16xf32> to vector<16x16xf32>
      %205 = vector.broadcast %203 : f32 to vector<16x16xf32>
      %206 = arith.mulf %205, %204 : vector<16x16xf32>
      %207 = arith.addf %202, %206 : vector<16x16xf32>
      %c29 = arith.constant 29 : index
      %208 = memref.load %arg2[%c29] : memref<98xf32, #tpu.memory_space<smem>>
      %209 = vector.extract_strided_slice %187 {offsets = [4, 0], sizes = [16, 16], strides = [1, 1]} : vector<22x16xf32> to vector<16x16xf32>
      %210 = vector.broadcast %208 : f32 to vector<16x16xf32>
      %211 = arith.mulf %210, %209 : vector<16x16xf32>
      %212 = arith.addf %207, %211 : vector<16x16xf32>
      %c36 = arith.constant 36 : index
      %213 = memref.load %arg2[%c36] : memref<98xf32, #tpu.memory_space<smem>>
      %214 = vector.extract_strided_slice %187 {offsets = [5, 0], sizes = [16, 16], strides = [1, 1]} : vector<22x16xf32> to vector<16x16xf32>
      %215 = vector.broadcast %213 : f32 to vector<16x16xf32>
      %216 = arith.mulf %215, %214 : vector<16x16xf32>
      %217 = arith.addf %212, %216 : vector<16x16xf32>
      %c43 = arith.constant 43 : index
      %218 = memref.load %arg2[%c43] : memref<98xf32, #tpu.memory_space<smem>>
      %219 = vector.extract_strided_slice %187 {offsets = [6, 0], sizes = [16, 16], strides = [1, 1]} : vector<22x16xf32> to vector<16x16xf32>
      %220 = vector.broadcast %218 : f32 to vector<16x16xf32>
      %221 = arith.mulf %220, %219 : vector<16x16xf32>
      %222 = arith.addf %217, %221 : vector<16x16xf32>
      %223 = vector.extract_strided_slice %150 {offsets = [0, 2], sizes = [22, 16], strides = [1, 1]} : vector<22x22xf32> to vector<22x16xf32>
      %c2 = arith.constant 2 : index
      %224 = memref.load %arg2[%c2] : memref<98xf32, #tpu.memory_space<smem>>
      %225 = vector.extract_strided_slice %223 {offsets = [0, 0], sizes = [16, 16], strides = [1, 1]} : vector<22x16xf32> to vector<16x16xf32>
      %226 = vector.broadcast %224 : f32 to vector<16x16xf32>
      %227 = arith.mulf %226, %225 : vector<16x16xf32>
      %228 = arith.addf %222, %227 : vector<16x16xf32>
      %c9_157 = arith.constant 9 : index
      %229 = memref.load %arg2[%c9_157] : memref<98xf32, #tpu.memory_space<smem>>
      %230 = vector.extract_strided_slice %223 {offsets = [1, 0], sizes = [16, 16], strides = [1, 1]} : vector<22x16xf32> to vector<16x16xf32>
      %231 = vector.broadcast %229 : f32 to vector<16x16xf32>
      %232 = arith.mulf %231, %230 : vector<16x16xf32>
      %233 = arith.addf %228, %232 : vector<16x16xf32>
      %c16_158 = arith.constant 16 : index
      %234 = memref.load %arg2[%c16_158] : memref<98xf32, #tpu.memory_space<smem>>
      %235 = vector.extract_strided_slice %223 {offsets = [2, 0], sizes = [16, 16], strides = [1, 1]} : vector<22x16xf32> to vector<16x16xf32>
      %236 = vector.broadcast %234 : f32 to vector<16x16xf32>
      %237 = arith.mulf %236, %235 : vector<16x16xf32>
      %238 = arith.addf %233, %237 : vector<16x16xf32>
      %c23 = arith.constant 23 : index
      %239 = memref.load %arg2[%c23] : memref<98xf32, #tpu.memory_space<smem>>
      %240 = vector.extract_strided_slice %223 {offsets = [3, 0], sizes = [16, 16], strides = [1, 1]} : vector<22x16xf32> to vector<16x16xf32>
      %241 = vector.broadcast %239 : f32 to vector<16x16xf32>
      %242 = arith.mulf %241, %240 : vector<16x16xf32>
      %243 = arith.addf %238, %242 : vector<16x16xf32>
      %c30 = arith.constant 30 : index
      %244 = memref.load %arg2[%c30] : memref<98xf32, #tpu.memory_space<smem>>
      %245 = vector.extract_strided_slice %223 {offsets = [4, 0], sizes = [16, 16], strides = [1, 1]} : vector<22x16xf32> to vector<16x16xf32>
      %246 = vector.broadcast %244 : f32 to vector<16x16xf32>
      %247 = arith.mulf %246, %245 : vector<16x16xf32>
      %248 = arith.addf %243, %247 : vector<16x16xf32>
      %c37 = arith.constant 37 : index
      %249 = memref.load %arg2[%c37] : memref<98xf32, #tpu.memory_space<smem>>
      %250 = vector.extract_strided_slice %223 {offsets = [5, 0], sizes = [16, 16], strides = [1, 1]} : vector<22x16xf32> to vector<16x16xf32>
      %251 = vector.broadcast %249 : f32 to vector<16x16xf32>
      %252 = arith.mulf %251, %250 : vector<16x16xf32>
      %253 = arith.addf %248, %252 : vector<16x16xf32>
      %c44 = arith.constant 44 : index
      %254 = memref.load %arg2[%c44] : memref<98xf32, #tpu.memory_space<smem>>
      %255 = vector.extract_strided_slice %223 {offsets = [6, 0], sizes = [16, 16], strides = [1, 1]} : vector<22x16xf32> to vector<16x16xf32>
      %256 = vector.broadcast %254 : f32 to vector<16x16xf32>
      %257 = arith.mulf %256, %255 : vector<16x16xf32>
      %258 = arith.addf %253, %257 : vector<16x16xf32>
      %259 = vector.extract_strided_slice %150 {offsets = [0, 3], sizes = [22, 16], strides = [1, 1]} : vector<22x22xf32> to vector<22x16xf32>
      %c3_159 = arith.constant 3 : index
      %260 = memref.load %arg2[%c3_159] : memref<98xf32, #tpu.memory_space<smem>>
      %261 = vector.extract_strided_slice %259 {offsets = [0, 0], sizes = [16, 16], strides = [1, 1]} : vector<22x16xf32> to vector<16x16xf32>
      %262 = vector.broadcast %260 : f32 to vector<16x16xf32>
      %263 = arith.mulf %262, %261 : vector<16x16xf32>
      %264 = arith.addf %258, %263 : vector<16x16xf32>
      %c10_160 = arith.constant 10 : index
      %265 = memref.load %arg2[%c10_160] : memref<98xf32, #tpu.memory_space<smem>>
      %266 = vector.extract_strided_slice %259 {offsets = [1, 0], sizes = [16, 16], strides = [1, 1]} : vector<22x16xf32> to vector<16x16xf32>
      %267 = vector.broadcast %265 : f32 to vector<16x16xf32>
      %268 = arith.mulf %267, %266 : vector<16x16xf32>
      %269 = arith.addf %264, %268 : vector<16x16xf32>
      %c17_161 = arith.constant 17 : index
      %270 = memref.load %arg2[%c17_161] : memref<98xf32, #tpu.memory_space<smem>>
      %271 = vector.extract_strided_slice %259 {offsets = [2, 0], sizes = [16, 16], strides = [1, 1]} : vector<22x16xf32> to vector<16x16xf32>
      %272 = vector.broadcast %270 : f32 to vector<16x16xf32>
      %273 = arith.mulf %272, %271 : vector<16x16xf32>
      %274 = arith.addf %269, %273 : vector<16x16xf32>
      %c24 = arith.constant 24 : index
      %275 = memref.load %arg2[%c24] : memref<98xf32, #tpu.memory_space<smem>>
      %276 = vector.extract_strided_slice %259 {offsets = [3, 0], sizes = [16, 16], strides = [1, 1]} : vector<22x16xf32> to vector<16x16xf32>
      %277 = vector.broadcast %275 : f32 to vector<16x16xf32>
      %278 = arith.mulf %277, %276 : vector<16x16xf32>
      %279 = arith.addf %274, %278 : vector<16x16xf32>
      %c31 = arith.constant 31 : index
      %280 = memref.load %arg2[%c31] : memref<98xf32, #tpu.memory_space<smem>>
      %281 = vector.extract_strided_slice %259 {offsets = [4, 0], sizes = [16, 16], strides = [1, 1]} : vector<22x16xf32> to vector<16x16xf32>
      %282 = vector.broadcast %280 : f32 to vector<16x16xf32>
      %283 = arith.mulf %282, %281 : vector<16x16xf32>
      %284 = arith.addf %279, %283 : vector<16x16xf32>
      %c38 = arith.constant 38 : index
      %285 = memref.load %arg2[%c38] : memref<98xf32, #tpu.memory_space<smem>>
      %286 = vector.extract_strided_slice %259 {offsets = [5, 0], sizes = [16, 16], strides = [1, 1]} : vector<22x16xf32> to vector<16x16xf32>
      %287 = vector.broadcast %285 : f32 to vector<16x16xf32>
      %288 = arith.mulf %287, %286 : vector<16x16xf32>
      %289 = arith.addf %284, %288 : vector<16x16xf32>
      %c45 = arith.constant 45 : index
      %290 = memref.load %arg2[%c45] : memref<98xf32, #tpu.memory_space<smem>>
      %291 = vector.extract_strided_slice %259 {offsets = [6, 0], sizes = [16, 16], strides = [1, 1]} : vector<22x16xf32> to vector<16x16xf32>
      %292 = vector.broadcast %290 : f32 to vector<16x16xf32>
      %293 = arith.mulf %292, %291 : vector<16x16xf32>
      %294 = arith.addf %289, %293 : vector<16x16xf32>
      %295 = vector.extract_strided_slice %150 {offsets = [0, 4], sizes = [22, 16], strides = [1, 1]} : vector<22x22xf32> to vector<22x16xf32>
      %c4_162 = arith.constant 4 : index
      %296 = memref.load %arg2[%c4_162] : memref<98xf32, #tpu.memory_space<smem>>
      %297 = vector.extract_strided_slice %295 {offsets = [0, 0], sizes = [16, 16], strides = [1, 1]} : vector<22x16xf32> to vector<16x16xf32>
      %298 = vector.broadcast %296 : f32 to vector<16x16xf32>
      %299 = arith.mulf %298, %297 : vector<16x16xf32>
      %300 = arith.addf %294, %299 : vector<16x16xf32>
      %c11_163 = arith.constant 11 : index
      %301 = memref.load %arg2[%c11_163] : memref<98xf32, #tpu.memory_space<smem>>
      %302 = vector.extract_strided_slice %295 {offsets = [1, 0], sizes = [16, 16], strides = [1, 1]} : vector<22x16xf32> to vector<16x16xf32>
      %303 = vector.broadcast %301 : f32 to vector<16x16xf32>
      %304 = arith.mulf %303, %302 : vector<16x16xf32>
      %305 = arith.addf %300, %304 : vector<16x16xf32>
      %c18_164 = arith.constant 18 : index
      %306 = memref.load %arg2[%c18_164] : memref<98xf32, #tpu.memory_space<smem>>
      %307 = vector.extract_strided_slice %295 {offsets = [2, 0], sizes = [16, 16], strides = [1, 1]} : vector<22x16xf32> to vector<16x16xf32>
      %308 = vector.broadcast %306 : f32 to vector<16x16xf32>
      %309 = arith.mulf %308, %307 : vector<16x16xf32>
      %310 = arith.addf %305, %309 : vector<16x16xf32>
      %c25 = arith.constant 25 : index
      %311 = memref.load %arg2[%c25] : memref<98xf32, #tpu.memory_space<smem>>
      %312 = vector.extract_strided_slice %295 {offsets = [3, 0], sizes = [16, 16], strides = [1, 1]} : vector<22x16xf32> to vector<16x16xf32>
      %313 = vector.broadcast %311 : f32 to vector<16x16xf32>
      %314 = arith.mulf %313, %312 : vector<16x16xf32>
      %315 = arith.addf %310, %314 : vector<16x16xf32>
      %c32_165 = arith.constant 32 : index
      %316 = memref.load %arg2[%c32_165] : memref<98xf32, #tpu.memory_space<smem>>
      %317 = vector.extract_strided_slice %295 {offsets = [4, 0], sizes = [16, 16], strides = [1, 1]} : vector<22x16xf32> to vector<16x16xf32>
      %318 = vector.broadcast %316 : f32 to vector<16x16xf32>
      %319 = arith.mulf %318, %317 : vector<16x16xf32>
      %320 = arith.addf %315, %319 : vector<16x16xf32>
      %c39 = arith.constant 39 : index
      %321 = memref.load %arg2[%c39] : memref<98xf32, #tpu.memory_space<smem>>
      %322 = vector.extract_strided_slice %295 {offsets = [5, 0], sizes = [16, 16], strides = [1, 1]} : vector<22x16xf32> to vector<16x16xf32>
      %323 = vector.broadcast %321 : f32 to vector<16x16xf32>
      %324 = arith.mulf %323, %322 : vector<16x16xf32>
      %325 = arith.addf %320, %324 : vector<16x16xf32>
      %c46 = arith.constant 46 : index
      %326 = memref.load %arg2[%c46] : memref<98xf32, #tpu.memory_space<smem>>
      %327 = vector.extract_strided_slice %295 {offsets = [6, 0], sizes = [16, 16], strides = [1, 1]} : vector<22x16xf32> to vector<16x16xf32>
      %328 = vector.broadcast %326 : f32 to vector<16x16xf32>
      %329 = arith.mulf %328, %327 : vector<16x16xf32>
      %330 = arith.addf %325, %329 : vector<16x16xf32>
      %331 = vector.extract_strided_slice %150 {offsets = [0, 5], sizes = [22, 16], strides = [1, 1]} : vector<22x22xf32> to vector<22x16xf32>
      %c5_166 = arith.constant 5 : index
      %332 = memref.load %arg2[%c5_166] : memref<98xf32, #tpu.memory_space<smem>>
      %333 = vector.extract_strided_slice %331 {offsets = [0, 0], sizes = [16, 16], strides = [1, 1]} : vector<22x16xf32> to vector<16x16xf32>
      %334 = vector.broadcast %332 : f32 to vector<16x16xf32>
      %335 = arith.mulf %334, %333 : vector<16x16xf32>
      %336 = arith.addf %330, %335 : vector<16x16xf32>
      %c12_167 = arith.constant 12 : index
      %337 = memref.load %arg2[%c12_167] : memref<98xf32, #tpu.memory_space<smem>>
      %338 = vector.extract_strided_slice %331 {offsets = [1, 0], sizes = [16, 16], strides = [1, 1]} : vector<22x16xf32> to vector<16x16xf32>
      %339 = vector.broadcast %337 : f32 to vector<16x16xf32>
      %340 = arith.mulf %339, %338 : vector<16x16xf32>
      %341 = arith.addf %336, %340 : vector<16x16xf32>
      %c19 = arith.constant 19 : index
      %342 = memref.load %arg2[%c19] : memref<98xf32, #tpu.memory_space<smem>>
      %343 = vector.extract_strided_slice %331 {offsets = [2, 0], sizes = [16, 16], strides = [1, 1]} : vector<22x16xf32> to vector<16x16xf32>
      %344 = vector.broadcast %342 : f32 to vector<16x16xf32>
      %345 = arith.mulf %344, %343 : vector<16x16xf32>
      %346 = arith.addf %341, %345 : vector<16x16xf32>
      %c26 = arith.constant 26 : index
      %347 = memref.load %arg2[%c26] : memref<98xf32, #tpu.memory_space<smem>>
      %348 = vector.extract_strided_slice %331 {offsets = [3, 0], sizes = [16, 16], strides = [1, 1]} : vector<22x16xf32> to vector<16x16xf32>
      %349 = vector.broadcast %347 : f32 to vector<16x16xf32>
      %350 = arith.mulf %349, %348 : vector<16x16xf32>
      %351 = arith.addf %346, %350 : vector<16x16xf32>
      %c33 = arith.constant 33 : index
      %352 = memref.load %arg2[%c33] : memref<98xf32, #tpu.memory_space<smem>>
      %353 = vector.extract_strided_slice %331 {offsets = [4, 0], sizes = [16, 16], strides = [1, 1]} : vector<22x16xf32> to vector<16x16xf32>
      %354 = vector.broadcast %352 : f32 to vector<16x16xf32>
      %355 = arith.mulf %354, %353 : vector<16x16xf32>
      %356 = arith.addf %351, %355 : vector<16x16xf32>
      %c40 = arith.constant 40 : index
      %357 = memref.load %arg2[%c40] : memref<98xf32, #tpu.memory_space<smem>>
      %358 = vector.extract_strided_slice %331 {offsets = [5, 0], sizes = [16, 16], strides = [1, 1]} : vector<22x16xf32> to vector<16x16xf32>
      %359 = vector.broadcast %357 : f32 to vector<16x16xf32>
      %360 = arith.mulf %359, %358 : vector<16x16xf32>
      %361 = arith.addf %356, %360 : vector<16x16xf32>
      %c47 = arith.constant 47 : index
      %362 = memref.load %arg2[%c47] : memref<98xf32, #tpu.memory_space<smem>>
      %363 = vector.extract_strided_slice %331 {offsets = [6, 0], sizes = [16, 16], strides = [1, 1]} : vector<22x16xf32> to vector<16x16xf32>
      %364 = vector.broadcast %362 : f32 to vector<16x16xf32>
      %365 = arith.mulf %364, %363 : vector<16x16xf32>
      %366 = arith.addf %361, %365 : vector<16x16xf32>
      %367 = vector.extract_strided_slice %150 {offsets = [0, 6], sizes = [22, 16], strides = [1, 1]} : vector<22x22xf32> to vector<22x16xf32>
      %c6_168 = arith.constant 6 : index
      %368 = memref.load %arg2[%c6_168] : memref<98xf32, #tpu.memory_space<smem>>
      %369 = vector.extract_strided_slice %367 {offsets = [0, 0], sizes = [16, 16], strides = [1, 1]} : vector<22x16xf32> to vector<16x16xf32>
      %370 = vector.broadcast %368 : f32 to vector<16x16xf32>
      %371 = arith.mulf %370, %369 : vector<16x16xf32>
      %372 = arith.addf %366, %371 : vector<16x16xf32>
      %c13_169 = arith.constant 13 : index
      %373 = memref.load %arg2[%c13_169] : memref<98xf32, #tpu.memory_space<smem>>
      %374 = vector.extract_strided_slice %367 {offsets = [1, 0], sizes = [16, 16], strides = [1, 1]} : vector<22x16xf32> to vector<16x16xf32>
      %375 = vector.broadcast %373 : f32 to vector<16x16xf32>
      %376 = arith.mulf %375, %374 : vector<16x16xf32>
      %377 = arith.addf %372, %376 : vector<16x16xf32>
      %c20 = arith.constant 20 : index
      %378 = memref.load %arg2[%c20] : memref<98xf32, #tpu.memory_space<smem>>
      %379 = vector.extract_strided_slice %367 {offsets = [2, 0], sizes = [16, 16], strides = [1, 1]} : vector<22x16xf32> to vector<16x16xf32>
      %380 = vector.broadcast %378 : f32 to vector<16x16xf32>
      %381 = arith.mulf %380, %379 : vector<16x16xf32>
      %382 = arith.addf %377, %381 : vector<16x16xf32>
      %c27 = arith.constant 27 : index
      %383 = memref.load %arg2[%c27] : memref<98xf32, #tpu.memory_space<smem>>
      %384 = vector.extract_strided_slice %367 {offsets = [3, 0], sizes = [16, 16], strides = [1, 1]} : vector<22x16xf32> to vector<16x16xf32>
      %385 = vector.broadcast %383 : f32 to vector<16x16xf32>
      %386 = arith.mulf %385, %384 : vector<16x16xf32>
      %387 = arith.addf %382, %386 : vector<16x16xf32>
      %c34 = arith.constant 34 : index
      %388 = memref.load %arg2[%c34] : memref<98xf32, #tpu.memory_space<smem>>
      %389 = vector.extract_strided_slice %367 {offsets = [4, 0], sizes = [16, 16], strides = [1, 1]} : vector<22x16xf32> to vector<16x16xf32>
      %390 = vector.broadcast %388 : f32 to vector<16x16xf32>
      %391 = arith.mulf %390, %389 : vector<16x16xf32>
      %392 = arith.addf %387, %391 : vector<16x16xf32>
      %c41 = arith.constant 41 : index
      %393 = memref.load %arg2[%c41] : memref<98xf32, #tpu.memory_space<smem>>
      %394 = vector.extract_strided_slice %367 {offsets = [5, 0], sizes = [16, 16], strides = [1, 1]} : vector<22x16xf32> to vector<16x16xf32>
      %395 = vector.broadcast %393 : f32 to vector<16x16xf32>
      %396 = arith.mulf %395, %394 : vector<16x16xf32>
      %397 = arith.addf %392, %396 : vector<16x16xf32>
      %c48_170 = arith.constant 48 : index
      %398 = memref.load %arg2[%c48_170] : memref<98xf32, #tpu.memory_space<smem>>
      %399 = vector.extract_strided_slice %367 {offsets = [6, 0], sizes = [16, 16], strides = [1, 1]} : vector<22x16xf32> to vector<16x16xf32>
      %400 = vector.broadcast %398 : f32 to vector<16x16xf32>
      %401 = arith.mulf %400, %399 : vector<16x16xf32>
      %402 = arith.addf %397, %401 : vector<16x16xf32>
      %c1_171 = arith.constant 1 : index
      %c0_172 = arith.constant 0 : index
      %c0_173 = arith.constant 0 : index
      %403 = vector.load %arg7[%c1_171, %c0_172, %c0_173] : memref<2x22x22xf32, #tpu.memory_space<vmem>>, vector<1x22x22xf32>
      %404 = vector.shape_cast %403 : vector<1x22x22xf32> to vector<22x22xf32>
      %405 = vector.extract_strided_slice %404 {offsets = [0, 0], sizes = [22, 16], strides = [1, 1]} : vector<22x22xf32> to vector<22x16xf32>
      %c49 = arith.constant 49 : index
      %406 = memref.load %arg2[%c49] : memref<98xf32, #tpu.memory_space<smem>>
      %407 = vector.extract_strided_slice %405 {offsets = [0, 0], sizes = [16, 16], strides = [1, 1]} : vector<22x16xf32> to vector<16x16xf32>
      %408 = vector.broadcast %406 : f32 to vector<16x16xf32>
      %409 = arith.mulf %408, %407 : vector<16x16xf32>
      %410 = arith.addf %402, %409 : vector<16x16xf32>
      %c56 = arith.constant 56 : index
      %411 = memref.load %arg2[%c56] : memref<98xf32, #tpu.memory_space<smem>>
      %412 = vector.extract_strided_slice %405 {offsets = [1, 0], sizes = [16, 16], strides = [1, 1]} : vector<22x16xf32> to vector<16x16xf32>
      %413 = vector.broadcast %411 : f32 to vector<16x16xf32>
      %414 = arith.mulf %413, %412 : vector<16x16xf32>
      %415 = arith.addf %410, %414 : vector<16x16xf32>
      %c63 = arith.constant 63 : index
      %416 = memref.load %arg2[%c63] : memref<98xf32, #tpu.memory_space<smem>>
      %417 = vector.extract_strided_slice %405 {offsets = [2, 0], sizes = [16, 16], strides = [1, 1]} : vector<22x16xf32> to vector<16x16xf32>
      %418 = vector.broadcast %416 : f32 to vector<16x16xf32>
      %419 = arith.mulf %418, %417 : vector<16x16xf32>
      %420 = arith.addf %415, %419 : vector<16x16xf32>
      %c70 = arith.constant 70 : index
      %421 = memref.load %arg2[%c70] : memref<98xf32, #tpu.memory_space<smem>>
      %422 = vector.extract_strided_slice %405 {offsets = [3, 0], sizes = [16, 16], strides = [1, 1]} : vector<22x16xf32> to vector<16x16xf32>
      %423 = vector.broadcast %421 : f32 to vector<16x16xf32>
      %424 = arith.mulf %423, %422 : vector<16x16xf32>
      %425 = arith.addf %420, %424 : vector<16x16xf32>
      %c77 = arith.constant 77 : index
      %426 = memref.load %arg2[%c77] : memref<98xf32, #tpu.memory_space<smem>>
      %427 = vector.extract_strided_slice %405 {offsets = [4, 0], sizes = [16, 16], strides = [1, 1]} : vector<22x16xf32> to vector<16x16xf32>
      %428 = vector.broadcast %426 : f32 to vector<16x16xf32>
      %429 = arith.mulf %428, %427 : vector<16x16xf32>
      %430 = arith.addf %425, %429 : vector<16x16xf32>
      %c84 = arith.constant 84 : index
      %431 = memref.load %arg2[%c84] : memref<98xf32, #tpu.memory_space<smem>>
      %432 = vector.extract_strided_slice %405 {offsets = [5, 0], sizes = [16, 16], strides = [1, 1]} : vector<22x16xf32> to vector<16x16xf32>
      %433 = vector.broadcast %431 : f32 to vector<16x16xf32>
      %434 = arith.mulf %433, %432 : vector<16x16xf32>
      %435 = arith.addf %430, %434 : vector<16x16xf32>
      %c91 = arith.constant 91 : index
      %436 = memref.load %arg2[%c91] : memref<98xf32, #tpu.memory_space<smem>>
      %437 = vector.extract_strided_slice %405 {offsets = [6, 0], sizes = [16, 16], strides = [1, 1]} : vector<22x16xf32> to vector<16x16xf32>
      %438 = vector.broadcast %436 : f32 to vector<16x16xf32>
      %439 = arith.mulf %438, %437 : vector<16x16xf32>
      %440 = arith.addf %435, %439 : vector<16x16xf32>
      %441 = vector.extract_strided_slice %404 {offsets = [0, 1], sizes = [22, 16], strides = [1, 1]} : vector<22x22xf32> to vector<22x16xf32>
      %c50 = arith.constant 50 : index
      %442 = memref.load %arg2[%c50] : memref<98xf32, #tpu.memory_space<smem>>
      %443 = vector.extract_strided_slice %441 {offsets = [0, 0], sizes = [16, 16], strides = [1, 1]} : vector<22x16xf32> to vector<16x16xf32>
      %444 = vector.broadcast %442 : f32 to vector<16x16xf32>
      %445 = arith.mulf %444, %443 : vector<16x16xf32>
      %446 = arith.addf %440, %445 : vector<16x16xf32>
      %c57 = arith.constant 57 : index
      %447 = memref.load %arg2[%c57] : memref<98xf32, #tpu.memory_space<smem>>
      %448 = vector.extract_strided_slice %441 {offsets = [1, 0], sizes = [16, 16], strides = [1, 1]} : vector<22x16xf32> to vector<16x16xf32>
      %449 = vector.broadcast %447 : f32 to vector<16x16xf32>
      %450 = arith.mulf %449, %448 : vector<16x16xf32>
      %451 = arith.addf %446, %450 : vector<16x16xf32>
      %c64_174 = arith.constant 64 : index
      %452 = memref.load %arg2[%c64_174] : memref<98xf32, #tpu.memory_space<smem>>
      %453 = vector.extract_strided_slice %441 {offsets = [2, 0], sizes = [16, 16], strides = [1, 1]} : vector<22x16xf32> to vector<16x16xf32>
      %454 = vector.broadcast %452 : f32 to vector<16x16xf32>
      %455 = arith.mulf %454, %453 : vector<16x16xf32>
      %456 = arith.addf %451, %455 : vector<16x16xf32>
      %c71 = arith.constant 71 : index
      %457 = memref.load %arg2[%c71] : memref<98xf32, #tpu.memory_space<smem>>
      %458 = vector.extract_strided_slice %441 {offsets = [3, 0], sizes = [16, 16], strides = [1, 1]} : vector<22x16xf32> to vector<16x16xf32>
      %459 = vector.broadcast %457 : f32 to vector<16x16xf32>
      %460 = arith.mulf %459, %458 : vector<16x16xf32>
      %461 = arith.addf %456, %460 : vector<16x16xf32>
      %c78 = arith.constant 78 : index
      %462 = memref.load %arg2[%c78] : memref<98xf32, #tpu.memory_space<smem>>
      %463 = vector.extract_strided_slice %441 {offsets = [4, 0], sizes = [16, 16], strides = [1, 1]} : vector<22x16xf32> to vector<16x16xf32>
      %464 = vector.broadcast %462 : f32 to vector<16x16xf32>
      %465 = arith.mulf %464, %463 : vector<16x16xf32>
      %466 = arith.addf %461, %465 : vector<16x16xf32>
      %c85 = arith.constant 85 : index
      %467 = memref.load %arg2[%c85] : memref<98xf32, #tpu.memory_space<smem>>
      %468 = vector.extract_strided_slice %441 {offsets = [5, 0], sizes = [16, 16], strides = [1, 1]} : vector<22x16xf32> to vector<16x16xf32>
      %469 = vector.broadcast %467 : f32 to vector<16x16xf32>
      %470 = arith.mulf %469, %468 : vector<16x16xf32>
      %471 = arith.addf %466, %470 : vector<16x16xf32>
      %c92 = arith.constant 92 : index
      %472 = memref.load %arg2[%c92] : memref<98xf32, #tpu.memory_space<smem>>
      %473 = vector.extract_strided_slice %441 {offsets = [6, 0], sizes = [16, 16], strides = [1, 1]} : vector<22x16xf32> to vector<16x16xf32>
      %474 = vector.broadcast %472 : f32 to vector<16x16xf32>
      %475 = arith.mulf %474, %473 : vector<16x16xf32>
      %476 = arith.addf %471, %475 : vector<16x16xf32>
      %477 = vector.extract_strided_slice %404 {offsets = [0, 2], sizes = [22, 16], strides = [1, 1]} : vector<22x22xf32> to vector<22x16xf32>
      %c51 = arith.constant 51 : index
      %478 = memref.load %arg2[%c51] : memref<98xf32, #tpu.memory_space<smem>>
      %479 = vector.extract_strided_slice %477 {offsets = [0, 0], sizes = [16, 16], strides = [1, 1]} : vector<22x16xf32> to vector<16x16xf32>
      %480 = vector.broadcast %478 : f32 to vector<16x16xf32>
      %481 = arith.mulf %480, %479 : vector<16x16xf32>
      %482 = arith.addf %476, %481 : vector<16x16xf32>
      %c58 = arith.constant 58 : index
      %483 = memref.load %arg2[%c58] : memref<98xf32, #tpu.memory_space<smem>>
      %484 = vector.extract_strided_slice %477 {offsets = [1, 0], sizes = [16, 16], strides = [1, 1]} : vector<22x16xf32> to vector<16x16xf32>
      %485 = vector.broadcast %483 : f32 to vector<16x16xf32>
      %486 = arith.mulf %485, %484 : vector<16x16xf32>
      %487 = arith.addf %482, %486 : vector<16x16xf32>
      %c65 = arith.constant 65 : index
      %488 = memref.load %arg2[%c65] : memref<98xf32, #tpu.memory_space<smem>>
      %489 = vector.extract_strided_slice %477 {offsets = [2, 0], sizes = [16, 16], strides = [1, 1]} : vector<22x16xf32> to vector<16x16xf32>
      %490 = vector.broadcast %488 : f32 to vector<16x16xf32>
      %491 = arith.mulf %490, %489 : vector<16x16xf32>
      %492 = arith.addf %487, %491 : vector<16x16xf32>
      %c72 = arith.constant 72 : index
      %493 = memref.load %arg2[%c72] : memref<98xf32, #tpu.memory_space<smem>>
      %494 = vector.extract_strided_slice %477 {offsets = [3, 0], sizes = [16, 16], strides = [1, 1]} : vector<22x16xf32> to vector<16x16xf32>
      %495 = vector.broadcast %493 : f32 to vector<16x16xf32>
      %496 = arith.mulf %495, %494 : vector<16x16xf32>
      %497 = arith.addf %492, %496 : vector<16x16xf32>
      %c79 = arith.constant 79 : index
      %498 = memref.load %arg2[%c79] : memref<98xf32, #tpu.memory_space<smem>>
      %499 = vector.extract_strided_slice %477 {offsets = [4, 0], sizes = [16, 16], strides = [1, 1]} : vector<22x16xf32> to vector<16x16xf32>
      %500 = vector.broadcast %498 : f32 to vector<16x16xf32>
      %501 = arith.mulf %500, %499 : vector<16x16xf32>
      %502 = arith.addf %497, %501 : vector<16x16xf32>
      %c86 = arith.constant 86 : index
      %503 = memref.load %arg2[%c86] : memref<98xf32, #tpu.memory_space<smem>>
      %504 = vector.extract_strided_slice %477 {offsets = [5, 0], sizes = [16, 16], strides = [1, 1]} : vector<22x16xf32> to vector<16x16xf32>
      %505 = vector.broadcast %503 : f32 to vector<16x16xf32>
      %506 = arith.mulf %505, %504 : vector<16x16xf32>
      %507 = arith.addf %502, %506 : vector<16x16xf32>
      %c93 = arith.constant 93 : index
      %508 = memref.load %arg2[%c93] : memref<98xf32, #tpu.memory_space<smem>>
      %509 = vector.extract_strided_slice %477 {offsets = [6, 0], sizes = [16, 16], strides = [1, 1]} : vector<22x16xf32> to vector<16x16xf32>
      %510 = vector.broadcast %508 : f32 to vector<16x16xf32>
      %511 = arith.mulf %510, %509 : vector<16x16xf32>
      %512 = arith.addf %507, %511 : vector<16x16xf32>
      %513 = vector.extract_strided_slice %404 {offsets = [0, 3], sizes = [22, 16], strides = [1, 1]} : vector<22x22xf32> to vector<22x16xf32>
      %c52 = arith.constant 52 : index
      %514 = memref.load %arg2[%c52] : memref<98xf32, #tpu.memory_space<smem>>
      %515 = vector.extract_strided_slice %513 {offsets = [0, 0], sizes = [16, 16], strides = [1, 1]} : vector<22x16xf32> to vector<16x16xf32>
      %516 = vector.broadcast %514 : f32 to vector<16x16xf32>
      %517 = arith.mulf %516, %515 : vector<16x16xf32>
      %518 = arith.addf %512, %517 : vector<16x16xf32>
      %c59 = arith.constant 59 : index
      %519 = memref.load %arg2[%c59] : memref<98xf32, #tpu.memory_space<smem>>
      %520 = vector.extract_strided_slice %513 {offsets = [1, 0], sizes = [16, 16], strides = [1, 1]} : vector<22x16xf32> to vector<16x16xf32>
      %521 = vector.broadcast %519 : f32 to vector<16x16xf32>
      %522 = arith.mulf %521, %520 : vector<16x16xf32>
      %523 = arith.addf %518, %522 : vector<16x16xf32>
      %c66 = arith.constant 66 : index
      %524 = memref.load %arg2[%c66] : memref<98xf32, #tpu.memory_space<smem>>
      %525 = vector.extract_strided_slice %513 {offsets = [2, 0], sizes = [16, 16], strides = [1, 1]} : vector<22x16xf32> to vector<16x16xf32>
      %526 = vector.broadcast %524 : f32 to vector<16x16xf32>
      %527 = arith.mulf %526, %525 : vector<16x16xf32>
      %528 = arith.addf %523, %527 : vector<16x16xf32>
      %c73 = arith.constant 73 : index
      %529 = memref.load %arg2[%c73] : memref<98xf32, #tpu.memory_space<smem>>
      %530 = vector.extract_strided_slice %513 {offsets = [3, 0], sizes = [16, 16], strides = [1, 1]} : vector<22x16xf32> to vector<16x16xf32>
      %531 = vector.broadcast %529 : f32 to vector<16x16xf32>
      %532 = arith.mulf %531, %530 : vector<16x16xf32>
      %533 = arith.addf %528, %532 : vector<16x16xf32>
      %c80_175 = arith.constant 80 : index
      %534 = memref.load %arg2[%c80_175] : memref<98xf32, #tpu.memory_space<smem>>
      %535 = vector.extract_strided_slice %513 {offsets = [4, 0], sizes = [16, 16], strides = [1, 1]} : vector<22x16xf32> to vector<16x16xf32>
      %536 = vector.broadcast %534 : f32 to vector<16x16xf32>
      %537 = arith.mulf %536, %535 : vector<16x16xf32>
      %538 = arith.addf %533, %537 : vector<16x16xf32>
      %c87 = arith.constant 87 : index
      %539 = memref.load %arg2[%c87] : memref<98xf32, #tpu.memory_space<smem>>
      %540 = vector.extract_strided_slice %513 {offsets = [5, 0], sizes = [16, 16], strides = [1, 1]} : vector<22x16xf32> to vector<16x16xf32>
      %541 = vector.broadcast %539 : f32 to vector<16x16xf32>
      %542 = arith.mulf %541, %540 : vector<16x16xf32>
      %543 = arith.addf %538, %542 : vector<16x16xf32>
      %c94 = arith.constant 94 : index
      %544 = memref.load %arg2[%c94] : memref<98xf32, #tpu.memory_space<smem>>
      %545 = vector.extract_strided_slice %513 {offsets = [6, 0], sizes = [16, 16], strides = [1, 1]} : vector<22x16xf32> to vector<16x16xf32>
      %546 = vector.broadcast %544 : f32 to vector<16x16xf32>
      %547 = arith.mulf %546, %545 : vector<16x16xf32>
      %548 = arith.addf %543, %547 : vector<16x16xf32>
      %549 = vector.extract_strided_slice %404 {offsets = [0, 4], sizes = [22, 16], strides = [1, 1]} : vector<22x22xf32> to vector<22x16xf32>
      %c53 = arith.constant 53 : index
      %550 = memref.load %arg2[%c53] : memref<98xf32, #tpu.memory_space<smem>>
      %551 = vector.extract_strided_slice %549 {offsets = [0, 0], sizes = [16, 16], strides = [1, 1]} : vector<22x16xf32> to vector<16x16xf32>
      %552 = vector.broadcast %550 : f32 to vector<16x16xf32>
      %553 = arith.mulf %552, %551 : vector<16x16xf32>
      %554 = arith.addf %548, %553 : vector<16x16xf32>
      %c60 = arith.constant 60 : index
      %555 = memref.load %arg2[%c60] : memref<98xf32, #tpu.memory_space<smem>>
      %556 = vector.extract_strided_slice %549 {offsets = [1, 0], sizes = [16, 16], strides = [1, 1]} : vector<22x16xf32> to vector<16x16xf32>
      %557 = vector.broadcast %555 : f32 to vector<16x16xf32>
      %558 = arith.mulf %557, %556 : vector<16x16xf32>
      %559 = arith.addf %554, %558 : vector<16x16xf32>
      %c67 = arith.constant 67 : index
      %560 = memref.load %arg2[%c67] : memref<98xf32, #tpu.memory_space<smem>>
      %561 = vector.extract_strided_slice %549 {offsets = [2, 0], sizes = [16, 16], strides = [1, 1]} : vector<22x16xf32> to vector<16x16xf32>
      %562 = vector.broadcast %560 : f32 to vector<16x16xf32>
      %563 = arith.mulf %562, %561 : vector<16x16xf32>
      %564 = arith.addf %559, %563 : vector<16x16xf32>
      %c74 = arith.constant 74 : index
      %565 = memref.load %arg2[%c74] : memref<98xf32, #tpu.memory_space<smem>>
      %566 = vector.extract_strided_slice %549 {offsets = [3, 0], sizes = [16, 16], strides = [1, 1]} : vector<22x16xf32> to vector<16x16xf32>
      %567 = vector.broadcast %565 : f32 to vector<16x16xf32>
      %568 = arith.mulf %567, %566 : vector<16x16xf32>
      %569 = arith.addf %564, %568 : vector<16x16xf32>
      %c81 = arith.constant 81 : index
      %570 = memref.load %arg2[%c81] : memref<98xf32, #tpu.memory_space<smem>>
      %571 = vector.extract_strided_slice %549 {offsets = [4, 0], sizes = [16, 16], strides = [1, 1]} : vector<22x16xf32> to vector<16x16xf32>
      %572 = vector.broadcast %570 : f32 to vector<16x16xf32>
      %573 = arith.mulf %572, %571 : vector<16x16xf32>
      %574 = arith.addf %569, %573 : vector<16x16xf32>
      %c88 = arith.constant 88 : index
      %575 = memref.load %arg2[%c88] : memref<98xf32, #tpu.memory_space<smem>>
      %576 = vector.extract_strided_slice %549 {offsets = [5, 0], sizes = [16, 16], strides = [1, 1]} : vector<22x16xf32> to vector<16x16xf32>
      %577 = vector.broadcast %575 : f32 to vector<16x16xf32>
      %578 = arith.mulf %577, %576 : vector<16x16xf32>
      %579 = arith.addf %574, %578 : vector<16x16xf32>
      %c95 = arith.constant 95 : index
      %580 = memref.load %arg2[%c95] : memref<98xf32, #tpu.memory_space<smem>>
      %581 = vector.extract_strided_slice %549 {offsets = [6, 0], sizes = [16, 16], strides = [1, 1]} : vector<22x16xf32> to vector<16x16xf32>
      %582 = vector.broadcast %580 : f32 to vector<16x16xf32>
      %583 = arith.mulf %582, %581 : vector<16x16xf32>
      %584 = arith.addf %579, %583 : vector<16x16xf32>
      %585 = vector.extract_strided_slice %404 {offsets = [0, 5], sizes = [22, 16], strides = [1, 1]} : vector<22x22xf32> to vector<22x16xf32>
      %c54 = arith.constant 54 : index
      %586 = memref.load %arg2[%c54] : memref<98xf32, #tpu.memory_space<smem>>
      %587 = vector.extract_strided_slice %585 {offsets = [0, 0], sizes = [16, 16], strides = [1, 1]} : vector<22x16xf32> to vector<16x16xf32>
      %588 = vector.broadcast %586 : f32 to vector<16x16xf32>
      %589 = arith.mulf %588, %587 : vector<16x16xf32>
      %590 = arith.addf %584, %589 : vector<16x16xf32>
      %c61 = arith.constant 61 : index
      %591 = memref.load %arg2[%c61] : memref<98xf32, #tpu.memory_space<smem>>
      %592 = vector.extract_strided_slice %585 {offsets = [1, 0], sizes = [16, 16], strides = [1, 1]} : vector<22x16xf32> to vector<16x16xf32>
      %593 = vector.broadcast %591 : f32 to vector<16x16xf32>
      %594 = arith.mulf %593, %592 : vector<16x16xf32>
      %595 = arith.addf %590, %594 : vector<16x16xf32>
      %c68 = arith.constant 68 : index
      %596 = memref.load %arg2[%c68] : memref<98xf32, #tpu.memory_space<smem>>
      %597 = vector.extract_strided_slice %585 {offsets = [2, 0], sizes = [16, 16], strides = [1, 1]} : vector<22x16xf32> to vector<16x16xf32>
      %598 = vector.broadcast %596 : f32 to vector<16x16xf32>
      %599 = arith.mulf %598, %597 : vector<16x16xf32>
      %600 = arith.addf %595, %599 : vector<16x16xf32>
      %c75 = arith.constant 75 : index
      %601 = memref.load %arg2[%c75] : memref<98xf32, #tpu.memory_space<smem>>
      %602 = vector.extract_strided_slice %585 {offsets = [3, 0], sizes = [16, 16], strides = [1, 1]} : vector<22x16xf32> to vector<16x16xf32>
      %603 = vector.broadcast %601 : f32 to vector<16x16xf32>
      %604 = arith.mulf %603, %602 : vector<16x16xf32>
      %605 = arith.addf %600, %604 : vector<16x16xf32>
      %c82 = arith.constant 82 : index
      %606 = memref.load %arg2[%c82] : memref<98xf32, #tpu.memory_space<smem>>
      %607 = vector.extract_strided_slice %585 {offsets = [4, 0], sizes = [16, 16], strides = [1, 1]} : vector<22x16xf32> to vector<16x16xf32>
      %608 = vector.broadcast %606 : f32 to vector<16x16xf32>
      %609 = arith.mulf %608, %607 : vector<16x16xf32>
      %610 = arith.addf %605, %609 : vector<16x16xf32>
      %c89 = arith.constant 89 : index
      %611 = memref.load %arg2[%c89] : memref<98xf32, #tpu.memory_space<smem>>
      %612 = vector.extract_strided_slice %585 {offsets = [5, 0], sizes = [16, 16], strides = [1, 1]} : vector<22x16xf32> to vector<16x16xf32>
      %613 = vector.broadcast %611 : f32 to vector<16x16xf32>
      %614 = arith.mulf %613, %612 : vector<16x16xf32>
      %615 = arith.addf %610, %614 : vector<16x16xf32>
      %c96_176 = arith.constant 96 : index
      %616 = memref.load %arg2[%c96_176] : memref<98xf32, #tpu.memory_space<smem>>
      %617 = vector.extract_strided_slice %585 {offsets = [6, 0], sizes = [16, 16], strides = [1, 1]} : vector<22x16xf32> to vector<16x16xf32>
      %618 = vector.broadcast %616 : f32 to vector<16x16xf32>
      %619 = arith.mulf %618, %617 : vector<16x16xf32>
      %620 = arith.addf %615, %619 : vector<16x16xf32>
      %621 = vector.extract_strided_slice %404 {offsets = [0, 6], sizes = [22, 16], strides = [1, 1]} : vector<22x22xf32> to vector<22x16xf32>
      %c55 = arith.constant 55 : index
      %622 = memref.load %arg2[%c55] : memref<98xf32, #tpu.memory_space<smem>>
      %623 = vector.extract_strided_slice %621 {offsets = [0, 0], sizes = [16, 16], strides = [1, 1]} : vector<22x16xf32> to vector<16x16xf32>
      %624 = vector.broadcast %622 : f32 to vector<16x16xf32>
      %625 = arith.mulf %624, %623 : vector<16x16xf32>
      %626 = arith.addf %620, %625 : vector<16x16xf32>
      %c62 = arith.constant 62 : index
      %627 = memref.load %arg2[%c62] : memref<98xf32, #tpu.memory_space<smem>>
      %628 = vector.extract_strided_slice %621 {offsets = [1, 0], sizes = [16, 16], strides = [1, 1]} : vector<22x16xf32> to vector<16x16xf32>
      %629 = vector.broadcast %627 : f32 to vector<16x16xf32>
      %630 = arith.mulf %629, %628 : vector<16x16xf32>
      %631 = arith.addf %626, %630 : vector<16x16xf32>
      %c69 = arith.constant 69 : index
      %632 = memref.load %arg2[%c69] : memref<98xf32, #tpu.memory_space<smem>>
      %633 = vector.extract_strided_slice %621 {offsets = [2, 0], sizes = [16, 16], strides = [1, 1]} : vector<22x16xf32> to vector<16x16xf32>
      %634 = vector.broadcast %632 : f32 to vector<16x16xf32>
      %635 = arith.mulf %634, %633 : vector<16x16xf32>
      %636 = arith.addf %631, %635 : vector<16x16xf32>
      %c76 = arith.constant 76 : index
      %637 = memref.load %arg2[%c76] : memref<98xf32, #tpu.memory_space<smem>>
      %638 = vector.extract_strided_slice %621 {offsets = [3, 0], sizes = [16, 16], strides = [1, 1]} : vector<22x16xf32> to vector<16x16xf32>
      %639 = vector.broadcast %637 : f32 to vector<16x16xf32>
      %640 = arith.mulf %639, %638 : vector<16x16xf32>
      %641 = arith.addf %636, %640 : vector<16x16xf32>
      %c83 = arith.constant 83 : index
      %642 = memref.load %arg2[%c83] : memref<98xf32, #tpu.memory_space<smem>>
      %643 = vector.extract_strided_slice %621 {offsets = [4, 0], sizes = [16, 16], strides = [1, 1]} : vector<22x16xf32> to vector<16x16xf32>
      %644 = vector.broadcast %642 : f32 to vector<16x16xf32>
      %645 = arith.mulf %644, %643 : vector<16x16xf32>
      %646 = arith.addf %641, %645 : vector<16x16xf32>
      %c90 = arith.constant 90 : index
      %647 = memref.load %arg2[%c90] : memref<98xf32, #tpu.memory_space<smem>>
      %648 = vector.extract_strided_slice %621 {offsets = [5, 0], sizes = [16, 16], strides = [1, 1]} : vector<22x16xf32> to vector<16x16xf32>
      %649 = vector.broadcast %647 : f32 to vector<16x16xf32>
      %650 = arith.mulf %649, %648 : vector<16x16xf32>
      %651 = arith.addf %646, %650 : vector<16x16xf32>
      %c97 = arith.constant 97 : index
      %652 = memref.load %arg2[%c97] : memref<98xf32, #tpu.memory_space<smem>>
      %653 = vector.extract_strided_slice %621 {offsets = [6, 0], sizes = [16, 16], strides = [1, 1]} : vector<22x16xf32> to vector<16x16xf32>
      %654 = vector.broadcast %652 : f32 to vector<16x16xf32>
      %655 = arith.mulf %654, %653 : vector<16x16xf32>
      %656 = arith.addf %651, %655 : vector<16x16xf32>
      %657 = arith.negf %656 : vector<16x16xf32>
      %658 = math.exp %657 : vector<16x16xf32>
      %cst_177 = arith.constant 1.000000e+00 : f32
      %659 = vector.broadcast %cst_177 : f32 to vector<16x16xf32>
      %660 = arith.addf %659, %658 : vector<16x16xf32>
      %661 = arith.divf %659, %660 : vector<16x16xf32>
      %c0_178 = arith.constant 0 : index
      %c0_179 = arith.constant 0 : index
      %c0_180 = arith.constant 0 : index
      %c0_181 = arith.constant 0 : index
      %662 = vector.load %arg4[%c0_178, %c0_179, %c0_180, %c0_181] : memref<1x1x16x16xf32, #tpu.memory_space<vmem>>, vector<1x1x16x16xf32>
      %663 = vector.shape_cast %662 : vector<1x1x16x16xf32> to vector<16x16xf32>
      %664 = vector.shape_cast %661 : vector<16x16xf32> to vector<1x1x16x16xf32>
      tpu.vector_store %arg4[%c0_178, %c0_179, %c0_180, %c0_181], %664 {strides = array<i32>} : memref<1x1x16x16xf32, #tpu.memory_space<vmem>>, vector<1x1x16x16xf32>,
    } else {
    }
    return
  }
  func.func @transform_0(%arg0: i32, %arg1: i32) -> i32 {
    %c0_i32 = arith.constant 0 : i32
    %c0_i32_0 = arith.constant 0 : i32
    return %c0_i32 : i32
  }
  func.func @transform_1(%arg0: i32, %arg1: i32) -> (i32, i32, i32) {
    %c0_i32 = arith.constant 0 : i32
    %c0_i32_0 = arith.constant 0 : i32
    return %arg0, %arg1, %c0_i32 : i32, i32, i32
  }
  func.func @transform_2(%arg0: i32, %arg1: i32) -> (i32, i32, i32, i32) {
    %c0_i32 = arith.constant 0 : i32
    %c0_i32_0 = arith.constant 0 : i32
    %c0_i32_1 = arith.constant 0 : i32
    %c0_i32_2 = arith.constant 0 : i32
    return %arg0, %c0_i32, %c0_i32_0, %c0_i32_1 : i32, i32, i32, i32
  }
}

</mosaic_0001>

<llo_original>
// kernel: spatial_attention.1
$region0: #{spatial_attention.1}
  #allocation0 [shape = 'u32[]', space=smem, size = 0x4, offset = 0x4, fixed_abs, tag = 'smem constant byte address 0x4 - core index']
  #allocation1 [shape = 'u32[72,128]{1,0:T(1,128)}', space=vmem, size = 0x9000, scoped, tag = 'internal scratch']
  #allocation2 [shape = 'f32[1,256]{1,0:T(1,128)}', space=vmem, size = 0x400, scoped, tag = 'scratch operand']
  #allocation3 [shape = 'f32[1,256]{1,0:T(1,128)}', space=vmem, size = 0x400, scoped, tag = 'scratch operand']
  #allocation4 [shape = 'f32[2,22,22]{2,1,0:T(8,128)}', space=vmem, size = 0x6000, scoped, tag = 'scratch operand']
  %s0 = inlined_call_operand.vmem [shape: f32[98], index: 0, kind: input, shape index: {}]
  %s1 = inlined_call_operand.vmem [shape: f32[2,4,256], index: 1, kind: input, shape index: {}]
  %s2 = inlined_call_operand.hbm [shape: f32[2,1,16,16], index: 2, kind: output, shape index: {}]
  %s3 = sld [smem:[#allocation0]]
  $region53: #{spatial_attention.1} parent=0
    _
  %s5 = ssub.s32 1, %s3
  %s6 = scalar_select 0, %s5, %s3
  $region1: #{spatial_attention.1} parent=0
    #allocation5 [shape = 'u8[512]{0}', space=smem, size = 0x200, scoped, tag = 'input window, operand 0, single buffered']
    #allocation6 [shape = 's32[2]{0}', space=sflag, size = 0x8, scoped, tag = 'scoped memory for spatial_attention.1']
    #allocation7 [shape = 's32[2]{0}', space=sflag, size = 0x8, scoped, tag = 'scoped memory for spatial_attention.1']
    #allocation8 [shape = 'u8[16384]{0}', space=vmem, size = 0x4000, scoped, tag = 'output window, operand 0']
    %7 = vsyncpa [#allocation7], 0
    %8 = vsyncpa [#allocation6], 0
    %s9 = scalar_lea.sflag [#allocation6], 1
    %10 = vsyncpa %s9, 0
    loop: start=0, step=1, limit=4
    $region2: #{spatial_attention.1} parent=1 // loop_pre_header
      _
    $region3: #{spatial_attention.1} parent=1 // loop_header
      %s12 = sphi 0, %s16
      %p13 = scmp.ge.s32.totalorder %s12, 4
      %s19 = sphi 0, %s31
      %s20 = sphi 0, %s27
      %s21 = sphi 0, %s19
      %s22 = sphi 0, %s20
      %s23 = sphi 0, %s21
      %s24 = sphi 0, %s22
      %s32 = sphi 0, %s32
      %s34 = sphi 0, %s32
      %s35 = sphi 0, %s34
      %s49 = sphi 0, %s35
      %s57 = sphi 0, %s59
      %s60 = sphi 0, %s57
      %s61 = sphi 0, %s60
      %s77 = sphi 0, %s61
      %s83 = sphi 0, %s85
      %s86 = sphi 0, %s83
      %s87 = sphi 0, %s86
      %s103 = sphi 0, %s87
    $region4: #{spatial_attention.1} parent=1 // loop_header_branch
      %15 = sbr.rel (%p13) target = $region8
    $region5: #{spatial_attention.1} parent=1 // loop_body
      %s17 = ssub.s32 %s12, 1
      %s18 = ssub.s32 %s12, 2
      %s25 = sadd.s32 1, %s20
      %p26 = scmp.ge.s32.totalorder %s25, 1
      %s27 = scalar_select %p26, 0, %s25
      %s28 = sadd.s32 1, %s19
      %s29 = scalar_select %p26, %s28, %s19
      %p30 = scmp.ge.s32.totalorder %s29, 2
      %s31 = scalar_select %p30, 0, %s29
      %s33 = sadd.s32 %s32, 1
      %p36 = scmp.eq.s32.totalorder %s12, 1
      %p37 = scmp.ne.s32.totalorder %s32, %s34
      %p38 = scmp.eq.s32.totalorder %s12, 0
      %p39 = por %p37, %p38
      %p40 = scmp.ne.s32.totalorder %s32, %s34
      %p41 = scmp.eq.s32.totalorder %s17, 1
      %p42 = por %p40, %p41
      %p43 = scmp.ne.s32.totalorder %s34, %s35
      %p44 = scmp.eq.s32.totalorder %s17, 0
      %p45 = por %p43, %p44
      %p46 = scmp.ne.s32.totalorder %s34, %s35
      %p47 = scmp.eq.s32.totalorder %s18, 1
      %p48 = por %p46, %p47
      %p50 = scmp.ne.s32.totalorder %s35, %s49
      %p51 = scmp.eq.s32.totalorder %s18, 0
      %p52 = por %p50, %p51
      %s53 = ssub.s32 %s19, %s31
      %s54 = ssub.s32 %s20, %s27
      %s55 = sor.u32 %s53, %s54
      %p56 = scmp.eq.s32.totalorder %s55, 0
      %s58 = sadd.s32 %s57, 1
      %s59 = scalar_select %p56, %s57, %s58
      %p62 = pneg %p56
      %p63 = scmp.eq.s32.totalorder %s12, 1
      %p64 = por %p62, %p63
      %p65 = scmp.ne.s32.totalorder %s57, %s60
      %p66 = scmp.eq.s32.totalorder %s12, 0
      %p67 = por %p65, %p66
      %p68 = scmp.ne.s32.totalorder %s57, %s60
      %p69 = scmp.eq.s32.totalorder %s17, 1
      %p70 = por %p68, %p69
      %p71 = scmp.ne.s32.totalorder %s60, %s61
      %p72 = scmp.eq.s32.totalorder %s17, 0
      %p73 = por %p71, %p72
      %p74 = scmp.ne.s32.totalorder %s60, %s61
      %p75 = scmp.eq.s32.totalorder %s18, 1
      %p76 = por %p74, %p75
      %p78 = scmp.ne.s32.totalorder %s61, %s77
      %p79 = scmp.eq.s32.totalorder %s18, 0
      %p80 = por %p78, %p79
      %s81 = ssub.s32 %s19, %s31
      %p82 = scmp.eq.s32.totalorder %s81, 0
      %s84 = sadd.s32 %s83, 1
      %s85 = scalar_select %p82, %s83, %s84
      %p88 = pneg %p82
      %p89 = scmp.eq.s32.totalorder %s12, 1
      %p90 = por %p88, %p89
      %p91 = scmp.ne.s32.totalorder %s83, %s86
      %p92 = scmp.eq.s32.totalorder %s12, 0
      %p93 = por %p91, %p92
      %p94 = scmp.ne.s32.totalorder %s83, %s86
      %p95 = scmp.eq.s32.totalorder %s17, 1
      %p96 = por %p94, %p95
      %p97 = scmp.ne.s32.totalorder %s86, %s87
      %p98 = scmp.eq.s32.totalorder %s17, 0
      %p99 = por %p97, %p98
      %p100 = scmp.ne.s32.totalorder %s86, %s87
      %p101 = scmp.eq.s32.totalorder %s18, 1
      %p102 = por %p100, %p101
      %p104 = scmp.ne.s32.totalorder %s87, %s103
      %p105 = scmp.eq.s32.totalorder %s18, 0
      %p106 = por %p104, %p105
      %p107 = scmp.le.s32.totalorder 1, %s12
      %p108 = scmp.lt.s32.totalorder %s12, 3
      %p109 = pnand %p107, %p108
      %p110 = pneg %p109
      // Predicated region
      $region9: #{spatial_attention.1} parent=5 // pred_check
        _
      $region10: #{spatial_attention.1} parent=5 // pred_check_branch
        %112 = sbr.rel (%p109) target = $region12
      $region11: #{spatial_attention.1} parent=5 // pred_region
        %s113 = ssub.s32 %s12, 1
        // Predicated region
        $region13: #{spatial_attention.1} parent=11 // pred_check
          %p114 = pneg %p45
        $region14: #{spatial_attention.1} parent=11 // pred_check_branch
          %116 = sbr.rel (%p114) target = $region16
        $region15: #{spatial_attention.1} parent=11 // pred_region
          %118 = vsyncadd [#allocation7], 0
          %s120 = sshll.u32 %s0, 4
          %s121 = int_to_ptr.vmem [resolvable:$true] %s120
          %123 = dma.vmem_to_smem %s121, 16, [#allocation5], [#allocation7]
        $region16: #{spatial_attention.1} parent=11 // pred_fallthru
          _
      $region12: #{spatial_attention.1} parent=5 // pred_fallthru
        _
      %p124 = scmp.lt.s32.totalorder %s12, 2
      // Predicated region
      $region17: #{spatial_attention.1} parent=5 // pred_check
        %p125 = pneg %p124
      $region18: #{spatial_attention.1} parent=5 // pred_check_branch
        %127 = sbr.rel (%p125) target = $region20
      $region19: #{spatial_attention.1} parent=5 // pred_region
        // Predicated region
        $region21: #{spatial_attention.1} parent=19 // pred_check
          %p128 = pneg %p67
        $region22: #{spatial_attention.1} parent=19 // pred_check_branch
          %130 = sbr.rel (%p128) target = $region24
        $region23: #{spatial_attention.1} parent=19 // pred_region
          %p131 = scmp.lt.s32.totalorder %s19, 1
          %s132 = scalar_select %p131, %s19, 1
          %p133 = scmp.lt.s32.totalorder %s20, 0
          %s134 = scalar_select %p133, %s20, 0
          %s135 = smul.addr %s134, 2
          %s136 = smul.addr %s132, 2
          %s137 = sadd.s32 %s135, %s136
          %s138 = smul.addr %s137, 4
          %s139 = scalar_lea.vmem %s1, %s138
        $region24: #{spatial_attention.1} parent=19 // pred_fallthru
          _
      $region20: #{spatial_attention.1} parent=5 // pred_fallthru
        _
      %p140 = scmp.le.s32.totalorder 1, %s12
      %p141 = scmp.lt.s32.totalorder %s12, 3
      %p142 = pnand %p140, %p141
      %p143 = pneg %p142
      // Predicated region
      $region25: #{spatial_attention.1} parent=5 // pred_check
        _
      $region26: #{spatial_attention.1} parent=5 // pred_check_branch
        %145 = sbr.rel (%p142) target = $region28
      $region27: #{spatial_attention.1} parent=5 // pred_region
        %s146 = ssub.s32 %s12, 1
        // Predicated region
        $region29: #{spatial_attention.1} parent=27 // pred_check
          %p147 = pneg %p45
        $region30: #{spatial_attention.1} parent=27 // pred_check_branch
          %149 = sbr.rel (%p147) target = $region32
        $region31: #{spatial_attention.1} parent=27 // pred_region
          %151 = dma.done [#allocation7], 16
        $region32: #{spatial_attention.1} parent=27 // pred_fallthru
          _
        %152 = sfence
        %p153 = pneg %p45
        %p154 = pneg %p42
        %p155 = scmp.lt.s32.totalorder %s21, 1
        %s156 = scalar_select %p155, %s21, 1
        %p157 = scmp.lt.s32.totalorder %s22, 0
        %s158 = scalar_select %p157, %s22, 0
        %s159 = smul.addr %s158, 2
        %s160 = smul.addr %s156, 2
        %s161 = sadd.s32 %s159, %s160
        %s162 = smul.addr %s161, 4
        %s163 = scalar_lea.vmem %s1, %s162
        %p164 = pneg %p73
        %p165 = pneg %p70
        %p166 = pneg %p99
        %p167 = pneg %p96
        %s168 = sand.u32 %s86, 1
        %s169 = scalar_lea.sflag [#allocation6], %s168
        %s170 = sand.u32 %s86, 1
        %s171 = smul.addr %s170, 16
        %s172 = scalar_lea.vmem [#allocation8], %s171
        %p173 = scmp.lt.s32.totalorder %s21, 1
        %s174 = scalar_select %p173, %s21, 1
        %p175 = scmp.lt.s32.totalorder %s22, 0
        %s176 = scalar_select %p175, %s22, 0
        %s177 = smul.addr %s176, 2
        %s178 = smul.addr %s174, 2
        %s179 = sadd.s32 %s177, %s178
        %s180 = smul.addr %s179, 4
        %s181 = scalar_lea.vmem %s1, %s180
        %p182 = scmp.eq.s32.totalorder %s22, 0
        // Predicated region
        $region33: #{spatial_attention.1} parent=27 // pred_check
          %p183 = pneg %p182
        $region34: #{spatial_attention.1} parent=27 // pred_check_branch
          %185 = sbr.rel (%p183) target = $region36
        $region35: #{spatial_attention.1} parent=27 // pred_region
          %v186 = vlaneseq
          %vm187 = vcmp.ge.s32.totalorder %v186, 0
          %vm188 = vcmp.lt.s32.totalorder %v186, 256
          %vm189 = vmand %vm187, %vm188
          %190 = vst.msk [vmem:[#allocation2] sm:$0x3] %vm189, 0.0
          %191 = vst.msk [vmem:[#allocation3] sm:$0x3] %vm189, -inf
        $region36: #{spatial_attention.1} parent=27 // pred_fallthru
          _
        %v192 = vld [vmem:[%s181] sm:$0xff]
        %v193 = vld [vmem:[#allocation2] sm:$0x3]
        %195 = vst [vmem:[#allocation1] ss:$2 sm:$0xff] %v192
        %v196 = vld.sshfl [vmem:[#allocation1] sm:$0xff pattern:$0x75316420]
        %v197 = vld.sshfl [vmem:[#allocation1 + $0x8] sm:$0xff pattern:$0x75316420]
        %vm200 = vcmask 1043456
        %v201 = vsel %vm200, %v196, 0.0
        %v202 = vrot.slane %v201, 4
        %v203 = vadd.f32 %v201, %v202
        %v204 = vrot.slane %v203, 2
        %v205 = vadd.f32 %v203, %v204
        %v206 = vrot.slane %v205, 1
        %v207 = vadd.f32 %v205, %v206
        %v208 = vsel %vm200, %v197, 0.0
        %v209 = vrot.slane %v208, 4
        %v210 = vadd.f32 %v208, %v209
        %v211 = vrot.slane %v210, 2
        %v212 = vadd.f32 %v210, %v211
        %v213 = vrot.slane %v212, 1
        %v214 = vadd.f32 %v212, %v213
        %v217 = vrot.slane %v214, 7
        %vm218 = vcmask 1040384
        %v219 = vsel %vm218, %v207, %v217
        %v221 = vadd.f32 %v193, %v219
        %v222 = vlaneseq
        %vm223 = vcmp.ge.s32.totalorder %v222, 0
        %vm224 = vcmp.lt.s32.totalorder %v222, 256
        %vm225 = vmand %vm223, %vm224
        %226 = vst.msk [vmem:[#allocation2] sm:$0x3] %vm225, %v221
        %v227 = vld [vmem:[#allocation3] sm:$0x3]
        %228 = vst [vmem:[#allocation1] ss:$2 sm:$0xff] %v192
        %v229 = vld.sshfl [vmem:[#allocation1] sm:$0xff pattern:$0x75316420]
        %v230 = vld.sshfl [vmem:[#allocation1 + $0x8] sm:$0xff pattern:$0x75316420]
        %v233 = vsel %vm200, %v229, -inf
        %v234 = vrot.slane %v233, 4
        %v235 = vmax.f32 %v233, %v234
        %v236 = vrot.slane %v235, 2
        %v237 = vmax.f32 %v235, %v236
        %v238 = vrot.slane %v237, 1
        %v239 = vmax.f32 %v237, %v238
        %v240 = vsel %vm200, %v230, -inf
        %v241 = vrot.slane %v240, 4
        %v242 = vmax.f32 %v240, %v241
        %v243 = vrot.slane %v242, 2
        %v244 = vmax.f32 %v242, %v243
        %v245 = vrot.slane %v244, 1
        %v246 = vmax.f32 %v244, %v245
        %v249 = vrot.slane %v246, 7
        %v250 = vsel %vm218, %v239, %v249
        %v252 = vmax.f32 %v227, %v250
        %253 = vst.msk [vmem:[#allocation3] sm:$0x3] %vm225, %v252
        // Predicated region
        $region37: #{spatial_attention.1} parent=27 // pred_check
          %p254 = pneg %p182
        $region38: #{spatial_attention.1} parent=27 // pred_check_branch
          %256 = sbr.rel (%p254) target = $region40
        $region39: #{spatial_attention.1} parent=27 // pred_region
          %vm257 = vcmask 179200
          %258 = vst.msk [vmem:[#allocation4] sm:$0xff] %vm257, 0.0
          %259 = vst.msk [vmem:[#allocation4 + $0x8] sm:$0xff] %vm257, 0.0
          %vm260 = vcmask 177152
          %261 = vst.msk [vmem:[#allocation4 + $0x10] sm:$0x3f] %vm260, 0.0
          %262 = vst.msk [vmem:[#allocation4 + $0x18] sm:$0xff] %vm257, 0.0
          %263 = vst.msk [vmem:[#allocation4 + $0x20] sm:$0xff] %vm257, 0.0
          %264 = vst.msk [vmem:[#allocation4 + $0x28] sm:$0x3f] %vm260, 0.0
          %v265 = vld [vmem:[#allocation2] sm:$0x1]
          %v266 = vld [vmem:[#allocation3] sm:$0x1]
          %v268 = vperm.slane %v265, 0
          %269 = vrot.lane.b32.xlu0 %v268, 3
          %v270 = vpop.permute.xlu0 %269
          %vm272 = vcmask 147480
          %273 = vst.msk [vmem:[#allocation4 + $0x3] sm:$0x1] %vm272, %v270
          %v275 = vperm.slane %v266, 0
          %276 = vrot.lane.b32.xlu0 %v275, 3
          %v277 = vpop.permute.xlu0 %276
          %s279 = scalar_lea.vmem [#allocation4], 24
          %280 = vst.msk [vmem:[%s279 + $0x3] sm:$0x1] %vm272, %v277
          %v281 = vld [vmem:[#allocation2] sm:$0x1]
          %v282 = vld [vmem:[#allocation3] sm:$0x1]
          %v284 = vperm.slane %v281, 0
          %285 = vrot.lane.b32.xlu0 %v284, 115
          %v286 = vpop.permute.xlu0 %285
          %288 = vst.msk [vmem:[#allocation4 + $0x4] sm:$0x1] %vm272, %v286
          %v290 = vperm.slane %v282, 0
          %291 = vrot.lane.b32.xlu0 %v290, 115
          %v292 = vpop.permute.xlu0 %291
          %294 = vst.msk [vmem:[%s279 + $0x4] sm:$0x1] %vm272, %v292
          %v295 = vld [vmem:[#allocation2] sm:$0x1]
          %v296 = vld [vmem:[#allocation3] sm:$0x1]
          %v298 = vperm.slane %v295, 0
          %299 = vrot.lane.b32.xlu0 %v298, 99
          %v300 = vpop.permute.xlu0 %299
          %302 = vst.msk [vmem:[#allocation4 + $0x5] sm:$0x1] %vm272, %v300
          %v304 = vperm.slane %v296, 0
          %305 = vrot.lane.b32.xlu0 %v304, 99
          %v306 = vpop.permute.xlu0 %305
          %308 = vst.msk [vmem:[%s279 + $0x5] sm:$0x1] %vm272, %v306
          %v309 = vld [vmem:[#allocation2] sm:$0x1]
          %v310 = vld [vmem:[#allocation3] sm:$0x1]
          %v312 = vperm.slane %v309, 0
          %313 = vrot.lane.b32.xlu0 %v312, 83
          %v314 = vpop.permute.xlu0 %313
          %316 = vst.msk [vmem:[#allocation4 + $0x6] sm:$0x1] %vm272, %v314
          %v318 = vperm.slane %v310, 0
          %319 = vrot.lane.b32.xlu0 %v318, 83
          %v320 = vpop.permute.xlu0 %319
          %322 = vst.msk [vmem:[%s279 + $0x6] sm:$0x1] %vm272, %v320
          %v323 = vld [vmem:[#allocation2] sm:$0x1]
          %v324 = vld [vmem:[#allocation3] sm:$0x1]
          %v326 = vperm.slane %v323, 0
          %327 = vrot.lane.b32.xlu0 %v326, 67
          %v328 = vpop.permute.xlu0 %327
          %330 = vst.msk [vmem:[#allocation4 + $0x7] sm:$0x1] %vm272, %v328
          %v332 = vperm.slane %v324, 0
          %333 = vrot.lane.b32.xlu0 %v332, 67
          %v334 = vpop.permute.xlu0 %333
          %336 = vst.msk [vmem:[%s279 + $0x7] sm:$0x1] %vm272, %v334
          %v337 = vld [vmem:[#allocation2] sm:$0x1]
          %v338 = vld [vmem:[#allocation3] sm:$0x1]
          %v340 = vperm.slane %v337, 0
          %341 = vrot.lane.b32.xlu0 %v340, 51
          %v342 = vpop.permute.xlu0 %341
          %344 = vst.msk [vmem:[#allocation4 + $0x8] sm:$0x1] %vm272, %v342
          %v346 = vperm.slane %v338, 0
          %347 = vrot.lane.b32.xlu0 %v346, 51
          %v348 = vpop.permute.xlu0 %347
          %350 = vst.msk [vmem:[%s279 + $0x8] sm:$0x1] %vm272, %v348
          %v351 = vld [vmem:[#allocation2] sm:$0x1]
          %v352 = vld [vmem:[#allocation3] sm:$0x1]
          %v354 = vperm.slane %v351, 0
          %355 = vrot.lane.b32.xlu0 %v354, 35
          %v356 = vpop.permute.xlu0 %355
          %358 = vst.msk [vmem:[#allocation4 + $0x9] sm:$0x1] %vm272, %v356
          %v360 = vperm.slane %v352, 0
          %361 = vrot.lane.b32.xlu0 %v360, 35
          %v362 = vpop.permute.xlu0 %361
          %364 = vst.msk [vmem:[%s279 + $0x9] sm:$0x1] %vm272, %v362
          %v365 = vld [vmem:[#allocation2] sm:$0x1]
          %v366 = vld [vmem:[#allocation3] sm:$0x1]
          %v368 = vperm.slane %v365, 0
          %369 = vrot.lane.b32.xlu0 %v368, 19
          %v370 = vpop.permute.xlu0 %369
          %372 = vst.msk [vmem:[#allocation4 + $0xa] sm:$0x1] %vm272, %v370
          %v374 = vperm.slane %v366, 0
          %375 = vrot.lane.b32.xlu0 %v374, 19
          %v376 = vpop.permute.xlu0 %375
          %378 = vst.msk [vmem:[%s279 + $0xa] sm:$0x1] %vm272, %v376
          %v379 = vld [vmem:[#allocation2 + $0x1] sm:$0x1]
          %v380 = vld [vmem:[#allocation3 + $0x1] sm:$0x1]
          %v382 = vperm.slane %v379, 0
          %383 = vrot.lane.b32.xlu0 %v382, 3
          %v384 = vpop.permute.xlu0 %383
          %386 = vst.msk [vmem:[#allocation4 + $0xb] sm:$0x1] %vm272, %v384
          %v388 = vperm.slane %v380, 0
          %389 = vrot.lane.b32.xlu0 %v388, 3
          %v390 = vpop.permute.xlu0 %389
          %392 = vst.msk [vmem:[%s279 + $0xb] sm:$0x1] %vm272, %v390
          %v393 = vld [vmem:[#allocation2 + $0x1] sm:$0x1]
          %v394 = vld [vmem:[#allocation3 + $0x1] sm:$0x1]
          %v396 = vperm.slane %v393, 0
          %397 = vrot.lane.b32.xlu0 %v396, 115
          %v398 = vpop.permute.xlu0 %397
          %400 = vst.msk [vmem:[#allocation4 + $0xc] sm:$0x1] %vm272, %v398
          %v402 = vperm.slane %v394, 0
          %403 = vrot.lane.b32.xlu0 %v402, 115
          %v404 = vpop.permute.xlu0 %403
          %406 = vst.msk [vmem:[%s279 + $0xc] sm:$0x1] %vm272, %v404
          %v407 = vld [vmem:[#allocation2 + $0x1] sm:$0x1]
          %v408 = vld [vmem:[#allocation3 + $0x1] sm:$0x1]
          %v410 = vperm.slane %v407, 0
          %411 = vrot.lane.b32.xlu0 %v410, 99
          %v412 = vpop.permute.xlu0 %411
          %414 = vst.msk [vmem:[#allocation4 + $0xd] sm:$0x1] %vm272, %v412
          %v416 = vperm.slane %v408, 0
          %417 = vrot.lane.b32.xlu0 %v416, 99
          %v418 = vpop.permute.xlu0 %417
          %420 = vst.msk [vmem:[%s279 + $0xd] sm:$0x1] %vm272, %v418
          %v421 = vld [vmem:[#allocation2 + $0x1] sm:$0x1]
          %v422 = vld [vmem:[#allocation3 + $0x1] sm:$0x1]
          %v424 = vperm.slane %v421, 0
          %425 = vrot.lane.b32.xlu0 %v424, 83
          %v426 = vpop.permute.xlu0 %425
          %428 = vst.msk [vmem:[#allocation4 + $0xe] sm:$0x1] %vm272, %v426
          %v430 = vperm.slane %v422, 0
          %431 = vrot.lane.b32.xlu0 %v430, 83
          %v432 = vpop.permute.xlu0 %431
          %434 = vst.msk [vmem:[%s279 + $0xe] sm:$0x1] %vm272, %v432
          %v435 = vld [vmem:[#allocation2 + $0x1] sm:$0x1]
          %v436 = vld [vmem:[#allocation3 + $0x1] sm:$0x1]
          %v438 = vperm.slane %v435, 0
          %439 = vrot.lane.b32.xlu0 %v438, 67
          %v440 = vpop.permute.xlu0 %439
          %442 = vst.msk [vmem:[#allocation4 + $0xf] sm:$0x1] %vm272, %v440
          %v444 = vperm.slane %v436, 0
          %445 = vrot.lane.b32.xlu0 %v444, 67
          %v446 = vpop.permute.xlu0 %445
          %448 = vst.msk [vmem:[%s279 + $0xf] sm:$0x1] %vm272, %v446
          %v449 = vld [vmem:[#allocation2 + $0x1] sm:$0x1]
          %v450 = vld [vmem:[#allocation3 + $0x1] sm:$0x1]
          %v452 = vperm.slane %v449, 0
          %453 = vrot.lane.b32.xlu0 %v452, 51
          %v454 = vpop.permute.xlu0 %453
          %456 = vst.msk [vmem:[#allocation4 + $0x10] sm:$0x1] %vm272, %v454
          %v458 = vperm.slane %v450, 0
          %459 = vrot.lane.b32.xlu0 %v458, 51
          %v460 = vpop.permute.xlu0 %459
          %462 = vst.msk [vmem:[%s279 + $0x10] sm:$0x1] %vm272, %v460
          %v463 = vld [vmem:[#allocation2 + $0x1] sm:$0x1]
          %v464 = vld [vmem:[#allocation3 + $0x1] sm:$0x1]
          %v466 = vperm.slane %v463, 0
          %467 = vrot.lane.b32.xlu0 %v466, 35
          %v468 = vpop.permute.xlu0 %467
          %470 = vst.msk [vmem:[#allocation4 + $0x11] sm:$0x1] %vm272, %v468
          %v472 = vperm.slane %v464, 0
          %473 = vrot.lane.b32.xlu0 %v472, 35
          %v474 = vpop.permute.xlu0 %473
          %476 = vst.msk [vmem:[%s279 + $0x11] sm:$0x1] %vm272, %v474
          %v477 = vld [vmem:[#allocation2 + $0x1] sm:$0x1]
          %v478 = vld [vmem:[#allocation3 + $0x1] sm:$0x1]
          %v480 = vperm.slane %v477, 0
          %481 = vrot.lane.b32.xlu0 %v480, 19
          %v482 = vpop.permute.xlu0 %481
          %484 = vst.msk [vmem:[#allocation4 + $0x12] sm:$0x1] %vm272, %v482
          %v486 = vperm.slane %v478, 0
          %487 = vrot.lane.b32.xlu0 %v486, 19
          %v488 = vpop.permute.xlu0 %487
          %490 = vst.msk [vmem:[%s279 + $0x12] sm:$0x1] %vm272, %v488
          %v491 = vld [vmem:[#allocation4] sm:$0xff]
          %v492 = vld [vmem:[#allocation4 + $0x8] sm:$0xff]
          %v493 = vld [vmem:[#allocation4 + $0x10] sm:$0x3f]
          %s494 = sld [smem:[#allocation5]]
          %v495 = vstv %s494
          %v496 = vmul.f32 %v495, %v491
          %v497 = vmul.f32 %v495, %v492
          %v498 = vadd.f32 %v496, 0.0
          %v499 = vadd.f32 %v497, 0.0
          %s500 = sld [smem:[#allocation5 + $0x7]]
          %v501 = vstv %s500
          %v502 = vmul.f32 %v501, %v491
          %v503 = vmul.f32 %v501, %v492
          %v504 = vmul.f32 %v501, %v493
          %vm508 = vcmask 1046528
          %v509 = vrot.slane %v502, 1
          %v510 = vrot.slane %v503, 1
          %v511 = vsel %vm508, %v509, %v510
          %v512 = vrot.slane %v504, 1
          %v513 = vsel %vm508, %v510, %v512
          %v516 = vadd.f32 %v498, %v511
          %v517 = vadd.f32 %v499, %v513
          %s518 = sld [smem:[#allocation5 + $0xe]]
          %v519 = vstv %s518
          %v520 = vmul.f32 %v519, %v491
          %v521 = vmul.f32 %v519, %v492
          %v522 = vmul.f32 %v519, %v493
          %vm526 = vcmask 1045504
          %v527 = vrot.slane %v520, 2
          %v528 = vrot.slane %v521, 2
          %v529 = vsel %vm526, %v527, %v528
          %v530 = vrot.slane %v522, 2
          %v531 = vsel %vm526, %v528, %v530
          %v534 = vadd.f32 %v516, %v529
          %v535 = vadd.f32 %v517, %v531
          %s536 = sld [smem:[#allocation5 + $0x15]]
          %v537 = vstv %s536
          %v538 = vmul.f32 %v537, %v491
          %v539 = vmul.f32 %v537, %v492
          %v540 = vmul.f32 %v537, %v493
          %vm544 = vcmask 1044480
          %v545 = vrot.slane %v538, 3
          %v546 = vrot.slane %v539, 3
          %v547 = vsel %vm544, %v545, %v546
          %v548 = vrot.slane %v540, 3
          %v549 = vsel %vm544, %v546, %v548
          %v552 = vadd.f32 %v534, %v547
          %v553 = vadd.f32 %v535, %v549
          %s554 = sld [smem:[#allocation5 + $0x1c]]
          %v555 = vstv %s554
          %v556 = vmul.f32 %v555, %v491
          %v557 = vmul.f32 %v555, %v492
          %v558 = vmul.f32 %v555, %v493
          %v562 = vrot.slane %v556, 4
          %v563 = vrot.slane %v557, 4
          %v564 = vsel %vm200, %v562, %v563
          %v565 = vrot.slane %v558, 4
          %v566 = vsel %vm200, %v563, %v565
          %v569 = vadd.f32 %v552, %v564
          %v570 = vadd.f32 %v553, %v566
          %s571 = sld [smem:[#allocation5 + $0x23]]
          %v572 = vstv %s571
          %v573 = vmul.f32 %v572, %v491
          %v574 = vmul.f32 %v572, %v492
          %v575 = vmul.f32 %v572, %v493
          %vm579 = vcmask 1042432
          %v580 = vrot.slane %v573, 5
          %v581 = vrot.slane %v574, 5
          %v582 = vsel %vm579, %v580, %v581
          %v583 = vrot.slane %v575, 5
          %v584 = vsel %vm579, %v581, %v583
          %v587 = vadd.f32 %v569, %v582
          %v588 = vadd.f32 %v570, %v584
          %s589 = sld [smem:[#allocation5 + $0x2a]]
          %v590 = vstv %s589
          %v591 = vmul.f32 %v590, %v491
          %v592 = vmul.f32 %v590, %v492
          %v593 = vmul.f32 %v590, %v493
          %vm597 = vcmask 1041408
          %v598 = vrot.slane %v591, 6
          %v599 = vrot.slane %v592, 6
          %v600 = vsel %vm597, %v598, %v599
          %v601 = vrot.slane %v593, 6
          %v602 = vsel %vm597, %v599, %v601
          %v605 = vadd.f32 %v587, %v600
          %v606 = vadd.f32 %v588, %v602
          %s607 = sld [smem:[#allocation5 + $0x1]]
          %v608 = vstv %s607
          %v609 = vmul.f32 %v608, %v491
          %v610 = vmul.f32 %v608, %v492
          %613 = vrot.lane.b32.xlu0 %v609, 127
          %v614 = vpop.permute.xlu0 %613
          %615 = vrot.lane.b32.xlu0 %v610, 127
          %v616 = vpop.permute.xlu0 %615
          %v619 = vadd.f32 %v605, %v614
          %v620 = vadd.f32 %v606, %v616
          %s621 = sld [smem:[#allocation5 + $0x8]]
          %v622 = vstv %s621
          %v623 = vmul.f32 %v622, %v491
          %v624 = vmul.f32 %v622, %v492
          %v625 = vmul.f32 %v622, %v493
          %v629 = vrot.slane %v623, 1
          %v630 = vrot.slane %v624, 1
          %v631 = vsel %vm508, %v629, %v630
          %v632 = vrot.slane %v625, 1
          %v633 = vsel %vm508, %v630, %v632
          %634 = vrot.lane.b32.xlu0 %v631, 127
          %v635 = vpop.permute.xlu0 %634
          %636 = vrot.lane.b32.xlu0 %v633, 127
          %v637 = vpop.permute.xlu0 %636
          %v640 = vadd.f32 %v619, %v635
          %v641 = vadd.f32 %v620, %v637
          %s642 = sld [smem:[#allocation5 + $0xf]]
          %v643 = vstv %s642
          %v644 = vmul.f32 %v643, %v491
          %v645 = vmul.f32 %v643, %v492
          %v646 = vmul.f32 %v643, %v493
          %v650 = vrot.slane %v644, 2
          %v651 = vrot.slane %v645, 2
          %v652 = vsel %vm526, %v650, %v651
          %v653 = vrot.slane %v646, 2
          %v654 = vsel %vm526, %v651, %v653
          %655 = vrot.lane.b32.xlu0 %v652, 127
          %v656 = vpop.permute.xlu0 %655
          %657 = vrot.lane.b32.xlu0 %v654, 127
          %v658 = vpop.permute.xlu0 %657
          %v661 = vadd.f32 %v640, %v656
          %v662 = vadd.f32 %v641, %v658
          %s663 = sld [smem:[#allocation5 + $0x16]]
          %v664 = vstv %s663
          %v665 = vmul.f32 %v664, %v491
          %v666 = vmul.f32 %v664, %v492
          %v667 = vmul.f32 %v664, %v493
          %v671 = vrot.slane %v665, 3
          %v672 = vrot.slane %v666, 3
          %v673 = vsel %vm544, %v671, %v672
          %v674 = vrot.slane %v667, 3
          %v675 = vsel %vm544, %v672, %v674
          %676 = vrot.lane.b32.xlu0 %v673, 127
          %v677 = vpop.permute.xlu0 %676
          %678 = vrot.lane.b32.xlu0 %v675, 127
          %v679 = vpop.permute.xlu0 %678
          %v682 = vadd.f32 %v661, %v677
          %v683 = vadd.f32 %v662, %v679
          %s684 = sld [smem:[#allocation5 + $0x1d]]
          %v685 = vstv %s684
          %v686 = vmul.f32 %v685, %v491
          %v687 = vmul.f32 %v685, %v492
          %v688 = vmul.f32 %v685, %v493
          %v692 = vrot.slane %v686, 4
          %v693 = vrot.slane %v687, 4
          %v694 = vsel %vm200, %v692, %v693
          %v695 = vrot.slane %v688, 4
          %v696 = vsel %vm200, %v693, %v695
          %697 = vrot.lane.b32.xlu0 %v694, 127
          %v698 = vpop.permute.xlu0 %697
          %699 = vrot.lane.b32.xlu0 %v696, 127
          %v700 = vpop.permute.xlu0 %699
          %v703 = vadd.f32 %v682, %v698
          %v704 = vadd.f32 %v683, %v700
          %s705 = sld [smem:[#allocation5 + $0x24]]
          %v706 = vstv %s705
          %v707 = vmul.f32 %v706, %v491
          %v708 = vmul.f32 %v706, %v492
          %v709 = vmul.f32 %v706, %v493
          %v713 = vrot.slane %v707, 5
          %v714 = vrot.slane %v708, 5
          %v715 = vsel %vm579, %v713, %v714
          %v716 = vrot.slane %v709, 5
          %v717 = vsel %vm579, %v714, %v716
          %718 = vrot.lane.b32.xlu0 %v715, 127
          %v719 = vpop.permute.xlu0 %718
          %720 = vrot.lane.b32.xlu0 %v717, 127
          %v721 = vpop.permute.xlu0 %720
          %v724 = vadd.f32 %v703, %v719
          %v725 = vadd.f32 %v704, %v721
          %s726 = sld [smem:[#allocation5 + $0x2b]]
          %v727 = vstv %s726
          %v728 = vmul.f32 %v727, %v491
          %v729 = vmul.f32 %v727, %v492
          %v730 = vmul.f32 %v727, %v493
          %v734 = vrot.slane %v728, 6
          %v735 = vrot.slane %v729, 6
          %v736 = vsel %vm597, %v734, %v735
          %v737 = vrot.slane %v730, 6
          %v738 = vsel %vm597, %v735, %v737
          %739 = vrot.lane.b32.xlu0 %v736, 127
          %v740 = vpop.permute.xlu0 %739
          %741 = vrot.lane.b32.xlu0 %v738, 127
          %v742 = vpop.permute.xlu0 %741
          %v745 = vadd.f32 %v724, %v740
          %v746 = vadd.f32 %v725, %v742
          %s747 = sld [smem:[#allocation5 + $0x2]]
          %v748 = vstv %s747
          %v749 = vmul.f32 %v748, %v491
          %v750 = vmul.f32 %v748, %v492
          %753 = vrot.lane.b32.xlu0 %v749, 126
          %v754 = vpop.permute.xlu0 %753
          %755 = vrot.lane.b32.xlu0 %v750, 126
          %v756 = vpop.permute.xlu0 %755
          %v759 = vadd.f32 %v745, %v754
          %v760 = vadd.f32 %v746, %v756
          %s761 = sld [smem:[#allocation5 + $0x9]]
          %v762 = vstv %s761
          %v763 = vmul.f32 %v762, %v491
          %v764 = vmul.f32 %v762, %v492
          %v765 = vmul.f32 %v762, %v493
          %v769 = vrot.slane %v763, 1
          %v770 = vrot.slane %v764, 1
          %v771 = vsel %vm508, %v769, %v770
          %v772 = vrot.slane %v765, 1
          %v773 = vsel %vm508, %v770, %v772
          %774 = vrot.lane.b32.xlu0 %v771, 126
          %v775 = vpop.permute.xlu0 %774
          %776 = vrot.lane.b32.xlu0 %v773, 126
          %v777 = vpop.permute.xlu0 %776
          %v780 = vadd.f32 %v759, %v775
          %v781 = vadd.f32 %v760, %v777
          %s782 = sld [smem:[#allocation5 + $0x10]]
          %v783 = vstv %s782
          %v784 = vmul.f32 %v783, %v491
          %v785 = vmul.f32 %v783, %v492
          %v786 = vmul.f32 %v783, %v493
          %v790 = vrot.slane %v784, 2
          %v791 = vrot.slane %v785, 2
          %v792 = vsel %vm526, %v790, %v791
          %v793 = vrot.slane %v786, 2
          %v794 = vsel %vm526, %v791, %v793
          %795 = vrot.lane.b32.xlu0 %v792, 126
          %v796 = vpop.permute.xlu0 %795
          %797 = vrot.lane.b32.xlu0 %v794, 126
          %v798 = vpop.permute.xlu0 %797
          %v801 = vadd.f32 %v780, %v796
          %v802 = vadd.f32 %v781, %v798
          %s803 = sld [smem:[#allocation5 + $0x17]]
          %v804 = vstv %s803
          %v805 = vmul.f32 %v804, %v491
          %v806 = vmul.f32 %v804, %v492
          %v807 = vmul.f32 %v804, %v493
          %v811 = vrot.slane %v805, 3
          %v812 = vrot.slane %v806, 3
          %v813 = vsel %vm544, %v811, %v812
          %v814 = vrot.slane %v807, 3
          %v815 = vsel %vm544, %v812, %v814
          %816 = vrot.lane.b32.xlu0 %v813, 126
          %v817 = vpop.permute.xlu0 %816
          %818 = vrot.lane.b32.xlu0 %v815, 126
          %v819 = vpop.permute.xlu0 %818
          %v822 = vadd.f32 %v801, %v817
          %v823 = vadd.f32 %v802, %v819
          %s824 = sld [smem:[#allocation5 + $0x1e]]
          %v825 = vstv %s824
          %v826 = vmul.f32 %v825, %v491
          %v827 = vmul.f32 %v825, %v492
          %v828 = vmul.f32 %v825, %v493
          %v832 = vrot.slane %v826, 4
          %v833 = vrot.slane %v827, 4
          %v834 = vsel %vm200, %v832, %v833
          %v835 = vrot.slane %v828, 4
          %v836 = vsel %vm200, %v833, %v835
          %837 = vrot.lane.b32.xlu0 %v834, 126
          %v838 = vpop.permute.xlu0 %837
          %839 = vrot.lane.b32.xlu0 %v836, 126
          %v840 = vpop.permute.xlu0 %839
          %v843 = vadd.f32 %v822, %v838
          %v844 = vadd.f32 %v823, %v840
          %s845 = sld [smem:[#allocation5 + $0x25]]
          %v846 = vstv %s845
          %v847 = vmul.f32 %v846, %v491
          %v848 = vmul.f32 %v846, %v492
          %v849 = vmul.f32 %v846, %v493
          %v853 = vrot.slane %v847, 5
          %v854 = vrot.slane %v848, 5
          %v855 = vsel %vm579, %v853, %v854
          %v856 = vrot.slane %v849, 5
          %v857 = vsel %vm579, %v854, %v856
          %858 = vrot.lane.b32.xlu0 %v855, 126
          %v859 = vpop.permute.xlu0 %858
          %860 = vrot.lane.b32.xlu0 %v857, 126
          %v861 = vpop.permute.xlu0 %860
          %v864 = vadd.f32 %v843, %v859
          %v865 = vadd.f32 %v844, %v861
          %s866 = sld [smem:[#allocation5 + $0x2c]]
          %v867 = vstv %s866
          %v868 = vmul.f32 %v867, %v491
          %v869 = vmul.f32 %v867, %v492
          %v870 = vmul.f32 %v867, %v493
          %v874 = vrot.slane %v868, 6
          %v875 = vrot.slane %v869, 6
          %v876 = vsel %vm597, %v874, %v875
          %v877 = vrot.slane %v870, 6
          %v878 = vsel %vm597, %v875, %v877
          %879 = vrot.lane.b32.xlu0 %v876, 126
          %v880 = vpop.permute.xlu0 %879
          %881 = vrot.lane.b32.xlu0 %v878, 126
          %v882 = vpop.permute.xlu0 %881
          %v885 = vadd.f32 %v864, %v880
          %v886 = vadd.f32 %v865, %v882
          %s887 = sld [smem:[#allocation5 + $0x3]]
          %v888 = vstv %s887
          %v889 = vmul.f32 %v888, %v491
          %v890 = vmul.f32 %v888, %v492
          %893 = vrot.lane.b32.xlu0 %v889, 125
          %v894 = vpop.permute.xlu0 %893
          %895 = vrot.lane.b32.xlu0 %v890, 125
          %v896 = vpop.permute.xlu0 %895
          %v899 = vadd.f32 %v885, %v894
          %v900 = vadd.f32 %v886, %v896
          %s901 = sld [smem:[#allocation5 + $0xa]]
          %v902 = vstv %s901
          %v903 = vmul.f32 %v902, %v491
          %v904 = vmul.f32 %v902, %v492
          %v905 = vmul.f32 %v902, %v493
          %v909 = vrot.slane %v903, 1
          %v910 = vrot.slane %v904, 1
          %v911 = vsel %vm508, %v909, %v910
          %v912 = vrot.slane %v905, 1
          %v913 = vsel %vm508, %v910, %v912
          %914 = vrot.lane.b32.xlu0 %v911, 125
          %v915 = vpop.permute.xlu0 %914
          %916 = vrot.lane.b32.xlu0 %v913, 125
          %v917 = vpop.permute.xlu0 %916
          %v920 = vadd.f32 %v899, %v915
          %v921 = vadd.f32 %v900, %v917
          %s922 = sld [smem:[#allocation5 + $0x11]]
          %v923 = vstv %s922
          %v924 = vmul.f32 %v923, %v491
          %v925 = vmul.f32 %v923, %v492
          %v926 = vmul.f32 %v923, %v493
          %v930 = vrot.slane %v924, 2
          %v931 = vrot.slane %v925, 2
          %v932 = vsel %vm526, %v930, %v931
          %v933 = vrot.slane %v926, 2
          %v934 = vsel %vm526, %v931, %v933
          %935 = vrot.lane.b32.xlu0 %v932, 125
          %v936 = vpop.permute.xlu0 %935
          %937 = vrot.lane.b32.xlu0 %v934, 125
          %v938 = vpop.permute.xlu0 %937
          %v941 = vadd.f32 %v920, %v936
          %v942 = vadd.f32 %v921, %v938
          %s943 = sld [smem:[#allocation5 + $0x18]]
          %v944 = vstv %s943
          %v945 = vmul.f32 %v944, %v491
          %v946 = vmul.f32 %v944, %v492
          %v947 = vmul.f32 %v944, %v493
          %v951 = vrot.slane %v945, 3
          %v952 = vrot.slane %v946, 3
          %v953 = vsel %vm544, %v951, %v952
          %v954 = vrot.slane %v947, 3
          %v955 = vsel %vm544, %v952, %v954
          %956 = vrot.lane.b32.xlu0 %v953, 125
          %v957 = vpop.permute.xlu0 %956
          %958 = vrot.lane.b32.xlu0 %v955, 125
          %v959 = vpop.permute.xlu0 %958
          %v962 = vadd.f32 %v941, %v957
          %v963 = vadd.f32 %v942, %v959
          %s964 = sld [smem:[#allocation5 + $0x1f]]
          %v965 = vstv %s964
          %v966 = vmul.f32 %v965, %v491
          %v967 = vmul.f32 %v965, %v492
          %v968 = vmul.f32 %v965, %v493
          %v972 = vrot.slane %v966, 4
          %v973 = vrot.slane %v967, 4
          %v974 = vsel %vm200, %v972, %v973
          %v975 = vrot.slane %v968, 4
          %v976 = vsel %vm200, %v973, %v975
          %977 = vrot.lane.b32.xlu0 %v974, 125
          %v978 = vpop.permute.xlu0 %977
          %979 = vrot.lane.b32.xlu0 %v976, 125
          %v980 = vpop.permute.xlu0 %979
          %v983 = vadd.f32 %v962, %v978
          %v984 = vadd.f32 %v963, %v980
          %s985 = sld [smem:[#allocation5 + $0x26]]
          %v986 = vstv %s985
          %v987 = vmul.f32 %v986, %v491
          %v988 = vmul.f32 %v986, %v492
          %v989 = vmul.f32 %v986, %v493
          %v993 = vrot.slane %v987, 5
          %v994 = vrot.slane %v988, 5
          %v995 = vsel %vm579, %v993, %v994
          %v996 = vrot.slane %v989, 5
          %v997 = vsel %vm579, %v994, %v996
          %998 = vrot.lane.b32.xlu0 %v995, 125
          %v999 = vpop.permute.xlu0 %998
          %1000 = vrot.lane.b32.xlu0 %v997, 125
          %v1001 = vpop.permute.xlu0 %1000
          %v1004 = vadd.f32 %v983, %v999
          %v1005 = vadd.f32 %v984, %v1001
          %s1006 = sld [smem:[#allocation5 + $0x2d]]
          %v1007 = vstv %s1006
          %v1008 = vmul.f32 %v1007, %v491
          %v1009 = vmul.f32 %v1007, %v492
          %v1010 = vmul.f32 %v1007, %v493
          %v1014 = vrot.slane %v1008, 6
          %v1015 = vrot.slane %v1009, 6
          %v1016 = vsel %vm597, %v1014, %v1015
          %v1017 = vrot.slane %v1010, 6
          %v1018 = vsel %vm597, %v1015, %v1017
          %1019 = vrot.lane.b32.xlu0 %v1016, 125
          %v1020 = vpop.permute.xlu0 %1019
          %1021 = vrot.lane.b32.xlu0 %v1018, 125
          %v1022 = vpop.permute.xlu0 %1021
          %v1025 = vadd.f32 %v1004, %v1020
          %v1026 = vadd.f32 %v1005, %v1022
          %s1027 = sld [smem:[#allocation5 + $0x4]]
          %v1028 = vstv %s1027
          %v1029 = vmul.f32 %v1028, %v491
          %v1030 = vmul.f32 %v1028, %v492
          %1033 = vrot.lane.b32.xlu0 %v1029, 124
          %v1034 = vpop.permute.xlu0 %1033
          %1035 = vrot.lane.b32.xlu0 %v1030, 124
          %v1036 = vpop.permute.xlu0 %1035
          %v1039 = vadd.f32 %v1025, %v1034
          %v1040 = vadd.f32 %v1026, %v1036
          %s1041 = sld [smem:[#allocation5 + $0xb]]
          %v1042 = vstv %s1041
          %v1043 = vmul.f32 %v1042, %v491
          %v1044 = vmul.f32 %v1042, %v492
          %v1045 = vmul.f32 %v1042, %v493
          %v1049 = vrot.slane %v1043, 1
          %v1050 = vrot.slane %v1044, 1
          %v1051 = vsel %vm508, %v1049, %v1050
          %v1052 = vrot.slane %v1045, 1
          %v1053 = vsel %vm508, %v1050, %v1052
          %1054 = vrot.lane.b32.xlu0 %v1051, 124
          %v1055 = vpop.permute.xlu0 %1054
          %1056 = vrot.lane.b32.xlu0 %v1053, 124
          %v1057 = vpop.permute.xlu0 %1056
          %v1060 = vadd.f32 %v1039, %v1055
          %v1061 = vadd.f32 %v1040, %v1057
          %s1062 = sld [smem:[#allocation5 + $0x12]]
          %v1063 = vstv %s1062
          %v1064 = vmul.f32 %v1063, %v491
          %v1065 = vmul.f32 %v1063, %v492
          %v1066 = vmul.f32 %v1063, %v493
          %v1070 = vrot.slane %v1064, 2
          %v1071 = vrot.slane %v1065, 2
          %v1072 = vsel %vm526, %v1070, %v1071
          %v1073 = vrot.slane %v1066, 2
          %v1074 = vsel %vm526, %v1071, %v1073
          %1075 = vrot.lane.b32.xlu0 %v1072, 124
          %v1076 = vpop.permute.xlu0 %1075
          %1077 = vrot.lane.b32.xlu0 %v1074, 124
          %v1078 = vpop.permute.xlu0 %1077
          %v1081 = vadd.f32 %v1060, %v1076
          %v1082 = vadd.f32 %v1061, %v1078
          %s1083 = sld [smem:[#allocation5 + $0x19]]
          %v1084 = vstv %s1083
          %v1085 = vmul.f32 %v1084, %v491
          %v1086 = vmul.f32 %v1084, %v492
          %v1087 = vmul.f32 %v1084, %v493
          %v1091 = vrot.slane %v1085, 3
          %v1092 = vrot.slane %v1086, 3
          %v1093 = vsel %vm544, %v1091, %v1092
          %v1094 = vrot.slane %v1087, 3
          %v1095 = vsel %vm544, %v1092, %v1094
          %1096 = vrot.lane.b32.xlu0 %v1093, 124
          %v1097 = vpop.permute.xlu0 %1096
          %1098 = vrot.lane.b32.xlu0 %v1095, 124
          %v1099 = vpop.permute.xlu0 %1098
          %v1102 = vadd.f32 %v1081, %v1097
          %v1103 = vadd.f32 %v1082, %v1099
          %s1104 = sld [smem:[#allocation5 + $0x20]]
          %v1105 = vstv %s1104
          %v1106 = vmul.f32 %v1105, %v491
          %v1107 = vmul.f32 %v1105, %v492
          %v1108 = vmul.f32 %v1105, %v493
          %v1112 = vrot.slane %v1106, 4
          %v1113 = vrot.slane %v1107, 4
          %v1114 = vsel %vm200, %v1112, %v1113
          %v1115 = vrot.slane %v1108, 4
          %v1116 = vsel %vm200, %v1113, %v1115
          %1117 = vrot.lane.b32.xlu0 %v1114, 124
          %v1118 = vpop.permute.xlu0 %1117
          %1119 = vrot.lane.b32.xlu0 %v1116, 124
          %v1120 = vpop.permute.xlu0 %1119
          %v1123 = vadd.f32 %v1102, %v1118
          %v1124 = vadd.f32 %v1103, %v1120
          %s1125 = sld [smem:[#allocation5 + $0x27]]
          %v1126 = vstv %s1125
          %v1127 = vmul.f32 %v1126, %v491
          %v1128 = vmul.f32 %v1126, %v492
          %v1129 = vmul.f32 %v1126, %v493
          %v1133 = vrot.slane %v1127, 5
          %v1134 = vrot.slane %v1128, 5
          %v1135 = vsel %vm579, %v1133, %v1134
          %v1136 = vrot.slane %v1129, 5
          %v1137 = vsel %vm579, %v1134, %v1136
          %1138 = vrot.lane.b32.xlu0 %v1135, 124
          %v1139 = vpop.permute.xlu0 %1138
          %1140 = vrot.lane.b32.xlu0 %v1137, 124
          %v1141 = vpop.permute.xlu0 %1140
          %v1144 = vadd.f32 %v1123, %v1139
          %v1145 = vadd.f32 %v1124, %v1141
          %s1146 = sld [smem:[#allocation5 + $0x2e]]
          %v1147 = vstv %s1146
          %v1148 = vmul.f32 %v1147, %v491
          %v1149 = vmul.f32 %v1147, %v492
          %v1150 = vmul.f32 %v1147, %v493
          %v1154 = vrot.slane %v1148, 6
          %v1155 = vrot.slane %v1149, 6
          %v1156 = vsel %vm597, %v1154, %v1155
          %v1157 = vrot.slane %v1150, 6
          %v1158 = vsel %vm597, %v1155, %v1157
          %1159 = vrot.lane.b32.xlu0 %v1156, 124
          %v1160 = vpop.permute.xlu0 %1159
          %1161 = vrot.lane.b32.xlu0 %v1158, 124
          %v1162 = vpop.permute.xlu0 %1161
          %v1165 = vadd.f32 %v1144, %v1160
          %v1166 = vadd.f32 %v1145, %v1162
          %s1167 = sld [smem:[#allocation5 + $0x5]]
          %v1168 = vstv %s1167
          %v1169 = vmul.f32 %v1168, %v491
          %v1170 = vmul.f32 %v1168, %v492
          %1173 = vrot.lane.b32.xlu0 %v1169, 123
          %v1174 = vpop.permute.xlu0 %1173
          %1175 = vrot.lane.b32.xlu0 %v1170, 123
          %v1176 = vpop.permute.xlu0 %1175
          %v1179 = vadd.f32 %v1165, %v1174
          %v1180 = vadd.f32 %v1166, %v1176
          %s1181 = sld [smem:[#allocation5 + $0xc]]
          %v1182 = vstv %s1181
          %v1183 = vmul.f32 %v1182, %v491
          %v1184 = vmul.f32 %v1182, %v492
          %v1185 = vmul.f32 %v1182, %v493
          %v1189 = vrot.slane %v1183, 1
          %v1190 = vrot.slane %v1184, 1
          %v1191 = vsel %vm508, %v1189, %v1190
          %v1192 = vrot.slane %v1185, 1
          %v1193 = vsel %vm508, %v1190, %v1192
          %1194 = vrot.lane.b32.xlu0 %v1191, 123
          %v1195 = vpop.permute.xlu0 %1194
          %1196 = vrot.lane.b32.xlu0 %v1193, 123
          %v1197 = vpop.permute.xlu0 %1196
          %v1200 = vadd.f32 %v1179, %v1195
          %v1201 = vadd.f32 %v1180, %v1197
          %s1202 = sld [smem:[#allocation5 + $0x13]]
          %v1203 = vstv %s1202
          %v1204 = vmul.f32 %v1203, %v491
          %v1205 = vmul.f32 %v1203, %v492
          %v1206 = vmul.f32 %v1203, %v493
          %v1210 = vrot.slane %v1204, 2
          %v1211 = vrot.slane %v1205, 2
          %v1212 = vsel %vm526, %v1210, %v1211
          %v1213 = vrot.slane %v1206, 2
          %v1214 = vsel %vm526, %v1211, %v1213
          %1215 = vrot.lane.b32.xlu0 %v1212, 123
          %v1216 = vpop.permute.xlu0 %1215
          %1217 = vrot.lane.b32.xlu0 %v1214, 123
          %v1218 = vpop.permute.xlu0 %1217
          %v1221 = vadd.f32 %v1200, %v1216
          %v1222 = vadd.f32 %v1201, %v1218
          %s1223 = sld [smem:[#allocation5 + $0x1a]]
          %v1224 = vstv %s1223
          %v1225 = vmul.f32 %v1224, %v491
          %v1226 = vmul.f32 %v1224, %v492
          %v1227 = vmul.f32 %v1224, %v493
          %v1231 = vrot.slane %v1225, 3
          %v1232 = vrot.slane %v1226, 3
          %v1233 = vsel %vm544, %v1231, %v1232
          %v1234 = vrot.slane %v1227, 3
          %v1235 = vsel %vm544, %v1232, %v1234
          %1236 = vrot.lane.b32.xlu0 %v1233, 123
          %v1237 = vpop.permute.xlu0 %1236
          %1238 = vrot.lane.b32.xlu0 %v1235, 123
          %v1239 = vpop.permute.xlu0 %1238
          %v1242 = vadd.f32 %v1221, %v1237
          %v1243 = vadd.f32 %v1222, %v1239
          %s1244 = sld [smem:[#allocation5 + $0x21]]
          %v1245 = vstv %s1244
          %v1246 = vmul.f32 %v1245, %v491
          %v1247 = vmul.f32 %v1245, %v492
          %v1248 = vmul.f32 %v1245, %v493
          %v1252 = vrot.slane %v1246, 4
          %v1253 = vrot.slane %v1247, 4
          %v1254 = vsel %vm200, %v1252, %v1253
          %v1255 = vrot.slane %v1248, 4
          %v1256 = vsel %vm200, %v1253, %v1255
          %1257 = vrot.lane.b32.xlu0 %v1254, 123
          %v1258 = vpop.permute.xlu0 %1257
          %1259 = vrot.lane.b32.xlu0 %v1256, 123
          %v1260 = vpop.permute.xlu0 %1259
          %v1263 = vadd.f32 %v1242, %v1258
          %v1264 = vadd.f32 %v1243, %v1260
          %s1265 = sld [smem:[#allocation5 + $0x28]]
          %v1266 = vstv %s1265
          %v1267 = vmul.f32 %v1266, %v491
          %v1268 = vmul.f32 %v1266, %v492
          %v1269 = vmul.f32 %v1266, %v493
          %v1273 = vrot.slane %v1267, 5
          %v1274 = vrot.slane %v1268, 5
          %v1275 = vsel %vm579, %v1273, %v1274
          %v1276 = vrot.slane %v1269, 5
          %v1277 = vsel %vm579, %v1274, %v1276
          %1278 = vrot.lane.b32.xlu0 %v1275, 123
          %v1279 = vpop.permute.xlu0 %1278
          %1280 = vrot.lane.b32.xlu0 %v1277, 123
          %v1281 = vpop.permute.xlu0 %1280
          %v1284 = vadd.f32 %v1263, %v1279
          %v1285 = vadd.f32 %v1264, %v1281
          %s1286 = sld [smem:[#allocation5 + $0x2f]]
          %v1287 = vstv %s1286
          %v1288 = vmul.f32 %v1287, %v491
          %v1289 = vmul.f32 %v1287, %v492
          %v1290 = vmul.f32 %v1287, %v493
          %v1294 = vrot.slane %v1288, 6
          %v1295 = vrot.slane %v1289, 6
          %v1296 = vsel %vm597, %v1294, %v1295
          %v1297 = vrot.slane %v1290, 6
          %v1298 = vsel %vm597, %v1295, %v1297
          %1299 = vrot.lane.b32.xlu0 %v1296, 123
          %v1300 = vpop.permute.xlu0 %1299
          %1301 = vrot.lane.b32.xlu0 %v1298, 123
          %v1302 = vpop.permute.xlu0 %1301
          %v1305 = vadd.f32 %v1284, %v1300
          %v1306 = vadd.f32 %v1285, %v1302
          %s1307 = sld [smem:[#allocation5 + $0x6]]
          %v1308 = vstv %s1307
          %v1309 = vmul.f32 %v1308, %v491
          %v1310 = vmul.f32 %v1308, %v492
          %1313 = vrot.lane.b32.xlu0 %v1309, 122
          %v1314 = vpop.permute.xlu0 %1313
          %1315 = vrot.lane.b32.xlu0 %v1310, 122
          %v1316 = vpop.permute.xlu0 %1315
          %v1319 = vadd.f32 %v1305, %v1314
          %v1320 = vadd.f32 %v1306, %v1316
          %s1321 = sld [smem:[#allocation5 + $0xd]]
          %v1322 = vstv %s1321
          %v1323 = vmul.f32 %v1322, %v491
          %v1324 = vmul.f32 %v1322, %v492
          %v1325 = vmul.f32 %v1322, %v493
          %v1329 = vrot.slane %v1323, 1
          %v1330 = vrot.slane %v1324, 1
          %v1331 = vsel %vm508, %v1329, %v1330
          %v1332 = vrot.slane %v1325, 1
          %v1333 = vsel %vm508, %v1330, %v1332
          %1334 = vrot.lane.b32.xlu0 %v1331, 122
          %v1335 = vpop.permute.xlu0 %1334
          %1336 = vrot.lane.b32.xlu0 %v1333, 122
          %v1337 = vpop.permute.xlu0 %1336
          %v1340 = vadd.f32 %v1319, %v1335
          %v1341 = vadd.f32 %v1320, %v1337
          %s1342 = sld [smem:[#allocation5 + $0x14]]
          %v1343 = vstv %s1342
          %v1344 = vmul.f32 %v1343, %v491
          %v1345 = vmul.f32 %v1343, %v492
          %v1346 = vmul.f32 %v1343, %v493
          %v1350 = vrot.slane %v1344, 2
          %v1351 = vrot.slane %v1345, 2
          %v1352 = vsel %vm526, %v1350, %v1351
          %v1353 = vrot.slane %v1346, 2
          %v1354 = vsel %vm526, %v1351, %v1353
          %1355 = vrot.lane.b32.xlu0 %v1352, 122
          %v1356 = vpop.permute.xlu0 %1355
          %1357 = vrot.lane.b32.xlu0 %v1354, 122
          %v1358 = vpop.permute.xlu0 %1357
          %v1361 = vadd.f32 %v1340, %v1356
          %v1362 = vadd.f32 %v1341, %v1358
          %s1363 = sld [smem:[#allocation5 + $0x1b]]
          %v1364 = vstv %s1363
          %v1365 = vmul.f32 %v1364, %v491
          %v1366 = vmul.f32 %v1364, %v492
          %v1367 = vmul.f32 %v1364, %v493
          %v1371 = vrot.slane %v1365, 3
          %v1372 = vrot.slane %v1366, 3
          %v1373 = vsel %vm544, %v1371, %v1372
          %v1374 = vrot.slane %v1367, 3
          %v1375 = vsel %vm544, %v1372, %v1374
          %1376 = vrot.lane.b32.xlu0 %v1373, 122
          %v1377 = vpop.permute.xlu0 %1376
          %1378 = vrot.lane.b32.xlu0 %v1375, 122
          %v1379 = vpop.permute.xlu0 %1378
          %v1382 = vadd.f32 %v1361, %v1377
          %v1383 = vadd.f32 %v1362, %v1379
          %s1384 = sld [smem:[#allocation5 + $0x22]]
          %v1385 = vstv %s1384
          %v1386 = vmul.f32 %v1385, %v491
          %v1387 = vmul.f32 %v1385, %v492
          %v1388 = vmul.f32 %v1385, %v493
          %v1392 = vrot.slane %v1386, 4
          %v1393 = vrot.slane %v1387, 4
          %v1394 = vsel %vm200, %v1392, %v1393
          %v1395 = vrot.slane %v1388, 4
          %v1396 = vsel %vm200, %v1393, %v1395
          %1397 = vrot.lane.b32.xlu0 %v1394, 122
          %v1398 = vpop.permute.xlu0 %1397
          %1399 = vrot.lane.b32.xlu0 %v1396, 122
          %v1400 = vpop.permute.xlu0 %1399
          %v1403 = vadd.f32 %v1382, %v1398
          %v1404 = vadd.f32 %v1383, %v1400
          %s1405 = sld [smem:[#allocation5 + $0x29]]
          %v1406 = vstv %s1405
          %v1407 = vmul.f32 %v1406, %v491
          %v1408 = vmul.f32 %v1406, %v492
          %v1409 = vmul.f32 %v1406, %v493
          %v1413 = vrot.slane %v1407, 5
          %v1414 = vrot.slane %v1408, 5
          %v1415 = vsel %vm579, %v1413, %v1414
          %v1416 = vrot.slane %v1409, 5
          %v1417 = vsel %vm579, %v1414, %v1416
          %1418 = vrot.lane.b32.xlu0 %v1415, 122
          %v1419 = vpop.permute.xlu0 %1418
          %1420 = vrot.lane.b32.xlu0 %v1417, 122
          %v1421 = vpop.permute.xlu0 %1420
          %v1424 = vadd.f32 %v1403, %v1419
          %v1425 = vadd.f32 %v1404, %v1421
          %s1426 = sld [smem:[#allocation5 + $0x30]]
          %v1427 = vstv %s1426
          %v1428 = vmul.f32 %v1427, %v491
          %v1429 = vmul.f32 %v1427, %v492
          %v1430 = vmul.f32 %v1427, %v493
          %v1434 = vrot.slane %v1428, 6
          %v1435 = vrot.slane %v1429, 6
          %v1436 = vsel %vm597, %v1434, %v1435
          %v1437 = vrot.slane %v1430, 6
          %v1438 = vsel %vm597, %v1435, %v1437
          %1439 = vrot.lane.b32.xlu0 %v1436, 122
          %v1440 = vpop.permute.xlu0 %1439
          %1441 = vrot.lane.b32.xlu0 %v1438, 122
          %v1442 = vpop.permute.xlu0 %1441
          %v1445 = vadd.f32 %v1424, %v1440
          %v1446 = vadd.f32 %v1425, %v1442
          %v1447 = vld [vmem:[%s279] sm:$0xff]
          %v1448 = vld [vmem:[%s279 + $0x8] sm:$0xff]
          %v1449 = vld [vmem:[%s279 + $0x10] sm:$0x3f]
          %s1450 = sld [smem:[#allocation5 + $0x31]]
          %v1451 = vstv %s1450
          %v1452 = vmul.f32 %v1451, %v1447
          %v1453 = vmul.f32 %v1451, %v1448
          %v1454 = vadd.f32 %v1445, %v1452
          %v1455 = vadd.f32 %v1446, %v1453
          %s1456 = sld [smem:[#allocation5 + $0x38]]
          %v1457 = vstv %s1456
          %v1458 = vmul.f32 %v1457, %v1447
          %v1459 = vmul.f32 %v1457, %v1448
          %v1460 = vmul.f32 %v1457, %v1449
          %v1464 = vrot.slane %v1458, 1
          %v1465 = vrot.slane %v1459, 1
          %v1466 = vsel %vm508, %v1464, %v1465
          %v1467 = vrot.slane %v1460, 1
          %v1468 = vsel %vm508, %v1465, %v1467
          %v1471 = vadd.f32 %v1454, %v1466
          %v1472 = vadd.f32 %v1455, %v1468
          %s1473 = sld [smem:[#allocation5 + $0x3f]]
          %v1474 = vstv %s1473
          %v1475 = vmul.f32 %v1474, %v1447
          %v1476 = vmul.f32 %v1474, %v1448
          %v1477 = vmul.f32 %v1474, %v1449
          %v1481 = vrot.slane %v1475, 2
          %v1482 = vrot.slane %v1476, 2
          %v1483 = vsel %vm526, %v1481, %v1482
          %v1484 = vrot.slane %v1477, 2
          %v1485 = vsel %vm526, %v1482, %v1484
          %v1488 = vadd.f32 %v1471, %v1483
          %v1489 = vadd.f32 %v1472, %v1485
          %s1490 = sld [smem:[#allocation5 + $0x46]]
          %v1491 = vstv %s1490
          %v1492 = vmul.f32 %v1491, %v1447
          %v1493 = vmul.f32 %v1491, %v1448
          %v1494 = vmul.f32 %v1491, %v1449
          %v1498 = vrot.slane %v1492, 3
          %v1499 = vrot.slane %v1493, 3
          %v1500 = vsel %vm544, %v1498, %v1499
          %v1501 = vrot.slane %v1494, 3
          %v1502 = vsel %vm544, %v1499, %v1501
          %v1505 = vadd.f32 %v1488, %v1500
          %v1506 = vadd.f32 %v1489, %v1502
          %s1507 = sld [smem:[#allocation5 + $0x4d]]
          %v1508 = vstv %s1507
          %v1509 = vmul.f32 %v1508, %v1447
          %v1510 = vmul.f32 %v1508, %v1448
          %v1511 = vmul.f32 %v1508, %v1449
          %v1515 = vrot.slane %v1509, 4
          %v1516 = vrot.slane %v1510, 4
          %v1517 = vsel %vm200, %v1515, %v1516
          %v1518 = vrot.slane %v1511, 4
          %v1519 = vsel %vm200, %v1516, %v1518
          %v1522 = vadd.f32 %v1505, %v1517
          %v1523 = vadd.f32 %v1506, %v1519
          %s1524 = sld [smem:[#allocation5 + $0x54]]
          %v1525 = vstv %s1524
          %v1526 = vmul.f32 %v1525, %v1447
          %v1527 = vmul.f32 %v1525, %v1448
          %v1528 = vmul.f32 %v1525, %v1449
          %v1532 = vrot.slane %v1526, 5
          %v1533 = vrot.slane %v1527, 5
          %v1534 = vsel %vm579, %v1532, %v1533
          %v1535 = vrot.slane %v1528, 5
          %v1536 = vsel %vm579, %v1533, %v1535
          %v1539 = vadd.f32 %v1522, %v1534
          %v1540 = vadd.f32 %v1523, %v1536
          %s1541 = sld [smem:[#allocation5 + $0x5b]]
          %v1542 = vstv %s1541
          %v1543 = vmul.f32 %v1542, %v1447
          %v1544 = vmul.f32 %v1542, %v1448
          %v1545 = vmul.f32 %v1542, %v1449
          %v1549 = vrot.slane %v1543, 6
          %v1550 = vrot.slane %v1544, 6
          %v1551 = vsel %vm597, %v1549, %v1550
          %v1552 = vrot.slane %v1545, 6
          %v1553 = vsel %vm597, %v1550, %v1552
          %v1556 = vadd.f32 %v1539, %v1551
          %v1557 = vadd.f32 %v1540, %v1553
          %s1558 = sld [smem:[#allocation5 + $0x32]]
          %v1559 = vstv %s1558
          %v1560 = vmul.f32 %v1559, %v1447
          %v1561 = vmul.f32 %v1559, %v1448
          %1564 = vrot.lane.b32.xlu0 %v1560, 127
          %v1565 = vpop.permute.xlu0 %1564
          %1566 = vrot.lane.b32.xlu0 %v1561, 127
          %v1567 = vpop.permute.xlu0 %1566
          %v1570 = vadd.f32 %v1556, %v1565
          %v1571 = vadd.f32 %v1557, %v1567
          %s1572 = sld [smem:[#allocation5 + $0x39]]
          %v1573 = vstv %s1572
          %v1574 = vmul.f32 %v1573, %v1447
          %v1575 = vmul.f32 %v1573, %v1448
          %v1576 = vmul.f32 %v1573, %v1449
          %v1580 = vrot.slane %v1574, 1
          %v1581 = vrot.slane %v1575, 1
          %v1582 = vsel %vm508, %v1580, %v1581
          %v1583 = vrot.slane %v1576, 1
          %v1584 = vsel %vm508, %v1581, %v1583
          %1585 = vrot.lane.b32.xlu0 %v1582, 127
          %v1586 = vpop.permute.xlu0 %1585
          %1587 = vrot.lane.b32.xlu0 %v1584, 127
          %v1588 = vpop.permute.xlu0 %1587
          %v1591 = vadd.f32 %v1570, %v1586
          %v1592 = vadd.f32 %v1571, %v1588
          %s1593 = sld [smem:[#allocation5 + $0x40]]
          %v1594 = vstv %s1593
          %v1595 = vmul.f32 %v1594, %v1447
          %v1596 = vmul.f32 %v1594, %v1448
          %v1597 = vmul.f32 %v1594, %v1449
          %v1601 = vrot.slane %v1595, 2
          %v1602 = vrot.slane %v1596, 2
          %v1603 = vsel %vm526, %v1601, %v1602
          %v1604 = vrot.slane %v1597, 2
          %v1605 = vsel %vm526, %v1602, %v1604
          %1606 = vrot.lane.b32.xlu0 %v1603, 127
          %v1607 = vpop.permute.xlu0 %1606
          %1608 = vrot.lane.b32.xlu0 %v1605, 127
          %v1609 = vpop.permute.xlu0 %1608
          %v1612 = vadd.f32 %v1591, %v1607
          %v1613 = vadd.f32 %v1592, %v1609
          %s1614 = sld [smem:[#allocation5 + $0x47]]
          %v1615 = vstv %s1614
          %v1616 = vmul.f32 %v1615, %v1447
          %v1617 = vmul.f32 %v1615, %v1448
          %v1618 = vmul.f32 %v1615, %v1449
          %v1622 = vrot.slane %v1616, 3
          %v1623 = vrot.slane %v1617, 3
          %v1624 = vsel %vm544, %v1622, %v1623
          %v1625 = vrot.slane %v1618, 3
          %v1626 = vsel %vm544, %v1623, %v1625
          %1627 = vrot.lane.b32.xlu0 %v1624, 127
          %v1628 = vpop.permute.xlu0 %1627
          %1629 = vrot.lane.b32.xlu0 %v1626, 127
          %v1630 = vpop.permute.xlu0 %1629
          %v1633 = vadd.f32 %v1612, %v1628
          %v1634 = vadd.f32 %v1613, %v1630
          %s1635 = sld [smem:[#allocation5 + $0x4e]]
          %v1636 = vstv %s1635
          %v1637 = vmul.f32 %v1636, %v1447
          %v1638 = vmul.f32 %v1636, %v1448
          %v1639 = vmul.f32 %v1636, %v1449
          %v1643 = vrot.slane %v1637, 4
          %v1644 = vrot.slane %v1638, 4
          %v1645 = vsel %vm200, %v1643, %v1644
          %v1646 = vrot.slane %v1639, 4
          %v1647 = vsel %vm200, %v1644, %v1646
          %1648 = vrot.lane.b32.xlu0 %v1645, 127
          %v1649 = vpop.permute.xlu0 %1648
          %1650 = vrot.lane.b32.xlu0 %v1647, 127
          %v1651 = vpop.permute.xlu0 %1650
          %v1654 = vadd.f32 %v1633, %v1649
          %v1655 = vadd.f32 %v1634, %v1651
          %s1656 = sld [smem:[#allocation5 + $0x55]]
          %v1657 = vstv %s1656
          %v1658 = vmul.f32 %v1657, %v1447
          %v1659 = vmul.f32 %v1657, %v1448
          %v1660 = vmul.f32 %v1657, %v1449
          %v1664 = vrot.slane %v1658, 5
          %v1665 = vrot.slane %v1659, 5
          %v1666 = vsel %vm579, %v1664, %v1665
          %v1667 = vrot.slane %v1660, 5
          %v1668 = vsel %vm579, %v1665, %v1667
          %1669 = vrot.lane.b32.xlu0 %v1666, 127
          %v1670 = vpop.permute.xlu0 %1669
          %1671 = vrot.lane.b32.xlu0 %v1668, 127
          %v1672 = vpop.permute.xlu0 %1671
          %v1675 = vadd.f32 %v1654, %v1670
          %v1676 = vadd.f32 %v1655, %v1672
          %s1677 = sld [smem:[#allocation5 + $0x5c]]
          %v1678 = vstv %s1677
          %v1679 = vmul.f32 %v1678, %v1447
          %v1680 = vmul.f32 %v1678, %v1448
          %v1681 = vmul.f32 %v1678, %v1449
          %v1685 = vrot.slane %v1679, 6
          %v1686 = vrot.slane %v1680, 6
          %v1687 = vsel %vm597, %v1685, %v1686
          %v1688 = vrot.slane %v1681, 6
          %v1689 = vsel %vm597, %v1686, %v1688
          %1690 = vrot.lane.b32.xlu0 %v1687, 127
          %v1691 = vpop.permute.xlu0 %1690
          %1692 = vrot.lane.b32.xlu0 %v1689, 127
          %v1693 = vpop.permute.xlu0 %1692
          %v1696 = vadd.f32 %v1675, %v1691
          %v1697 = vadd.f32 %v1676, %v1693
          %s1698 = sld [smem:[#allocation5 + $0x33]]
          %v1699 = vstv %s1698
          %v1700 = vmul.f32 %v1699, %v1447
          %v1701 = vmul.f32 %v1699, %v1448
          %1704 = vrot.lane.b32.xlu0 %v1700, 126
          %v1705 = vpop.permute.xlu0 %1704
          %1706 = vrot.lane.b32.xlu0 %v1701, 126
          %v1707 = vpop.permute.xlu0 %1706
          %v1710 = vadd.f32 %v1696, %v1705
          %v1711 = vadd.f32 %v1697, %v1707
          %s1712 = sld [smem:[#allocation5 + $0x3a]]
          %v1713 = vstv %s1712
          %v1714 = vmul.f32 %v1713, %v1447
          %v1715 = vmul.f32 %v1713, %v1448
          %v1716 = vmul.f32 %v1713, %v1449
          %v1720 = vrot.slane %v1714, 1
          %v1721 = vrot.slane %v1715, 1
          %v1722 = vsel %vm508, %v1720, %v1721
          %v1723 = vrot.slane %v1716, 1
          %v1724 = vsel %vm508, %v1721, %v1723
          %1725 = vrot.lane.b32.xlu0 %v1722, 126
          %v1726 = vpop.permute.xlu0 %1725
          %1727 = vrot.lane.b32.xlu0 %v1724, 126
          %v1728 = vpop.permute.xlu0 %1727
          %v1731 = vadd.f32 %v1710, %v1726
          %v1732 = vadd.f32 %v1711, %v1728
          %s1733 = sld [smem:[#allocation5 + $0x41]]
          %v1734 = vstv %s1733
          %v1735 = vmul.f32 %v1734, %v1447
          %v1736 = vmul.f32 %v1734, %v1448
          %v1737 = vmul.f32 %v1734, %v1449
          %v1741 = vrot.slane %v1735, 2
          %v1742 = vrot.slane %v1736, 2
          %v1743 = vsel %vm526, %v1741, %v1742
          %v1744 = vrot.slane %v1737, 2
          %v1745 = vsel %vm526, %v1742, %v1744
          %1746 = vrot.lane.b32.xlu0 %v1743, 126
          %v1747 = vpop.permute.xlu0 %1746
          %1748 = vrot.lane.b32.xlu0 %v1745, 126
          %v1749 = vpop.permute.xlu0 %1748
          %v1752 = vadd.f32 %v1731, %v1747
          %v1753 = vadd.f32 %v1732, %v1749
          %s1754 = sld [smem:[#allocation5 + $0x48]]
          %v1755 = vstv %s1754
          %v1756 = vmul.f32 %v1755, %v1447
          %v1757 = vmul.f32 %v1755, %v1448
          %v1758 = vmul.f32 %v1755, %v1449
          %v1762 = vrot.slane %v1756, 3
          %v1763 = vrot.slane %v1757, 3
          %v1764 = vsel %vm544, %v1762, %v1763
          %v1765 = vrot.slane %v1758, 3
          %v1766 = vsel %vm544, %v1763, %v1765
          %1767 = vrot.lane.b32.xlu0 %v1764, 126
          %v1768 = vpop.permute.xlu0 %1767
          %1769 = vrot.lane.b32.xlu0 %v1766, 126
          %v1770 = vpop.permute.xlu0 %1769
          %v1773 = vadd.f32 %v1752, %v1768
          %v1774 = vadd.f32 %v1753, %v1770
          %s1775 = sld [smem:[#allocation5 + $0x4f]]
          %v1776 = vstv %s1775
          %v1777 = vmul.f32 %v1776, %v1447
          %v1778 = vmul.f32 %v1776, %v1448
          %v1779 = vmul.f32 %v1776, %v1449
          %v1783 = vrot.slane %v1777, 4
          %v1784 = vrot.slane %v1778, 4
          %v1785 = vsel %vm200, %v1783, %v1784
          %v1786 = vrot.slane %v1779, 4
          %v1787 = vsel %vm200, %v1784, %v1786
          %1788 = vrot.lane.b32.xlu0 %v1785, 126
          %v1789 = vpop.permute.xlu0 %1788
          %1790 = vrot.lane.b32.xlu0 %v1787, 126
          %v1791 = vpop.permute.xlu0 %1790
          %v1794 = vadd.f32 %v1773, %v1789
          %v1795 = vadd.f32 %v1774, %v1791
          %s1796 = sld [smem:[#allocation5 + $0x56]]
          %v1797 = vstv %s1796
          %v1798 = vmul.f32 %v1797, %v1447
          %v1799 = vmul.f32 %v1797, %v1448
          %v1800 = vmul.f32 %v1797, %v1449
          %v1804 = vrot.slane %v1798, 5
          %v1805 = vrot.slane %v1799, 5
          %v1806 = vsel %vm579, %v1804, %v1805
          %v1807 = vrot.slane %v1800, 5
          %v1808 = vsel %vm579, %v1805, %v1807
          %1809 = vrot.lane.b32.xlu0 %v1806, 126
          %v1810 = vpop.permute.xlu0 %1809
          %1811 = vrot.lane.b32.xlu0 %v1808, 126
          %v1812 = vpop.permute.xlu0 %1811
          %v1815 = vadd.f32 %v1794, %v1810
          %v1816 = vadd.f32 %v1795, %v1812
          %s1817 = sld [smem:[#allocation5 + $0x5d]]
          %v1818 = vstv %s1817
          %v1819 = vmul.f32 %v1818, %v1447
          %v1820 = vmul.f32 %v1818, %v1448
          %v1821 = vmul.f32 %v1818, %v1449
          %v1825 = vrot.slane %v1819, 6
          %v1826 = vrot.slane %v1820, 6
          %v1827 = vsel %vm597, %v1825, %v1826
          %v1828 = vrot.slane %v1821, 6
          %v1829 = vsel %vm597, %v1826, %v1828
          %1830 = vrot.lane.b32.xlu0 %v1827, 126
          %v1831 = vpop.permute.xlu0 %1830
          %1832 = vrot.lane.b32.xlu0 %v1829, 126
          %v1833 = vpop.permute.xlu0 %1832
          %v1836 = vadd.f32 %v1815, %v1831
          %v1837 = vadd.f32 %v1816, %v1833
          %s1838 = sld [smem:[#allocation5 + $0x34]]
          %v1839 = vstv %s1838
          %v1840 = vmul.f32 %v1839, %v1447
          %v1841 = vmul.f32 %v1839, %v1448
          %1844 = vrot.lane.b32.xlu0 %v1840, 125
          %v1845 = vpop.permute.xlu0 %1844
          %1846 = vrot.lane.b32.xlu0 %v1841, 125
          %v1847 = vpop.permute.xlu0 %1846
          %v1850 = vadd.f32 %v1836, %v1845
          %v1851 = vadd.f32 %v1837, %v1847
          %s1852 = sld [smem:[#allocation5 + $0x3b]]
          %v1853 = vstv %s1852
          %v1854 = vmul.f32 %v1853, %v1447
          %v1855 = vmul.f32 %v1853, %v1448
          %v1856 = vmul.f32 %v1853, %v1449
          %v1860 = vrot.slane %v1854, 1
          %v1861 = vrot.slane %v1855, 1
          %v1862 = vsel %vm508, %v1860, %v1861
          %v1863 = vrot.slane %v1856, 1
          %v1864 = vsel %vm508, %v1861, %v1863
          %1865 = vrot.lane.b32.xlu0 %v1862, 125
          %v1866 = vpop.permute.xlu0 %1865
          %1867 = vrot.lane.b32.xlu0 %v1864, 125
          %v1868 = vpop.permute.xlu0 %1867
          %v1871 = vadd.f32 %v1850, %v1866
          %v1872 = vadd.f32 %v1851, %v1868
          %s1873 = sld [smem:[#allocation5 + $0x42]]
          %v1874 = vstv %s1873
          %v1875 = vmul.f32 %v1874, %v1447
          %v1876 = vmul.f32 %v1874, %v1448
          %v1877 = vmul.f32 %v1874, %v1449
          %v1881 = vrot.slane %v1875, 2
          %v1882 = vrot.slane %v1876, 2
          %v1883 = vsel %vm526, %v1881, %v1882
          %v1884 = vrot.slane %v1877, 2
          %v1885 = vsel %vm526, %v1882, %v1884
          %1886 = vrot.lane.b32.xlu0 %v1883, 125
          %v1887 = vpop.permute.xlu0 %1886
          %1888 = vrot.lane.b32.xlu0 %v1885, 125
          %v1889 = vpop.permute.xlu0 %1888
          %v1892 = vadd.f32 %v1871, %v1887
          %v1893 = vadd.f32 %v1872, %v1889
          %s1894 = sld [smem:[#allocation5 + $0x49]]
          %v1895 = vstv %s1894
          %v1896 = vmul.f32 %v1895, %v1447
          %v1897 = vmul.f32 %v1895, %v1448
          %v1898 = vmul.f32 %v1895, %v1449
          %v1902 = vrot.slane %v1896, 3
          %v1903 = vrot.slane %v1897, 3
          %v1904 = vsel %vm544, %v1902, %v1903
          %v1905 = vrot.slane %v1898, 3
          %v1906 = vsel %vm544, %v1903, %v1905
          %1907 = vrot.lane.b32.xlu0 %v1904, 125
          %v1908 = vpop.permute.xlu0 %1907
          %1909 = vrot.lane.b32.xlu0 %v1906, 125
          %v1910 = vpop.permute.xlu0 %1909
          %v1913 = vadd.f32 %v1892, %v1908
          %v1914 = vadd.f32 %v1893, %v1910
          %s1915 = sld [smem:[#allocation5 + $0x50]]
          %v1916 = vstv %s1915
          %v1917 = vmul.f32 %v1916, %v1447
          %v1918 = vmul.f32 %v1916, %v1448
          %v1919 = vmul.f32 %v1916, %v1449
          %v1923 = vrot.slane %v1917, 4
          %v1924 = vrot.slane %v1918, 4
          %v1925 = vsel %vm200, %v1923, %v1924
          %v1926 = vrot.slane %v1919, 4
          %v1927 = vsel %vm200, %v1924, %v1926
          %1928 = vrot.lane.b32.xlu0 %v1925, 125
          %v1929 = vpop.permute.xlu0 %1928
          %1930 = vrot.lane.b32.xlu0 %v1927, 125
          %v1931 = vpop.permute.xlu0 %1930
          %v1934 = vadd.f32 %v1913, %v1929
          %v1935 = vadd.f32 %v1914, %v1931
          %s1936 = sld [smem:[#allocation5 + $0x57]]
          %v1937 = vstv %s1936
          %v1938 = vmul.f32 %v1937, %v1447
          %v1939 = vmul.f32 %v1937, %v1448
          %v1940 = vmul.f32 %v1937, %v1449
          %v1944 = vrot.slane %v1938, 5
          %v1945 = vrot.slane %v1939, 5
          %v1946 = vsel %vm579, %v1944, %v1945
          %v1947 = vrot.slane %v1940, 5
          %v1948 = vsel %vm579, %v1945, %v1947
          %1949 = vrot.lane.b32.xlu0 %v1946, 125
          %v1950 = vpop.permute.xlu0 %1949
          %1951 = vrot.lane.b32.xlu0 %v1948, 125
          %v1952 = vpop.permute.xlu0 %1951
          %v1955 = vadd.f32 %v1934, %v1950
          %v1956 = vadd.f32 %v1935, %v1952
          %s1957 = sld [smem:[#allocation5 + $0x5e]]
          %v1958 = vstv %s1957
          %v1959 = vmul.f32 %v1958, %v1447
          %v1960 = vmul.f32 %v1958, %v1448
          %v1961 = vmul.f32 %v1958, %v1449
          %v1965 = vrot.slane %v1959, 6
          %v1966 = vrot.slane %v1960, 6
          %v1967 = vsel %vm597, %v1965, %v1966
          %v1968 = vrot.slane %v1961, 6
          %v1969 = vsel %vm597, %v1966, %v1968
          %1970 = vrot.lane.b32.xlu0 %v1967, 125
          %v1971 = vpop.permute.xlu0 %1970
          %1972 = vrot.lane.b32.xlu0 %v1969, 125
          %v1973 = vpop.permute.xlu0 %1972
          %v1976 = vadd.f32 %v1955, %v1971
          %v1977 = vadd.f32 %v1956, %v1973
          %s1978 = sld [smem:[#allocation5 + $0x35]]
          %v1979 = vstv %s1978
          %v1980 = vmul.f32 %v1979, %v1447
          %v1981 = vmul.f32 %v1979, %v1448
          %1984 = vrot.lane.b32.xlu0 %v1980, 124
          %v1985 = vpop.permute.xlu0 %1984
          %1986 = vrot.lane.b32.xlu0 %v1981, 124
          %v1987 = vpop.permute.xlu0 %1986
          %v1990 = vadd.f32 %v1976, %v1985
          %v1991 = vadd.f32 %v1977, %v1987
          %s1992 = sld [smem:[#allocation5 + $0x3c]]
          %v1993 = vstv %s1992
          %v1994 = vmul.f32 %v1993, %v1447
          %v1995 = vmul.f32 %v1993, %v1448
          %v1996 = vmul.f32 %v1993, %v1449
          %v2000 = vrot.slane %v1994, 1
          %v2001 = vrot.slane %v1995, 1
          %v2002 = vsel %vm508, %v2000, %v2001
          %v2003 = vrot.slane %v1996, 1
          %v2004 = vsel %vm508, %v2001, %v2003
          %2005 = vrot.lane.b32.xlu0 %v2002, 124
          %v2006 = vpop.permute.xlu0 %2005
          %2007 = vrot.lane.b32.xlu0 %v2004, 124
          %v2008 = vpop.permute.xlu0 %2007
          %v2011 = vadd.f32 %v1990, %v2006
          %v2012 = vadd.f32 %v1991, %v2008
          %s2013 = sld [smem:[#allocation5 + $0x43]]
          %v2014 = vstv %s2013
          %v2015 = vmul.f32 %v2014, %v1447
          %v2016 = vmul.f32 %v2014, %v1448
          %v2017 = vmul.f32 %v2014, %v1449
          %v2021 = vrot.slane %v2015, 2
          %v2022 = vrot.slane %v2016, 2
          %v2023 = vsel %vm526, %v2021, %v2022
          %v2024 = vrot.slane %v2017, 2
          %v2025 = vsel %vm526, %v2022, %v2024
          %2026 = vrot.lane.b32.xlu0 %v2023, 124
          %v2027 = vpop.permute.xlu0 %2026
          %2028 = vrot.lane.b32.xlu0 %v2025, 124
          %v2029 = vpop.permute.xlu0 %2028
          %v2032 = vadd.f32 %v2011, %v2027
          %v2033 = vadd.f32 %v2012, %v2029
          %s2034 = sld [smem:[#allocation5 + $0x4a]]
          %v2035 = vstv %s2034
          %v2036 = vmul.f32 %v2035, %v1447
          %v2037 = vmul.f32 %v2035, %v1448
          %v2038 = vmul.f32 %v2035, %v1449
          %v2042 = vrot.slane %v2036, 3
          %v2043 = vrot.slane %v2037, 3
          %v2044 = vsel %vm544, %v2042, %v2043
          %v2045 = vrot.slane %v2038, 3
          %v2046 = vsel %vm544, %v2043, %v2045
          %2047 = vrot.lane.b32.xlu0 %v2044, 124
          %v2048 = vpop.permute.xlu0 %2047
          %2049 = vrot.lane.b32.xlu0 %v2046, 124
          %v2050 = vpop.permute.xlu0 %2049
          %v2053 = vadd.f32 %v2032, %v2048
          %v2054 = vadd.f32 %v2033, %v2050
          %s2055 = sld [smem:[#allocation5 + $0x51]]
          %v2056 = vstv %s2055
          %v2057 = vmul.f32 %v2056, %v1447
          %v2058 = vmul.f32 %v2056, %v1448
          %v2059 = vmul.f32 %v2056, %v1449
          %v2063 = vrot.slane %v2057, 4
          %v2064 = vrot.slane %v2058, 4
          %v2065 = vsel %vm200, %v2063, %v2064
          %v2066 = vrot.slane %v2059, 4
          %v2067 = vsel %vm200, %v2064, %v2066
          %2068 = vrot.lane.b32.xlu0 %v2065, 124
          %v2069 = vpop.permute.xlu0 %2068
          %2070 = vrot.lane.b32.xlu0 %v2067, 124
          %v2071 = vpop.permute.xlu0 %2070
          %v2074 = vadd.f32 %v2053, %v2069
          %v2075 = vadd.f32 %v2054, %v2071
          %s2076 = sld [smem:[#allocation5 + $0x58]]
          %v2077 = vstv %s2076
          %v2078 = vmul.f32 %v2077, %v1447
          %v2079 = vmul.f32 %v2077, %v1448
          %v2080 = vmul.f32 %v2077, %v1449
          %v2084 = vrot.slane %v2078, 5
          %v2085 = vrot.slane %v2079, 5
          %v2086 = vsel %vm579, %v2084, %v2085
          %v2087 = vrot.slane %v2080, 5
          %v2088 = vsel %vm579, %v2085, %v2087
          %2089 = vrot.lane.b32.xlu0 %v2086, 124
          %v2090 = vpop.permute.xlu0 %2089
          %2091 = vrot.lane.b32.xlu0 %v2088, 124
          %v2092 = vpop.permute.xlu0 %2091
          %v2095 = vadd.f32 %v2074, %v2090
          %v2096 = vadd.f32 %v2075, %v2092
          %s2097 = sld [smem:[#allocation5 + $0x5f]]
          %v2098 = vstv %s2097
          %v2099 = vmul.f32 %v2098, %v1447
          %v2100 = vmul.f32 %v2098, %v1448
          %v2101 = vmul.f32 %v2098, %v1449
          %v2105 = vrot.slane %v2099, 6
          %v2106 = vrot.slane %v2100, 6
          %v2107 = vsel %vm597, %v2105, %v2106
          %v2108 = vrot.slane %v2101, 6
          %v2109 = vsel %vm597, %v2106, %v2108
          %2110 = vrot.lane.b32.xlu0 %v2107, 124
          %v2111 = vpop.permute.xlu0 %2110
          %2112 = vrot.lane.b32.xlu0 %v2109, 124
          %v2113 = vpop.permute.xlu0 %2112
          %v2116 = vadd.f32 %v2095, %v2111
          %v2117 = vadd.f32 %v2096, %v2113
          %s2118 = sld [smem:[#allocation5 + $0x36]]
          %v2119 = vstv %s2118
          %v2120 = vmul.f32 %v2119, %v1447
          %v2121 = vmul.f32 %v2119, %v1448
          %2124 = vrot.lane.b32.xlu0 %v2120, 123
          %v2125 = vpop.permute.xlu0 %2124
          %2126 = vrot.lane.b32.xlu0 %v2121, 123
          %v2127 = vpop.permute.xlu0 %2126
          %v2130 = vadd.f32 %v2116, %v2125
          %v2131 = vadd.f32 %v2117, %v2127
          %s2132 = sld [smem:[#allocation5 + $0x3d]]
          %v2133 = vstv %s2132
          %v2134 = vmul.f32 %v2133, %v1447
          %v2135 = vmul.f32 %v2133, %v1448
          %v2136 = vmul.f32 %v2133, %v1449
          %v2140 = vrot.slane %v2134, 1
          %v2141 = vrot.slane %v2135, 1
          %v2142 = vsel %vm508, %v2140, %v2141
          %v2143 = vrot.slane %v2136, 1
          %v2144 = vsel %vm508, %v2141, %v2143
          %2145 = vrot.lane.b32.xlu0 %v2142, 123
          %v2146 = vpop.permute.xlu0 %2145
          %2147 = vrot.lane.b32.xlu0 %v2144, 123
          %v2148 = vpop.permute.xlu0 %2147
          %v2151 = vadd.f32 %v2130, %v2146
          %v2152 = vadd.f32 %v2131, %v2148
          %s2153 = sld [smem:[#allocation5 + $0x44]]
          %v2154 = vstv %s2153
          %v2155 = vmul.f32 %v2154, %v1447
          %v2156 = vmul.f32 %v2154, %v1448
          %v2157 = vmul.f32 %v2154, %v1449
          %v2161 = vrot.slane %v2155, 2
          %v2162 = vrot.slane %v2156, 2
          %v2163 = vsel %vm526, %v2161, %v2162
          %v2164 = vrot.slane %v2157, 2
          %v2165 = vsel %vm526, %v2162, %v2164
          %2166 = vrot.lane.b32.xlu0 %v2163, 123
          %v2167 = vpop.permute.xlu0 %2166
          %2168 = vrot.lane.b32.xlu0 %v2165, 123
          %v2169 = vpop.permute.xlu0 %2168
          %v2172 = vadd.f32 %v2151, %v2167
          %v2173 = vadd.f32 %v2152, %v2169
          %s2174 = sld [smem:[#allocation5 + $0x4b]]
          %v2175 = vstv %s2174
          %v2176 = vmul.f32 %v2175, %v1447
          %v2177 = vmul.f32 %v2175, %v1448
          %v2178 = vmul.f32 %v2175, %v1449
          %v2182 = vrot.slane %v2176, 3
          %v2183 = vrot.slane %v2177, 3
          %v2184 = vsel %vm544, %v2182, %v2183
          %v2185 = vrot.slane %v2178, 3
          %v2186 = vsel %vm544, %v2183, %v2185
          %2187 = vrot.lane.b32.xlu0 %v2184, 123
          %v2188 = vpop.permute.xlu0 %2187
          %2189 = vrot.lane.b32.xlu0 %v2186, 123
          %v2190 = vpop.permute.xlu0 %2189
          %v2193 = vadd.f32 %v2172, %v2188
          %v2194 = vadd.f32 %v2173, %v2190
          %s2195 = sld [smem:[#allocation5 + $0x52]]
          %v2196 = vstv %s2195
          %v2197 = vmul.f32 %v2196, %v1447
          %v2198 = vmul.f32 %v2196, %v1448
          %v2199 = vmul.f32 %v2196, %v1449
          %v2203 = vrot.slane %v2197, 4
          %v2204 = vrot.slane %v2198, 4
          %v2205 = vsel %vm200, %v2203, %v2204
          %v2206 = vrot.slane %v2199, 4
          %v2207 = vsel %vm200, %v2204, %v2206
          %2208 = vrot.lane.b32.xlu0 %v2205, 123
          %v2209 = vpop.permute.xlu0 %2208
          %2210 = vrot.lane.b32.xlu0 %v2207, 123
          %v2211 = vpop.permute.xlu0 %2210
          %v2214 = vadd.f32 %v2193, %v2209
          %v2215 = vadd.f32 %v2194, %v2211
          %s2216 = sld [smem:[#allocation5 + $0x59]]
          %v2217 = vstv %s2216
          %v2218 = vmul.f32 %v2217, %v1447
          %v2219 = vmul.f32 %v2217, %v1448
          %v2220 = vmul.f32 %v2217, %v1449
          %v2224 = vrot.slane %v2218, 5
          %v2225 = vrot.slane %v2219, 5
          %v2226 = vsel %vm579, %v2224, %v2225
          %v2227 = vrot.slane %v2220, 5
          %v2228 = vsel %vm579, %v2225, %v2227
          %2229 = vrot.lane.b32.xlu0 %v2226, 123
          %v2230 = vpop.permute.xlu0 %2229
          %2231 = vrot.lane.b32.xlu0 %v2228, 123
          %v2232 = vpop.permute.xlu0 %2231
          %v2235 = vadd.f32 %v2214, %v2230
          %v2236 = vadd.f32 %v2215, %v2232
          %s2237 = sld [smem:[#allocation5 + $0x60]]
          %v2238 = vstv %s2237
          %v2239 = vmul.f32 %v2238, %v1447
          %v2240 = vmul.f32 %v2238, %v1448
          %v2241 = vmul.f32 %v2238, %v1449
          %v2245 = vrot.slane %v2239, 6
          %v2246 = vrot.slane %v2240, 6
          %v2247 = vsel %vm597, %v2245, %v2246
          %v2248 = vrot.slane %v2241, 6
          %v2249 = vsel %vm597, %v2246, %v2248
          %2250 = vrot.lane.b32.xlu0 %v2247, 123
          %v2251 = vpop.permute.xlu0 %2250
          %2252 = vrot.lane.b32.xlu0 %v2249, 123
          %v2253 = vpop.permute.xlu0 %2252
          %v2256 = vadd.f32 %v2235, %v2251
          %v2257 = vadd.f32 %v2236, %v2253
          %s2258 = sld [smem:[#allocation5 + $0x37]]
          %v2259 = vstv %s2258
          %v2260 = vmul.f32 %v2259, %v1447
          %v2261 = vmul.f32 %v2259, %v1448
          %2264 = vrot.lane.b32.xlu0 %v2260, 122
          %v2265 = vpop.permute.xlu0 %2264
          %2266 = vrot.lane.b32.xlu0 %v2261, 122
          %v2267 = vpop.permute.xlu0 %2266
          %v2270 = vadd.f32 %v2256, %v2265
          %v2271 = vadd.f32 %v2257, %v2267
          %s2272 = sld [smem:[#allocation5 + $0x3e]]
          %v2273 = vstv %s2272
          %v2274 = vmul.f32 %v2273, %v1447
          %v2275 = vmul.f32 %v2273, %v1448
          %v2276 = vmul.f32 %v2273, %v1449
          %v2280 = vrot.slane %v2274, 1
          %v2281 = vrot.slane %v2275, 1
          %v2282 = vsel %vm508, %v2280, %v2281
          %v2283 = vrot.slane %v2276, 1
          %v2284 = vsel %vm508, %v2281, %v2283
          %2285 = vrot.lane.b32.xlu0 %v2282, 122
          %v2286 = vpop.permute.xlu0 %2285
          %2287 = vrot.lane.b32.xlu0 %v2284, 122
          %v2288 = vpop.permute.xlu0 %2287
          %v2291 = vadd.f32 %v2270, %v2286
          %v2292 = vadd.f32 %v2271, %v2288
          %s2293 = sld [smem:[#allocation5 + $0x45]]
          %v2294 = vstv %s2293
          %v2295 = vmul.f32 %v2294, %v1447
          %v2296 = vmul.f32 %v2294, %v1448
          %v2297 = vmul.f32 %v2294, %v1449
          %v2301 = vrot.slane %v2295, 2
          %v2302 = vrot.slane %v2296, 2
          %v2303 = vsel %vm526, %v2301, %v2302
          %v2304 = vrot.slane %v2297, 2
          %v2305 = vsel %vm526, %v2302, %v2304
          %2306 = vrot.lane.b32.xlu0 %v2303, 122
          %v2307 = vpop.permute.xlu0 %2306
          %2308 = vrot.lane.b32.xlu0 %v2305, 122
          %v2309 = vpop.permute.xlu0 %2308
          %v2312 = vadd.f32 %v2291, %v2307
          %v2313 = vadd.f32 %v2292, %v2309
          %s2314 = sld [smem:[#allocation5 + $0x4c]]
          %v2315 = vstv %s2314
          %v2316 = vmul.f32 %v2315, %v1447
          %v2317 = vmul.f32 %v2315, %v1448
          %v2318 = vmul.f32 %v2315, %v1449
          %v2322 = vrot.slane %v2316, 3
          %v2323 = vrot.slane %v2317, 3
          %v2324 = vsel %vm544, %v2322, %v2323
          %v2325 = vrot.slane %v2318, 3
          %v2326 = vsel %vm544, %v2323, %v2325
          %2327 = vrot.lane.b32.xlu0 %v2324, 122
          %v2328 = vpop.permute.xlu0 %2327
          %2329 = vrot.lane.b32.xlu0 %v2326, 122
          %v2330 = vpop.permute.xlu0 %2329
          %v2333 = vadd.f32 %v2312, %v2328
          %v2334 = vadd.f32 %v2313, %v2330
          %s2335 = sld [smem:[#allocation5 + $0x53]]
          %v2336 = vstv %s2335
          %v2337 = vmul.f32 %v2336, %v1447
          %v2338 = vmul.f32 %v2336, %v1448
          %v2339 = vmul.f32 %v2336, %v1449
          %v2343 = vrot.slane %v2337, 4
          %v2344 = vrot.slane %v2338, 4
          %v2345 = vsel %vm200, %v2343, %v2344
          %v2346 = vrot.slane %v2339, 4
          %v2347 = vsel %vm200, %v2344, %v2346
          %2348 = vrot.lane.b32.xlu0 %v2345, 122
          %v2349 = vpop.permute.xlu0 %2348
          %2350 = vrot.lane.b32.xlu0 %v2347, 122
          %v2351 = vpop.permute.xlu0 %2350
          %v2354 = vadd.f32 %v2333, %v2349
          %v2355 = vadd.f32 %v2334, %v2351
          %s2356 = sld [smem:[#allocation5 + $0x5a]]
          %v2357 = vstv %s2356
          %v2358 = vmul.f32 %v2357, %v1447
          %v2359 = vmul.f32 %v2357, %v1448
          %v2360 = vmul.f32 %v2357, %v1449
          %v2364 = vrot.slane %v2358, 5
          %v2365 = vrot.slane %v2359, 5
          %v2366 = vsel %vm579, %v2364, %v2365
          %v2367 = vrot.slane %v2360, 5
          %v2368 = vsel %vm579, %v2365, %v2367
          %2369 = vrot.lane.b32.xlu0 %v2366, 122
          %v2370 = vpop.permute.xlu0 %2369
          %2371 = vrot.lane.b32.xlu0 %v2368, 122
          %v2372 = vpop.permute.xlu0 %2371
          %v2375 = vadd.f32 %v2354, %v2370
          %v2376 = vadd.f32 %v2355, %v2372
          %s2377 = sld [smem:[#allocation5 + $0x61]]
          %v2378 = vstv %s2377
          %v2379 = vmul.f32 %v2378, %v1447
          %v2380 = vmul.f32 %v2378, %v1448
          %v2381 = vmul.f32 %v2378, %v1449
          %v2385 = vrot.slane %v2379, 6
          %v2386 = vrot.slane %v2380, 6
          %v2387 = vsel %vm597, %v2385, %v2386
          %v2388 = vrot.slane %v2381, 6
          %v2389 = vsel %vm597, %v2386, %v2388
          %2390 = vrot.lane.b32.xlu0 %v2387, 122
          %v2391 = vpop.permute.xlu0 %2390
          %2392 = vrot.lane.b32.xlu0 %v2389, 122
          %v2393 = vpop.permute.xlu0 %2392
          %v2396 = vadd.f32 %v2375, %v2391
          %v2397 = vadd.f32 %v2376, %v2393
          %v2398 = vxor.u32 %v2396, 2147483648
          %v2399 = vxor.u32 %v2397, 2147483648
          %v2400 = vmul.f32 %v2398, 1.442695
          %v2401 = vpow.pop %v2400
          %v2402 = vmul.f32 %v2399, 1.442695
          %v2403 = vpow.pop %v2402
          %v2404 = vadd.f32 %v2401, 1.0
          %v2405 = vadd.f32 %v2403, 1.0
          %v2406 = vrcp.pop %v2404
          %v2407 = vmul.f32 %v2404, %v2406
          %v2408 = vsub.f32 1.0, %v2407
          %v2409 = vmul.f32 %v2406, %v2408
          %v2410 = vadd.f32 %v2406, %v2409
          %vm2411 = vweird.f32 %v2404
          %vm2412 = vweird.f32 %v2406
          %vm2413 = vmor %vm2411, %vm2412
          %v2414 = vsel %vm2413, %v2406, %v2410
          %v2415 = vand.u32 2147483647, %v2404
          %vm2416 = vcmp.eq.f32.partialorder %v2415, 8.507059e+37
          %v2417 = vand.u32 %v2404, 2147483648
          %v2418 = vor.u32 1.1754944e-38, %v2417
          %v2419 = vsel %vm2416, %v2418, %v2414
          %v2420 = vmul.f32 1.0, %v2419
          %v2421 = vrcp.pop %v2405
          %v2422 = vmul.f32 %v2405, %v2421
          %v2423 = vsub.f32 1.0, %v2422
          %v2424 = vmul.f32 %v2421, %v2423
          %v2425 = vadd.f32 %v2421, %v2424
          %vm2426 = vweird.f32 %v2405
          %vm2427 = vweird.f32 %v2421
          %vm2428 = vmor %vm2426, %vm2427
          %v2429 = vsel %vm2428, %v2421, %v2425
          %v2430 = vand.u32 2147483647, %v2405
          %vm2431 = vcmp.eq.f32.partialorder %v2430, 8.507059e+37
          %v2432 = vand.u32 %v2405, 2147483648
          %v2433 = vor.u32 1.1754944e-38, %v2432
          %v2434 = vsel %vm2431, %v2433, %v2429
          %v2435 = vmul.f32 1.0, %v2434
          %vm2436 = vcmask 130048
          %2437 = vst.msk [vmem:[%s172] sm:$0xff] %vm2436, %v2420
          %2438 = vst.msk [vmem:[%s172 + $0x8] sm:$0xff] %vm2436, %v2435
        $region40: #{spatial_attention.1} parent=27 // pred_fallthru
          _
        %s2439 = sand.u32 %s86, 1
        %s2440 = scalar_lea.sflag [#allocation6], %s2439
        %s2441 = sand.u32 %s86, 1
        %s2442 = smul.addr %s2441, 16
        %s2443 = scalar_lea.vmem [#allocation8], %s2442
        // Predicated region
        $region41: #{spatial_attention.1} parent=27 // pred_check
          %p2444 = pneg %p96
        $region42: #{spatial_attention.1} parent=27 // pred_check_branch
          %2446 = sbr.rel (%p2444) target = $region44
        $region43: #{spatial_attention.1} parent=27 // pred_region
          %2448 = vsyncadd %s2440, 0
          %s2449 = smul.addr %s21, 2
          %s2450 = smul.addr %s2449, 8
          %s2451 = scalar_lea.hbm %s2, %s2450
          %s2452 = sshll.u32 %s2443, 4
          %s2453 = int_to_ptr.vmem [resolvable:$true] %s2452
          %s2454 = sshll.u32 %s2451, 4
          %s2455 = int_to_ptr.hbm [resolvable:$true] %s2454
          %2460 = dma.vmem_to_hbm [thread:$0]  %s2453, 256, %s2455, %s2440, 128, 128, 8
        $region44: #{spatial_attention.1} parent=27 // pred_fallthru
          _
      $region28: #{spatial_attention.1} parent=5 // pred_fallthru
        _
      %p2461 = scmp.le.s32.totalorder 2, %s12
      // Predicated region
      $region45: #{spatial_attention.1} parent=5 // pred_check
        %p2462 = pneg %p2461
      $region46: #{spatial_attention.1} parent=5 // pred_check_branch
        %2464 = sbr.rel (%p2462) target = $region48
      $region47: #{spatial_attention.1} parent=5 // pred_region
        %s2465 = ssub.s32 %s12, 2
        // Predicated region
        $region49: #{spatial_attention.1} parent=47 // pred_check
          %p2466 = pneg %p102
        $region50: #{spatial_attention.1} parent=47 // pred_check_branch
          %2468 = sbr.rel (%p2466) target = $region52
        $region51: #{spatial_attention.1} parent=47 // pred_region
          %s2469 = sand.u32 %s87, 1
          %s2470 = scalar_lea.sflag [#allocation6], %s2469
          %s2471 = sand.u32 %s87, 1
          %s2472 = smul.addr %s2471, 16
          %s2473 = scalar_lea.vmem [#allocation8], %s2472
          %2475 = dma.done %s2470, 256
        $region52: #{spatial_attention.1} parent=47 // pred_fallthru
          _
      $region48: #{spatial_attention.1} parent=5 // pred_fallthru
        _
    $region6: #{spatial_attention.1} parent=1 // loop_footer
      %s16 = sadd.s32 1, %s12
    $region7: #{spatial_attention.1} parent=1 // loop_footer_branch
      %11 = sbr.rel target = $region3
    $region8: #{spatial_attention.1} parent=1 // loop_exit
      _
    %2476 = vsyncpa [#allocation6], 1
    %s2477 = scalar_lea.sflag [#allocation6], 1
    %2478 = vsyncpa %s2477, 1
    %2479 = vsyncpa [#allocation7], 1
    %s2480 = scalar_lea.sflag [#allocation7], 1
    %2481 = vsyncpa %s2480, 1

</llo_original>
